<compile_context>
chip_gen: v6e
topology: v6e:2x2x1
jax: 0.10.0
libtpu: 0.0.40
codegen_flags: <defaults>
</compile_context>

<pallas_src>
import functools
import math

import jax
import jax.numpy as jnp
from jax.experimental import pallas as pl
from jax.experimental.pallas import tpu as pltpu


# ----------------------------- in-kernel helpers -----------------------------

def _mm(x, w_ref, b_ref=None):
    """y = x @ W (+ b), f32 accumulation.  W is pre-transposed (in, out); its dtype
    (f32 or bf16) sets the MXU operand dtype and x is cast to match."""
    w = w_ref[...]
    y = jnp.dot(x.astype(w.dtype), w, preferred_element_type=jnp.float32)
    if b_ref is not None:
        y = y + b_ref[...].astype(jnp.float32)
    return y


def _layernorm(x, gamma, beta, eps=1e-5):
    mu = jnp.mean(x, axis=-1, keepdims=True)
    xc = x - mu
    var = jnp.mean(xc * xc, axis=-1, keepdims=True)
    return xc * jax.lax.rsqrt(var + eps) * gamma + beta


def _split_heads(y, nhead, hd):
    """(L, nhead*hd) -> (nhead, L, hd).  One lane-split reshape + one relayout,
    instead of nhead sub-128-lane slices + a stack."""
    l = y.shape[0]
    return jnp.transpose(y.reshape(l, nhead, hd), (1, 0, 2))


def _attention(q, k, v, wo_ref, bo_ref, nhead, *, return_weights):
    """Head-batched scaled-dot-product attention + fused output projection.

    q: (Lq, E) already scaled by 1/sqrt(hd) (folded into the Q weights).
    k, v: (Lkv, E).  wo_ref: (E, E) pre-transposed W_o. Returns ((Lq,E), weights|None).
    """
    lq, e = q.shape
    lkv = k.shape[0]
    hd = e // nhead
    cdt = wo_ref.dtype                                    # MXU operand dtype

    qh = _split_heads(q, nhead, hd).astype(cdt)           # (H, Lq, hd)
    kh = _split_heads(k, nhead, hd).astype(cdt)           # (H, Lkv, hd)
    vh = _split_heads(v, nhead, hd).astype(cdt)           # (H, Lkv, hd)

    s = jnp.einsum('hqd,hkd->hqk', qh, kh,
                   preferred_element_type=jnp.float32)    # (H, Lq, Lkv) f32
    s = s - jnp.max(s, axis=-1, keepdims=True)
    p = jnp.exp(s)
    denom = jnp.sum(p, axis=-1, keepdims=True)
    if return_weights:
        p = p / denom                   # exact: returned rows sum to 1 (PyTorch parity)
    else:
        p = p * pl.reciprocal(denom, approx=True)         # EUP fast path

    ctx = jnp.einsum('hqk,hkd->hqd', p.astype(cdt), vh,
                     preferred_element_type=jnp.float32)  # (H, Lq, hd)

    # Merge heads back to (Lq, E) and fuse the head reduction into a single
    # (Lq,E) @ (E,E) projection: no (H, Lq, E) intermediate, no major-axis sum.
    ctx_m = jnp.transpose(ctx, (1, 0, 2)).reshape(lq, e)
    out = jnp.dot(ctx_m.astype(cdt), wo_ref[...],
                  preferred_element_type=jnp.float32) + bo_ref[...].astype(jnp.float32)

    w = jnp.mean(p, axis=0) if return_weights else None   # head-averaged (Lq, Lkv) f32
    return out, w


# ----------------------------- Pallas kernel --------------------------------

def decoder_layer_kernel(tgt_ref, mem_ref,
                         sa_wqkv, sa_bqkv, sa_wo, sa_bo,
                         ca_wq, ca_bq, ca_wkv, ca_bkv, ca_wo, ca_bo,
                         w1, b1, w2, b2, ln_g, ln_b,
                         out_ref, *attnw_ref, nhead, need_weights):
    _, lt, e = tgt_ref.shape          # block = (1, Lt, E): one batch element / step
    _, lm, _ = mem_ref.shape
    hd = e // nhead

    # Keep activations in the input dtype; only residual adds / LN stats are f32.
    x_in = tgt_ref[...].reshape(lt, e)
    m_in = mem_ref[...].reshape(lm, e)

    g = ln_g[...].astype(jnp.float32)                     # (3, E)
    be = ln_b[...].astype(jnp.float32)                    # (3, E)

    # --- self attention (fused QKV matmul; attention weights discarded) ---
    qkv = _mm(x_in, sa_wqkv, sa_bqkv)                     # (Lt, 3E) f32, Q pre-scaled
    sa_out, _ = _attention(qkv[:, :e], qkv[:, e:2 * e], qkv[:, 2 * e:],
                           sa_wo, sa_bo, nhead, return_weights=False)
    x = _layernorm(x_in.astype(jnp.float32) + sa_out, g[0:1], be[0:1])

    # --- cross attention (fused KV matmul; head-averaged weights optionally out) ---
    q = _mm(x, ca_wq, ca_bq)                              # (Lt, E), pre-scaled
    kv = _mm(m_in, ca_wkv, ca_bkv)                        # (Lm, 2E)
    ca_out, attn_w = _attention(q, kv[:, :e], kv[:, e:], ca_wo, ca_bo, nhead,
                                return_weights=need_weights)
    x = _layernorm(x + ca_out, g[1:2], be[1:2])

    # --- feed-forward (relu) ---
    h1 = jnp.maximum(_mm(x, w1, b1), 0.0)
    ff = _mm(h1, w2, b2)
    x = _layernorm(x + ff, g[2:3], be[2:3])

    out_ref[...] = x.reshape(1, lt, e).astype(out_ref.dtype)
    if need_weights:
        attnw_ref[0][...] = attn_w.reshape(1, lt, lm).astype(attnw_ref[0].dtype)


# ------------------------------- wrapper -------------------------------------

def pack_params(params, *, nhead, mxu_dtype=jnp.bfloat16):
    """One-time host-side packing: transpose, fuse QKV/KV, fold the 1/sqrt(hd)
    softmax scale into the Q projection, group LayerNorm params.  Only the large
    matmul operands are cast to mxu_dtype; biases / LN params stay f32."""
    e = params["sa_wq"].shape[0]
    hd = e // nhead
    scale = 1.0 / math.sqrt(hd)

    def mx(w):
        return w.astype(mxu_dtype)

    sa_wqkv = mx(jnp.concatenate(
        [params["sa_wq"] * scale, params["sa_wk"], params["sa_wv"]], axis=0).T)   # (E, 3E)
    sa_bqkv = jnp.concatenate(
        [params["sa_bq"] * scale, params["sa_bk"], params["sa_bv"]], axis=-1)     # (1, 3E)
    sa_wo_t = mx(params["sa_wo"].T)                                               # (E, E)

    ca_wq_t = mx((params["ca_wq"] * scale).T)                                     # (E, E)
    ca_bq = params["ca_bq"] * scale                                               # (1, E)
    ca_wkv = mx(jnp.concatenate([params["ca_wk"], params["ca_wv"]], axis=0).T)    # (E, 2E)
    ca_bkv = jnp.concatenate([params["ca_bk"], params["ca_bv"]], axis=-1)         # (1, 2E)
    ca_wo_t = mx(params["ca_wo"].T)                                               # (E, E)

    w1t, w2t = mx(params["w1"].T), mx(params["w2"].T)                             # (E,Dff),(Dff,E)
    ln_g = jnp.concatenate([params["g1"], params["g2"], params["g3"]], axis=0)    # (3, E)
    ln_b = jnp.concatenate([params["be1"], params["be2"], params["be3"]], axis=0) # (3, E)

    return (sa_wqkv, sa_bqkv, sa_wo_t, params["sa_bo"],
            ca_wq_t, ca_bq, ca_wkv, ca_bkv, ca_wo_t, params["ca_bo"],
            w1t, params["b1"], w2t, params["b2"], ln_g, ln_b)


def _vmem_limit_bytes(weight_bytes, act_bytes):
    want = 2 * weight_bytes + 8 * act_bytes + (8 << 20)
    cap = 96 << 20
    try:  # keep headroom under the detected chip's physical VMEM (64 MiB on v7x)
        cap = min(cap, int(pltpu.get_tpu_info().vmem_capacity_bytes) * 3 // 4)
    except Exception:
        pass
    return int(min(max(want, 32 << 20), max(cap, 32 << 20)))


def transformer_decoder_layer(tgt, memory, params, *, nhead,
                              mxu_dtype=jnp.bfloat16, need_weights=True):
    """tgt: (B, Lt, E), memory: (B, Lm, E).
    Returns (out (B,Lt,E), attn_w (B,Lt,Lm) or None)."""
    B, Lt, E = tgt.shape
    _, Lm, _ = memory.shape
    Dff = params["w1"].shape[0]

    weights = pack_params(params, nhead=nhead, mxu_dtype=mxu_dtype)

    def wspec(arr):
        # Full-array block with a constant index_map: fetched once, VMEM-resident
        # across all grid steps.
        return pl.BlockSpec(arr.shape, lambda b, n=arr.ndim: (0,) * n)

    in_specs = [
        pl.BlockSpec((1, Lt, E), lambda b: (b, 0, 0)),     # tgt (one batch elem / step)
        pl.BlockSpec((1, Lm, E), lambda b: (b, 0, 0)),     # memory
    ] + [wspec(w) for w in weights]

    out_shapes = [jax.ShapeDtypeStruct((B, Lt, E), tgt.dtype)]
    out_specs = [pl.BlockSpec((1, Lt, E), lambda b: (b, 0, 0))]
    if need_weights:
        # NOTE(v5e): at production sizes keep Lm a multiple of 128 for lane-dense stores.
        out_shapes.append(jax.ShapeDtypeStruct((B, Lt, Lm), jnp.float32))
        out_specs.append(pl.BlockSpec((1, Lt, Lm), lambda b: (b, 0, 0)))

    w_bytes = sum(int(w.size) * w.dtype.itemsize for w in weights)
    act_bytes = 4 * (Lt * 3 * E + Lm * 2 * E + nhead * Lt * max(Lt, Lm)
                     + Lt * Dff + 4 * Lt * E)

    kernel = functools.partial(decoder_layer_kernel, nhead=nhead,
                               need_weights=need_weights)

    outs = pl.pallas_call(
        kernel,
        out_shape=tuple(out_shapes),
        grid_spec=pltpu.PrefetchScalarGridSpec(
            num_scalar_prefetch=0,
            grid=(B,),                       # >= 2 parallel steps: megacore + DMA pipelining
            in_specs=in_specs,
            out_specs=out_specs,
        ),
        compiler_params=pltpu.CompilerParams(
            dimension_semantics=("parallel",),
            vmem_limit_bytes=_vmem_limit_bytes(w_bytes, act_bytes),
        ),
    )(tgt, memory, *weights)

    if need_weights:
        return outs[0], outs[1]
    return outs[0], None


# --------------------------- pure-JAX reference ------------------------------

def _ref_mha(q_in, kv_in, wq, wk, wv, bq, bk, bv, wo, bo, nhead):
    e = q_in.shape[-1]
    hd = e // nhead
    scale = 1.0 / math.sqrt(hd)
    q = q_in @ wq.T + bq
    k = kv_in @ wk.T + bk
    v = kv_in @ wv.T + bv
    outs, ws = [], []
    for h in range(nhead):
        sl = slice(h * hd, (h + 1) * hd)
        s = (q[:, sl] * scale) @ k[:, sl].T
        p = jax.nn.softmax(s, axis=-1)
        outs.append(p @ v[:, sl])
        ws.append(p)
    attn = jnp.concatenate(outs, axis=-1)
    return attn @ wo.T + bo, sum(ws) / float(nhead)


def _ref_layer(tgt, memory, p, nhead):
    def ln(x, g, b):
        mu = jnp.mean(x, -1, keepdims=True)
        var = jnp.mean((x - mu) ** 2, -1, keepdims=True)
        return (x - mu) / jnp.sqrt(var + 1e-5) * g + b

    outs, wts = [], []
    for b in range(tgt.shape[0]):
        x, m = tgt[b], memory[b]
        sa, _ = _ref_mha(x, x, p["sa_wq"], p["sa_wk"], p["sa_wv"],
                         p["sa_bq"], p["sa_bk"], p["sa_bv"],
                         p["sa_wo"], p["sa_bo"], nhead)
        x = ln(x + sa, p["g1"], p["be1"])
        ca, w = _ref_mha(x, m, p["ca_wq"], p["ca_wk"], p["ca_wv"],
                         p["ca_bq"], p["ca_bk"], p["ca_bv"],
                         p["ca_wo"], p["ca_bo"], nhead)
        x = ln(x + ca, p["g2"], p["be2"])
        ff = jnp.maximum(x @ p["w1"].T + p["b1"], 0.0) @ p["w2"].T + p["b2"]
        x = ln(x + ff, p["g3"], p["be3"])
        outs.append(x)
        wts.append(w)
    return jnp.stack(outs), jnp.stack(wts)


# ---------------------------------- main -------------------------------------

if __name__ == "__main__":
    B, Lt, Lm = 2, 8, 16
    E, nhead, Dff = 32, 4, 64

    key = jax.random.PRNGKey(0)
    ks = iter(jax.random.split(key, 32))

    def rnd(shape, scale=0.05):
        return (scale * jax.random.normal(next(ks), shape)).astype(jnp.float32)

    params = {
        # self-attention (in_proj split into q/k/v), biases kept 2D (1, E)
        "sa_wq": rnd((E, E)), "sa_wk": rnd((E, E)), "sa_wv": rnd((E, E)),
        "sa_bq": rnd((1, E)), "sa_bk": rnd((1, E)), "sa_bv": rnd((1, E)),
        "sa_wo": rnd((E, E)), "sa_bo": rnd((1, E)),
        # cross-attention
        "ca_wq": rnd((E, E)), "ca_wk": rnd((E, E)), "ca_wv": rnd((E, E)),
        "ca_bq": rnd((1, E)), "ca_bk": rnd((1, E)), "ca_bv": rnd((1, E)),
        "ca_wo": rnd((E, E)), "ca_bo": rnd((1, E)),
        # feedforward
        "w1": rnd((Dff, E)), "b1": rnd((1, Dff)),
        "w2": rnd((E, Dff)), "b2": rnd((1, E)),
        # layer norms (PyTorch default init: gamma=1, beta=0)
        "g1": jnp.ones((1, E), jnp.float32), "be1": jnp.zeros((1, E), jnp.float32),
        "g2": jnp.ones((1, E), jnp.float32), "be2": jnp.zeros((1, E), jnp.float32),
        "g3": jnp.ones((1, E), jnp.float32), "be3": jnp.zeros((1, E), jnp.float32),
    }

    tgt = jax.random.normal(next(ks), (B, Lt, E), jnp.float32)
    memory = jax.random.normal(next(ks), (B, Lm, E), jnp.float32)

    ref_out, ref_w = _ref_layer(tgt, memory, params, nhead)

    # f32 MXU operands: tight parity with the f32 reference.
    out, attn_w = transformer_decoder_layer(tgt, memory, params, nhead=nhead,
                                            mxu_dtype=jnp.float32)
    out = jax.block_until_ready(out)
    attn_w = jax.block_until_ready(attn_w)
    assert out.shape == (B, Lt, E) and attn_w.shape == (B, Lt, Lm)
    assert jnp.allclose(out, ref_out, atol=2e-3, rtol=2e-3), "f32 output mismatch"
    assert jnp.allclose(attn_w, ref_w, atol=1e-4, rtol=1e-4), "f32 attn weights mismatch"

    # bf16 MXU operands (production default): looser tolerance (operand quantization).
    out_bf, attn_bf = transformer_decoder_layer(tgt, memory, params, nhead=nhead,
                                                mxu_dtype=jnp.bfloat16)
    out_bf = jax.block_until_ready(out_bf)
    attn_bf = jax.block_until_ready(attn_bf)
    assert jnp.allclose(out_bf, ref_out, atol=2e-2, rtol=2e-2), "bf16 output mismatch"
    assert jnp.allclose(attn_bf, ref_w, atol=2e-3, rtol=2e-3), "bf16 attn weights mismatch"

    # need_weights=False path: skips attn-weight compute + writeback entirely.
    out_nw, w_none = transformer_decoder_layer(tgt, memory, params, nhead=nhead,
                                               mxu_dtype=jnp.float32, need_weights=False)
    out_nw = jax.block_until_ready(out_nw)
    assert w_none is None
    assert jnp.allclose(out_nw, ref_out, atol=2e-3, rtol=2e-3), "need_weights=False mismatch"

    print("KERNEL_OK")
</pallas_src>

<mosaic_0001>
module attributes {stable_mosaic.version = 11 : i64} {
  func.func @decoder_layer_kernel(%arg0: i32, %arg1: memref<1x8x32xf32, #tpu.memory_space<vmem>>, %arg2: memref<1x16x32xf32, #tpu.memory_space<vmem>>, %arg3: memref<32x96xf32, #tpu.memory_space<vmem>>, %arg4: memref<1x96xf32, #tpu.memory_space<vmem>>, %arg5: memref<32x32xf32, #tpu.memory_space<vmem>>, %arg6: memref<1x32xf32, #tpu.memory_space<vmem>>, %arg7: memref<32x32xf32, #tpu.memory_space<vmem>>, %arg8: memref<1x32xf32, #tpu.memory_space<vmem>>, %arg9: memref<32x64xf32, #tpu.memory_space<vmem>>, %arg10: memref<1x64xf32, #tpu.memory_space<vmem>>, %arg11: memref<32x32xf32, #tpu.memory_space<vmem>>, %arg12: memref<1x32xf32, #tpu.memory_space<vmem>>, %arg13: memref<32x64xf32, #tpu.memory_space<vmem>>, %arg14: memref<1x64xf32, #tpu.memory_space<vmem>>, %arg15: memref<64x32xf32, #tpu.memory_space<vmem>>, %arg16: memref<1x32xf32, #tpu.memory_space<vmem>>, %arg17: memref<3x32xf32, #tpu.memory_space<vmem>>, %arg18: memref<3x32xf32, #tpu.memory_space<vmem>>, %arg19: memref<1x8x32xf32, #tpu.memory_space<vmem>>, %arg20: memref<1x8x16xf32, #tpu.memory_space<vmem>>) attributes {dimension_semantics = [#tpu.dimension_semantics<parallel>], iteration_bounds = array<i64: 2>, scalar_prefetch = 0 : i64, scratch_operands = 0 : i64, tpu.core_type = #tpu.core_type<tc>, window_params = [{transform_indices = @transform_0, window_bounds = array<i64: 1, 8, 32>}, {transform_indices = @transform_1, window_bounds = array<i64: 1, 16, 32>}, {pipeline_mode = #tpu.pipeline_mode<synchronous>, transform_indices = @transform_2, window_bounds = array<i64: 32, 96>}, {pipeline_mode = #tpu.pipeline_mode<synchronous>, transform_indices = @transform_3, window_bounds = array<i64: 1, 96>}, {pipeline_mode = #tpu.pipeline_mode<synchronous>, transform_indices = @transform_4, window_bounds = array<i64: 32, 32>}, {pipeline_mode = #tpu.pipeline_mode<synchronous>, transform_indices = @transform_5, window_bounds = array<i64: 1, 32>}, {pipeline_mode = #tpu.pipeline_mode<synchronous>, transform_indices = @transform_6, window_bounds = array<i64: 32, 32>}, {pipeline_mode = #tpu.pipeline_mode<synchronous>, transform_indices = @transform_7, window_bounds = array<i64: 1, 32>}, {pipeline_mode = #tpu.pipeline_mode<synchronous>, transform_indices = @transform_8, window_bounds = array<i64: 32, 64>}, {pipeline_mode = #tpu.pipeline_mode<synchronous>, transform_indices = @transform_9, window_bounds = array<i64: 1, 64>}, {pipeline_mode = #tpu.pipeline_mode<synchronous>, transform_indices = @transform_10, window_bounds = array<i64: 32, 32>}, {pipeline_mode = #tpu.pipeline_mode<synchronous>, transform_indices = @transform_11, window_bounds = array<i64: 1, 32>}, {pipeline_mode = #tpu.pipeline_mode<synchronous>, transform_indices = @transform_12, window_bounds = array<i64: 32, 64>}, {pipeline_mode = #tpu.pipeline_mode<synchronous>, transform_indices = @transform_13, window_bounds = array<i64: 1, 64>}, {pipeline_mode = #tpu.pipeline_mode<synchronous>, transform_indices = @transform_14, window_bounds = array<i64: 64, 32>}, {pipeline_mode = #tpu.pipeline_mode<synchronous>, transform_indices = @transform_15, window_bounds = array<i64: 1, 32>}, {pipeline_mode = #tpu.pipeline_mode<synchronous>, transform_indices = @transform_16, window_bounds = array<i64: 3, 32>}, {pipeline_mode = #tpu.pipeline_mode<synchronous>, transform_indices = @transform_17, window_bounds = array<i64: 3, 32>}, {transform_indices = @transform_18, window_bounds = array<i64: 1, 8, 32>}, {transform_indices = @transform_19, window_bounds = array<i64: 1, 8, 16>}]} {
    %c0 = arith.constant 0 : index
    %c0_0 = arith.constant 0 : index
    %c0_1 = arith.constant 0 : index
    %0 = vector.load %arg1[%c0, %c0_0, %c0_1] : memref<1x8x32xf32, #tpu.memory_space<vmem>>, vector<1x8x32xf32>
    %1 = vector.shape_cast %0 : vector<1x8x32xf32> to vector<8x32xf32>
    %c0_2 = arith.constant 0 : index
    %c0_3 = arith.constant 0 : index
    %c0_4 = arith.constant 0 : index
    %2 = vector.load %arg2[%c0_2, %c0_3, %c0_4] : memref<1x16x32xf32, #tpu.memory_space<vmem>>, vector<1x16x32xf32>
    %3 = vector.shape_cast %2 : vector<1x16x32xf32> to vector<16x32xf32>
    %c0_5 = arith.constant 0 : index
    %c0_6 = arith.constant 0 : index
    %4 = vector.load %arg17[%c0_5, %c0_6] : memref<3x32xf32, #tpu.memory_space<vmem>>, vector<3x32xf32>
    %c0_7 = arith.constant 0 : index
    %c0_8 = arith.constant 0 : index
    %5 = vector.load %arg18[%c0_7, %c0_8] : memref<3x32xf32, #tpu.memory_space<vmem>>, vector<3x32xf32>
    %c0_9 = arith.constant 0 : index
    %c0_10 = arith.constant 0 : index
    %6 = vector.load %arg3[%c0_9, %c0_10] : memref<32x96xf32, #tpu.memory_space<vmem>>, vector<32x96xf32>
    %cst = arith.constant dense<0.000000e+00> : vector<8x96xf32>
    %7 = tpu.matmul %1, %6, %cst {dimension_numbers = #tpu.dot_dimension_numbers<[1], [0], [0], [1], [0, 0, 1, 1], [], []>} : vector<8x32xf32>, vector<32x96xf32>, vector<8x96xf32> -> vector<8x96xf32>
    %c0_11 = arith.constant 0 : index
    %c0_12 = arith.constant 0 : index
    %8 = vector.load %arg4[%c0_11, %c0_12] : memref<1x96xf32, #tpu.memory_space<vmem>>, vector<1x96xf32>
    %9 = vector.broadcast %8 : vector<1x96xf32> to vector<8x96xf32>
    %10 = arith.addf %7, %9 : vector<8x96xf32>
    %11 = vector.extract_strided_slice %10 {offsets = [0, 0], sizes = [8, 32], strides = [1, 1]} : vector<8x96xf32> to vector<8x32xf32>
    %12 = vector.extract_strided_slice %10 {offsets = [0, 32], sizes = [8, 32], strides = [1, 1]} : vector<8x96xf32> to vector<8x32xf32>
    %13 = vector.extract_strided_slice %10 {offsets = [0, 64], sizes = [8, 32], strides = [1, 1]} : vector<8x96xf32> to vector<8x32xf32>
    %14 = vector.shape_cast %11 : vector<8x32xf32> to vector<8x4x8xf32>
    %15 = tpu.transpose %14, [1, 0, 2] : vector<8x4x8xf32> -> vector<4x8x8xf32>
    %16 = vector.shape_cast %12 : vector<8x32xf32> to vector<8x4x8xf32>
    %17 = tpu.transpose %16, [1, 0, 2] : vector<8x4x8xf32> -> vector<4x8x8xf32>
    %18 = vector.shape_cast %13 : vector<8x32xf32> to vector<8x4x8xf32>
    %19 = tpu.transpose %18, [1, 0, 2] : vector<8x4x8xf32> -> vector<4x8x8xf32>
    "tpu.trace_start"() <{level = 10 : i32, message = "hqd,hkd->hqk"}> : () -> ()
    %cst_13 = arith.constant dense<0.000000e+00> : vector<4x8x8xf32>
    %20 = tpu.matmul %15, %17, %cst_13 {dimension_numbers = #tpu.dot_dimension_numbers<[2], [2], [1], [1], [0, 0, 0, 1, 1, 1], [0], [0]>} : vector<4x8x8xf32>, vector<4x8x8xf32>, vector<4x8x8xf32> -> vector<4x8x8xf32>
    "tpu.trace_stop"() : () -> ()
    %cst_14 = arith.constant dense<0xFF800000> : vector<4x8xf32>
    %21 = vector.multi_reduction <maximumf>, %20, %cst_14 [2] : vector<4x8x8xf32> to vector<4x8xf32>
    %22 = vector.shape_cast %21 : vector<4x8xf32> to vector<4x8x1xf32>
    %23 = vector.broadcast %22 : vector<4x8x1xf32> to vector<4x8x8xf32>
    %24 = arith.subf %20, %23 : vector<4x8x8xf32>
    %25 = math.exp %24 : vector<4x8x8xf32>
    %cst_15 = arith.constant dense<0.000000e+00> : vector<4x8xf32>
    %26 = vector.multi_reduction <add>, %25, %cst_15 [2] : vector<4x8x8xf32> to vector<4x8xf32>
    %27 = vector.shape_cast %26 : vector<4x8xf32> to vector<4x8x1xf32>
    %28 = tpu.reciprocal %27 {approx = true} : vector<4x8x1xf32> -> vector<4x8x1xf32>
    %29 = vector.broadcast %28 : vector<4x8x1xf32> to vector<4x8x8xf32>
    %30 = arith.mulf %25, %29 : vector<4x8x8xf32>
    "tpu.trace_start"() <{level = 10 : i32, message = "hqk,hkd->hqd"}> : () -> ()
    %cst_16 = arith.constant dense<0.000000e+00> : vector<4x8x8xf32>
    %31 = tpu.matmul %30, %19, %cst_16 {dimension_numbers = #tpu.dot_dimension_numbers<[2], [1], [1], [2], [0, 0, 0, 1, 1, 2], [0], [0]>} : vector<4x8x8xf32>, vector<4x8x8xf32>, vector<4x8x8xf32> -> vector<4x8x8xf32>
    "tpu.trace_stop"() : () -> ()
    %32 = tpu.transpose %31, [1, 0, 2] : vector<4x8x8xf32> -> vector<8x4x8xf32>
    %33 = vector.shape_cast %32 : vector<8x4x8xf32> to vector<8x32xf32>
    %c0_17 = arith.constant 0 : index
    %c0_18 = arith.constant 0 : index
    %34 = vector.load %arg5[%c0_17, %c0_18] : memref<32x32xf32, #tpu.memory_space<vmem>>, vector<32x32xf32>
    %cst_19 = arith.constant dense<0.000000e+00> : vector<8x32xf32>
    %35 = tpu.matmul %33, %34, %cst_19 {dimension_numbers = #tpu.dot_dimension_numbers<[1], [0], [0], [1], [0, 0, 1, 1], [], []>} : vector<8x32xf32>, vector<32x32xf32>, vector<8x32xf32> -> vector<8x32xf32>
    %c0_20 = arith.constant 0 : index
    %c0_21 = arith.constant 0 : index
    %36 = vector.load %arg6[%c0_20, %c0_21] : memref<1x32xf32, #tpu.memory_space<vmem>>, vector<1x32xf32>
    %37 = vector.broadcast %36 : vector<1x32xf32> to vector<8x32xf32>
    %38 = arith.addf %35, %37 : vector<8x32xf32>
    %39 = arith.addf %1, %38 : vector<8x32xf32>
    %40 = vector.extract_strided_slice %4 {offsets = [0, 0], sizes = [1, 32], strides = [1, 1]} : vector<3x32xf32> to vector<1x32xf32>
    %41 = vector.extract_strided_slice %5 {offsets = [0, 0], sizes = [1, 32], strides = [1, 1]} : vector<3x32xf32> to vector<1x32xf32>
    %cst_22 = arith.constant dense<0.000000e+00> : vector<8xf32>
    %42 = vector.multi_reduction <add>, %39, %cst_22 [1] : vector<8x32xf32> to vector<8xf32>
    %43 = vector.shape_cast %42 : vector<8xf32> to vector<8x1xf32>
    %cst_23 = arith.constant 3.200000e+01 : f32
    %44 = vector.broadcast %cst_23 : f32 to vector<8x1xf32>
    %45 = arith.divf %43, %44 : vector<8x1xf32>
    %46 = vector.broadcast %45 : vector<8x1xf32> to vector<8x32xf32>
    %47 = arith.subf %39, %46 : vector<8x32xf32>
    %48 = arith.mulf %47, %47 : vector<8x32xf32>
    %cst_24 = arith.constant dense<0.000000e+00> : vector<8xf32>
    %49 = vector.multi_reduction <add>, %48, %cst_24 [1] : vector<8x32xf32> to vector<8xf32>
    %50 = vector.shape_cast %49 : vector<8xf32> to vector<8x1xf32>
    %cst_25 = arith.constant 3.200000e+01 : f32
    %51 = vector.broadcast %cst_25 : f32 to vector<8x1xf32>
    %52 = arith.divf %50, %51 : vector<8x1xf32>
    %cst_26 = arith.constant 9.99999974E-6 : f32
    %53 = vector.broadcast %cst_26 : f32 to vector<8x1xf32>
    %54 = arith.addf %52, %53 : vector<8x1xf32>
    %55 = math.rsqrt %54 : vector<8x1xf32>
    %56 = vector.broadcast %55 : vector<8x1xf32> to vector<8x32xf32>
    %57 = arith.mulf %47, %56 : vector<8x32xf32>
    %58 = vector.broadcast %40 : vector<1x32xf32> to vector<8x32xf32>
    %59 = arith.mulf %57, %58 : vector<8x32xf32>
    %60 = vector.broadcast %41 : vector<1x32xf32> to vector<8x32xf32>
    %61 = arith.addf %59, %60 : vector<8x32xf32>
    %c0_27 = arith.constant 0 : index
    %c0_28 = arith.constant 0 : index
    %62 = vector.load %arg7[%c0_27, %c0_28] : memref<32x32xf32, #tpu.memory_space<vmem>>, vector<32x32xf32>
    %cst_29 = arith.constant dense<0.000000e+00> : vector<8x32xf32>
    %63 = tpu.matmul %61, %62, %cst_29 {dimension_numbers = #tpu.dot_dimension_numbers<[1], [0], [0], [1], [0, 0, 1, 1], [], []>} : vector<8x32xf32>, vector<32x32xf32>, vector<8x32xf32> -> vector<8x32xf32>
    %c0_30 = arith.constant 0 : index
    %c0_31 = arith.constant 0 : index
    %64 = vector.load %arg8[%c0_30, %c0_31] : memref<1x32xf32, #tpu.memory_space<vmem>>, vector<1x32xf32>
    %65 = vector.broadcast %64 : vector<1x32xf32> to vector<8x32xf32>
    %66 = arith.addf %63, %65 : vector<8x32xf32>
    %c0_32 = arith.constant 0 : index
    %c0_33 = arith.constant 0 : index
    %67 = vector.load %arg9[%c0_32, %c0_33] : memref<32x64xf32, #tpu.memory_space<vmem>>, vector<32x64xf32>
    %cst_34 = arith.constant dense<0.000000e+00> : vector<16x64xf32>
    %68 = tpu.matmul %3, %67, %cst_34 {dimension_numbers = #tpu.dot_dimension_numbers<[1], [0], [0], [1], [0, 0, 1, 1], [], []>} : vector<16x32xf32>, vector<32x64xf32>, vector<16x64xf32> -> vector<16x64xf32>
    %c0_35 = arith.constant 0 : index
    %c0_36 = arith.constant 0 : index
    %69 = vector.load %arg10[%c0_35, %c0_36] : memref<1x64xf32, #tpu.memory_space<vmem>>, vector<1x64xf32>
    %70 = vector.broadcast %69 : vector<1x64xf32> to vector<16x64xf32>
    %71 = arith.addf %68, %70 : vector<16x64xf32>
    %72 = vector.extract_strided_slice %71 {offsets = [0, 0], sizes = [16, 32], strides = [1, 1]} : vector<16x64xf32> to vector<16x32xf32>
    %73 = vector.extract_strided_slice %71 {offsets = [0, 32], sizes = [16, 32], strides = [1, 1]} : vector<16x64xf32> to vector<16x32xf32>
    %74 = vector.shape_cast %66 : vector<8x32xf32> to vector<8x4x8xf32>
    %75 = tpu.transpose %74, [1, 0, 2] : vector<8x4x8xf32> -> vector<4x8x8xf32>
    %76 = vector.shape_cast %72 : vector<16x32xf32> to vector<16x4x8xf32>
    %77 = tpu.transpose %76, [1, 0, 2] : vector<16x4x8xf32> -> vector<4x16x8xf32>
    %78 = vector.shape_cast %73 : vector<16x32xf32> to vector<16x4x8xf32>
    %79 = tpu.transpose %78, [1, 0, 2] : vector<16x4x8xf32> -> vector<4x16x8xf32>
    "tpu.trace_start"() <{level = 10 : i32, message = "hqd,hkd->hqk"}> : () -> ()
    %cst_37 = arith.constant dense<0.000000e+00> : vector<4x8x16xf32>
    %80 = tpu.matmul %75, %77, %cst_37 {dimension_numbers = #tpu.dot_dimension_numbers<[2], [2], [1], [1], [0, 0, 0, 1, 1, 1], [0], [0]>} : vector<4x8x8xf32>, vector<4x16x8xf32>, vector<4x8x16xf32> -> vector<4x8x16xf32>
    "tpu.trace_stop"() : () -> ()
    %cst_38 = arith.constant dense<0xFF800000> : vector<4x8xf32>
    %81 = vector.multi_reduction <maximumf>, %80, %cst_38 [2] : vector<4x8x16xf32> to vector<4x8xf32>
    %82 = vector.shape_cast %81 : vector<4x8xf32> to vector<4x8x1xf32>
    %83 = vector.broadcast %82 : vector<4x8x1xf32> to vector<4x8x16xf32>
    %84 = arith.subf %80, %83 : vector<4x8x16xf32>
    %85 = math.exp %84 : vector<4x8x16xf32>
    %cst_39 = arith.constant dense<0.000000e+00> : vector<4x8xf32>
    %86 = vector.multi_reduction <add>, %85, %cst_39 [2] : vector<4x8x16xf32> to vector<4x8xf32>
    %87 = vector.shape_cast %86 : vector<4x8xf32> to vector<4x8x1xf32>
    %88 = vector.broadcast %87 : vector<4x8x1xf32> to vector<4x8x16xf32>
    %89 = arith.divf %85, %88 : vector<4x8x16xf32>
    "tpu.trace_start"() <{level = 10 : i32, message = "hqk,hkd->hqd"}> : () -> ()
    %cst_40 = arith.constant dense<0.000000e+00> : vector<4x8x8xf32>
    %90 = tpu.matmul %89, %79, %cst_40 {dimension_numbers = #tpu.dot_dimension_numbers<[2], [1], [1], [2], [0, 0, 0, 1, 1, 2], [0], [0]>} : vector<4x8x16xf32>, vector<4x16x8xf32>, vector<4x8x8xf32> -> vector<4x8x8xf32>
    "tpu.trace_stop"() : () -> ()
    %91 = tpu.transpose %90, [1, 0, 2] : vector<4x8x8xf32> -> vector<8x4x8xf32>
    %92 = vector.shape_cast %91 : vector<8x4x8xf32> to vector<8x32xf32>
    %c0_41 = arith.constant 0 : index
    %c0_42 = arith.constant 0 : index
    %93 = vector.load %arg11[%c0_41, %c0_42] : memref<32x32xf32, #tpu.memory_space<vmem>>, vector<32x32xf32>
    %cst_43 = arith.constant dense<0.000000e+00> : vector<8x32xf32>
    %94 = tpu.matmul %92, %93, %cst_43 {dimension_numbers = #tpu.dot_dimension_numbers<[1], [0], [0], [1], [0, 0, 1, 1], [], []>} : vector<8x32xf32>, vector<32x32xf32>, vector<8x32xf32> -> vector<8x32xf32>
    %c0_44 = arith.constant 0 : index
    %c0_45 = arith.constant 0 : index
    %95 = vector.load %arg12[%c0_44, %c0_45] : memref<1x32xf32, #tpu.memory_space<vmem>>, vector<1x32xf32>
    %96 = vector.broadcast %95 : vector<1x32xf32> to vector<8x32xf32>
    %97 = arith.addf %94, %96 : vector<8x32xf32>
    %cst_46 = arith.constant dense<0.000000e+00> : vector<8x16xf32>
    %98 = vector.multi_reduction <add>, %89, %cst_46 [0] : vector<4x8x16xf32> to vector<8x16xf32>
    %cst_47 = arith.constant 4.000000e+00 : f32
    %99 = vector.broadcast %cst_47 : f32 to vector<8x16xf32>
    %100 = arith.divf %98, %99 : vector<8x16xf32>
    %101 = arith.addf %61, %97 : vector<8x32xf32>
    %102 = vector.extract_strided_slice %4 {offsets = [1, 0], sizes = [1, 32], strides = [1, 1]} : vector<3x32xf32> to vector<1x32xf32>
    %103 = vector.extract_strided_slice %5 {offsets = [1, 0], sizes = [1, 32], strides = [1, 1]} : vector<3x32xf32> to vector<1x32xf32>
    %cst_48 = arith.constant dense<0.000000e+00> : vector<8xf32>
    %104 = vector.multi_reduction <add>, %101, %cst_48 [1] : vector<8x32xf32> to vector<8xf32>
    %105 = vector.shape_cast %104 : vector<8xf32> to vector<8x1xf32>
    %cst_49 = arith.constant 3.200000e+01 : f32
    %106 = vector.broadcast %cst_49 : f32 to vector<8x1xf32>
    %107 = arith.divf %105, %106 : vector<8x1xf32>
    %108 = vector.broadcast %107 : vector<8x1xf32> to vector<8x32xf32>
    %109 = arith.subf %101, %108 : vector<8x32xf32>
    %110 = arith.mulf %109, %109 : vector<8x32xf32>
    %cst_50 = arith.constant dense<0.000000e+00> : vector<8xf32>
    %111 = vector.multi_reduction <add>, %110, %cst_50 [1] : vector<8x32xf32> to vector<8xf32>
    %112 = vector.shape_cast %111 : vector<8xf32> to vector<8x1xf32>
    %cst_51 = arith.constant 3.200000e+01 : f32
    %113 = vector.broadcast %cst_51 : f32 to vector<8x1xf32>
    %114 = arith.divf %112, %113 : vector<8x1xf32>
    %cst_52 = arith.constant 9.99999974E-6 : f32
    %115 = vector.broadcast %cst_52 : f32 to vector<8x1xf32>
    %116 = arith.addf %114, %115 : vector<8x1xf32>
    %117 = math.rsqrt %116 : vector<8x1xf32>
    %118 = vector.broadcast %117 : vector<8x1xf32> to vector<8x32xf32>
    %119 = arith.mulf %109, %118 : vector<8x32xf32>
    %120 = vector.broadcast %102 : vector<1x32xf32> to vector<8x32xf32>
    %121 = arith.mulf %119, %120 : vector<8x32xf32>
    %122 = vector.broadcast %103 : vector<1x32xf32> to vector<8x32xf32>
    %123 = arith.addf %121, %122 : vector<8x32xf32>
    %c0_53 = arith.constant 0 : index
    %c0_54 = arith.constant 0 : index
    %124 = vector.load %arg13[%c0_53, %c0_54] : memref<32x64xf32, #tpu.memory_space<vmem>>, vector<32x64xf32>
    %cst_55 = arith.constant dense<0.000000e+00> : vector<8x64xf32>
    %125 = tpu.matmul %123, %124, %cst_55 {dimension_numbers = #tpu.dot_dimension_numbers<[1], [0], [0], [1], [0, 0, 1, 1], [], []>} : vector<8x32xf32>, vector<32x64xf32>, vector<8x64xf32> -> vector<8x64xf32>
    %c0_56 = arith.constant 0 : index
    %c0_57 = arith.constant 0 : index
    %126 = vector.load %arg14[%c0_56, %c0_57] : memref<1x64xf32, #tpu.memory_space<vmem>>, vector<1x64xf32>
    %127 = vector.broadcast %126 : vector<1x64xf32> to vector<8x64xf32>
    %128 = arith.addf %125, %127 : vector<8x64xf32>
    %cst_58 = arith.constant 0.000000e+00 : f32
    %129 = vector.broadcast %cst_58 : f32 to vector<8x64xf32>
    %130 = arith.maximumf %128, %129 : vector<8x64xf32>
    %c0_59 = arith.constant 0 : index
    %c0_60 = arith.constant 0 : index
    %131 = vector.load %arg15[%c0_59, %c0_60] : memref<64x32xf32, #tpu.memory_space<vmem>>, vector<64x32xf32>
    %cst_61 = arith.constant dense<0.000000e+00> : vector<8x32xf32>
    %132 = tpu.matmul %130, %131, %cst_61 {dimension_numbers = #tpu.dot_dimension_numbers<[1], [0], [0], [1], [0, 0, 1, 1], [], []>} : vector<8x64xf32>, vector<64x32xf32>, vector<8x32xf32> -> vector<8x32xf32>
    %c0_62 = arith.constant 0 : index
    %c0_63 = arith.constant 0 : index
    %133 = vector.load %arg16[%c0_62, %c0_63] : memref<1x32xf32, #tpu.memory_space<vmem>>, vector<1x32xf32>
    %134 = vector.broadcast %133 : vector<1x32xf32> to vector<8x32xf32>
    %135 = arith.addf %132, %134 : vector<8x32xf32>
    %136 = arith.addf %123, %135 : vector<8x32xf32>
    %137 = vector.extract_strided_slice %4 {offsets = [2, 0], sizes = [1, 32], strides = [1, 1]} : vector<3x32xf32> to vector<1x32xf32>
    %138 = vector.extract_strided_slice %5 {offsets = [2, 0], sizes = [1, 32], strides = [1, 1]} : vector<3x32xf32> to vector<1x32xf32>
    %cst_64 = arith.constant dense<0.000000e+00> : vector<8xf32>
    %139 = vector.multi_reduction <add>, %136, %cst_64 [1] : vector<8x32xf32> to vector<8xf32>
    %140 = vector.shape_cast %139 : vector<8xf32> to vector<8x1xf32>
    %cst_65 = arith.constant 3.200000e+01 : f32
    %141 = vector.broadcast %cst_65 : f32 to vector<8x1xf32>
    %142 = arith.divf %140, %141 : vector<8x1xf32>
    %143 = vector.broadcast %142 : vector<8x1xf32> to vector<8x32xf32>
    %144 = arith.subf %136, %143 : vector<8x32xf32>
    %145 = arith.mulf %144, %144 : vector<8x32xf32>
    %cst_66 = arith.constant dense<0.000000e+00> : vector<8xf32>
    %146 = vector.multi_reduction <add>, %145, %cst_66 [1] : vector<8x32xf32> to vector<8xf32>
    %147 = vector.shape_cast %146 : vector<8xf32> to vector<8x1xf32>
    %cst_67 = arith.constant 3.200000e+01 : f32
    %148 = vector.broadcast %cst_67 : f32 to vector<8x1xf32>
    %149 = arith.divf %147, %148 : vector<8x1xf32>
    %cst_68 = arith.constant 9.99999974E-6 : f32
    %150 = vector.broadcast %cst_68 : f32 to vector<8x1xf32>
    %151 = arith.addf %149, %150 : vector<8x1xf32>
    %152 = math.rsqrt %151 : vector<8x1xf32>
    %153 = vector.broadcast %152 : vector<8x1xf32> to vector<8x32xf32>
    %154 = arith.mulf %144, %153 : vector<8x32xf32>
    %155 = vector.broadcast %137 : vector<1x32xf32> to vector<8x32xf32>
    %156 = arith.mulf %154, %155 : vector<8x32xf32>
    %157 = vector.broadcast %138 : vector<1x32xf32> to vector<8x32xf32>
    %158 = arith.addf %156, %157 : vector<8x32xf32>
    %159 = vector.shape_cast %158 : vector<8x32xf32> to vector<1x8x32xf32>
    %c0_69 = arith.constant 0 : index
    %c0_70 = arith.constant 0 : index
    %c0_71 = arith.constant 0 : index
    %160 = vector.load %arg19[%c0_69, %c0_70, %c0_71] : memref<1x8x32xf32, #tpu.memory_space<vmem>>, vector<1x8x32xf32>
    tpu.vector_store %arg19[%c0_69, %c0_70, %c0_71], %159 {strides = array<i32>} : memref<1x8x32xf32, #tpu.memory_space<vmem>>, vector<1x8x32xf32>,
    %161 = vector.shape_cast %100 : vector<8x16xf32> to vector<1x8x16xf32>
    %c0_72 = arith.constant 0 : index
    %c0_73 = arith.constant 0 : index
    %c0_74 = arith.constant 0 : index
    %162 = vector.load %arg20[%c0_72, %c0_73, %c0_74] : memref<1x8x16xf32, #tpu.memory_space<vmem>>, vector<1x8x16xf32>
    tpu.vector_store %arg20[%c0_72, %c0_73, %c0_74], %161 {strides = array<i32>} : memref<1x8x16xf32, #tpu.memory_space<vmem>>, vector<1x8x16xf32>,
    return
  }
  func.func @transform_0(%arg0: i32) -> (i32, i32, i32) {
    %c0_i32 = arith.constant 0 : i32
    %c0_i32_0 = arith.constant 0 : i32
    %c0_i32_1 = arith.constant 0 : i32
    return %arg0, %c0_i32, %c0_i32_0 : i32, i32, i32
  }
  func.func @transform_1(%arg0: i32) -> (i32, i32, i32) {
    %c0_i32 = arith.constant 0 : i32
    %c0_i32_0 = arith.constant 0 : i32
    %c0_i32_1 = arith.constant 0 : i32
    return %arg0, %c0_i32, %c0_i32_0 : i32, i32, i32
  }
  func.func @transform_2(%arg0: i32) -> (i32, i32) {
    %c0_i32 = arith.constant 0 : i32
    %c0_i32_0 = arith.constant 0 : i32
    %c0_i32_1 = arith.constant 0 : i32
    return %c0_i32, %c0_i32_0 : i32, i32
  }
  func.func @transform_3(%arg0: i32) -> (i32, i32) {
    %c0_i32 = arith.constant 0 : i32
    %c0_i32_0 = arith.constant 0 : i32
    %c0_i32_1 = arith.constant 0 : i32
    return %c0_i32, %c0_i32_0 : i32, i32
  }
  func.func @transform_4(%arg0: i32) -> (i32, i32) {
    %c0_i32 = arith.constant 0 : i32
    %c0_i32_0 = arith.constant 0 : i32
    %c0_i32_1 = arith.constant 0 : i32
    return %c0_i32, %c0_i32_0 : i32, i32
  }
  func.func @transform_5(%arg0: i32) -> (i32, i32) {
    %c0_i32 = arith.constant 0 : i32
    %c0_i32_0 = arith.constant 0 : i32
    %c0_i32_1 = arith.constant 0 : i32
    return %c0_i32, %c0_i32_0 : i32, i32
  }
  func.func @transform_6(%arg0: i32) -> (i32, i32) {
    %c0_i32 = arith.constant 0 : i32
    %c0_i32_0 = arith.constant 0 : i32
    %c0_i32_1 = arith.constant 0 : i32
    return %c0_i32, %c0_i32_0 : i32, i32
  }
  func.func @transform_7(%arg0: i32) -> (i32, i32) {
    %c0_i32 = arith.constant 0 : i32
    %c0_i32_0 = arith.constant 0 : i32
    %c0_i32_1 = arith.constant 0 : i32
    return %c0_i32, %c0_i32_0 : i32, i32
  }
  func.func @transform_8(%arg0: i32) -> (i32, i32) {
    %c0_i32 = arith.constant 0 : i32
    %c0_i32_0 = arith.constant 0 : i32
    %c0_i32_1 = arith.constant 0 : i32
    return %c0_i32, %c0_i32_0 : i32, i32
  }
  func.func @transform_9(%arg0: i32) -> (i32, i32) {
    %c0_i32 = arith.constant 0 : i32
    %c0_i32_0 = arith.constant 0 : i32
    %c0_i32_1 = arith.constant 0 : i32
    return %c0_i32, %c0_i32_0 : i32, i32
  }
  func.func @transform_10(%arg0: i32) -> (i32, i32) {
    %c0_i32 = arith.constant 0 : i32
    %c0_i32_0 = arith.constant 0 : i32
    %c0_i32_1 = arith.constant 0 : i32
    return %c0_i32, %c0_i32_0 : i32, i32
  }
  func.func @transform_11(%arg0: i32) -> (i32, i32) {
    %c0_i32 = arith.constant 0 : i32
    %c0_i32_0 = arith.constant 0 : i32
    %c0_i32_1 = arith.constant 0 : i32
    return %c0_i32, %c0_i32_0 : i32, i32
  }
  func.func @transform_12(%arg0: i32) -> (i32, i32) {
    %c0_i32 = arith.constant 0 : i32
    %c0_i32_0 = arith.constant 0 : i32
    %c0_i32_1 = arith.constant 0 : i32
    return %c0_i32, %c0_i32_0 : i32, i32
  }
  func.func @transform_13(%arg0: i32) -> (i32, i32) {
    %c0_i32 = arith.constant 0 : i32
    %c0_i32_0 = arith.constant 0 : i32
    %c0_i32_1 = arith.constant 0 : i32
    return %c0_i32, %c0_i32_0 : i32, i32
  }
  func.func @transform_14(%arg0: i32) -> (i32, i32) {
    %c0_i32 = arith.constant 0 : i32
    %c0_i32_0 = arith.constant 0 : i32
    %c0_i32_1 = arith.constant 0 : i32
    return %c0_i32, %c0_i32_0 : i32, i32
  }
  func.func @transform_15(%arg0: i32) -> (i32, i32) {
    %c0_i32 = arith.constant 0 : i32
    %c0_i32_0 = arith.constant 0 : i32
    %c0_i32_1 = arith.constant 0 : i32
    return %c0_i32, %c0_i32_0 : i32, i32
  }
  func.func @transform_16(%arg0: i32) -> (i32, i32) {
    %c0_i32 = arith.constant 0 : i32
    %c0_i32_0 = arith.constant 0 : i32
    %c0_i32_1 = arith.constant 0 : i32
    return %c0_i32, %c0_i32_0 : i32, i32
  }
  func.func @transform_17(%arg0: i32) -> (i32, i32) {
    %c0_i32 = arith.constant 0 : i32
    %c0_i32_0 = arith.constant 0 : i32
    %c0_i32_1 = arith.constant 0 : i32
    return %c0_i32, %c0_i32_0 : i32, i32
  }
  func.func @transform_18(%arg0: i32) -> (i32, i32, i32) {
    %c0_i32 = arith.constant 0 : i32
    %c0_i32_0 = arith.constant 0 : i32
    %c0_i32_1 = arith.constant 0 : i32
    return %arg0, %c0_i32, %c0_i32_0 : i32, i32, i32
  }
  func.func @transform_19(%arg0: i32) -> (i32, i32, i32) {
    %c0_i32 = arith.constant 0 : i32
    %c0_i32_0 = arith.constant 0 : i32
    %c0_i32_1 = arith.constant 0 : i32
    return %arg0, %c0_i32, %c0_i32_0 : i32, i32, i32
  }
}

</mosaic_0001>

<llo_original>
// kernel: tpu_custom_call.1
$region0: #{tpu_custom_call.1}
  #allocation0 [shape = 'u32[]', space=smem, size = 0x4, offset = 0x4, fixed_abs, tag = 'smem constant byte address 0x4 - core index']
  #allocation1 [shape = 'u32[144,128]{1,0:T(1,128)}', space=vmem, size = 0x12000, scoped, tag = 'internal scratch']
  %s0 = inlined_call_operand.hbm [shape: f32[2,8,32], index: 0, kind: input, shape index: {}]
  %s1 = inlined_call_operand.vmem [shape: f32[2,16,32], index: 1, kind: input, shape index: {}]
  %s2 = inlined_call_operand.vmem [shape: f32[32,96], index: 2, kind: input, shape index: {}]
  %s3 = inlined_call_operand.vmem [shape: f32[1,96], index: 3, kind: input, shape index: {}]
  %s4 = inlined_call_operand.vmem [shape: f32[32,32], index: 4, kind: input, shape index: {}]
  %s5 = inlined_call_operand.hbm [shape: f32[1,32], index: 5, kind: input, shape index: {}]
  %s6 = inlined_call_operand.hbm [shape: f32[32,32], index: 6, kind: input, shape index: {}]
  %s7 = inlined_call_operand.vmem [shape: f32[1,32], index: 7, kind: input, shape index: {}]
  %s8 = inlined_call_operand.hbm [shape: f32[32,64], index: 8, kind: input, shape index: {}]
  %s9 = inlined_call_operand.vmem [shape: f32[1,64], index: 9, kind: input, shape index: {}]
  %s10 = inlined_call_operand.hbm [shape: f32[32,32], index: 10, kind: input, shape index: {}]
  %s11 = inlined_call_operand.vmem [shape: f32[1,32], index: 11, kind: input, shape index: {}]
  %s12 = inlined_call_operand.hbm [shape: f32[32,64], index: 12, kind: input, shape index: {}]
  %s13 = inlined_call_operand.vmem [shape: f32[1,64], index: 13, kind: input, shape index: {}]
  %s14 = inlined_call_operand.vmem [shape: f32[64,32], index: 14, kind: input, shape index: {}]
  %s15 = inlined_call_operand.vmem [shape: f32[1,32], index: 15, kind: input, shape index: {}]
  %s16 = inlined_call_operand.vmem [shape: f32[3,32], index: 16, kind: input, shape index: {}]
  %s17 = inlined_call_operand.vmem [shape: f32[3,32], index: 17, kind: input, shape index: {}]
  %s18 = inlined_call_operand.hbm [shape: f32[2,8,32], index: 18, kind: output, shape index: {0}]
  %s19 = inlined_call_operand.hbm [shape: f32[2,8,16], index: 19, kind: output, shape index: {1}]
  %20 = xla_tuple %s18, %s19
  %s21 = sld [smem:[#allocation0]]
  $region137: #{tpu_custom_call.1} parent=0
    _
  %s23 = ssub.s32 1, %s21
  %s24 = scalar_select 0, %s23, %s21
  $region1: #{tpu_custom_call.1} parent=0
    #allocation2 [shape = 'u8[8192]{0}', space=vmem, size = 0x2000, scoped, tag = 'input window, operand 0']
    #allocation3 [shape = 's32[2]{0}', space=sflag, size = 0x8, scoped, tag = 'scoped memory for tpu_custom_call.1']
    #allocation4 [shape = 's32[2]{0}', space=sflag, size = 0x8, scoped, tag = 'scoped memory for tpu_custom_call.1']
    #allocation5 [shape = 'u8[512]{0}', space=vmem, size = 0x400, scoped, tag = 'input window, operand 5, single buffered']
    #allocation6 [shape = 's32[1]{0}', space=sflag, size = 0x4, scoped, tag = 'scoped memory for tpu_custom_call.1']
    #allocation7 [shape = 'u8[16384]{0}', space=vmem, size = 0x4000, scoped, tag = 'input window, operand 6, single buffered']
    #allocation8 [shape = 'u8[16384]{0}', space=vmem, size = 0x4000, scoped, tag = 'input window, operand 8, single buffered']
    #allocation9 [shape = 's32[1]{0}', space=sflag, size = 0x4, scoped, tag = 'scoped memory for tpu_custom_call.1']
    #allocation10 [shape = 'u8[16384]{0}', space=vmem, size = 0x4000, scoped, tag = 'input window, operand 10, single buffered']
    #allocation11 [shape = 'u8[16384]{0}', space=vmem, size = 0x4000, scoped, tag = 'input window, operand 12, single buffered']
    #allocation12 [shape = 's32[1]{0}', space=sflag, size = 0x4, scoped, tag = 'scoped memory for tpu_custom_call.1']
    #allocation13 [shape = 'u8[8192]{0}', space=vmem, size = 0x2000, scoped, tag = 'output window, operand 0']
    #allocation14 [shape = 'u8[8192]{0}', space=vmem, size = 0x2000, scoped, tag = 'output window, operand 1']
    #allocation15 [shape = 's32[2]{0}', space=sflag, size = 0x8, scoped, tag = 'scoped memory for tpu_custom_call.1']
    %25 = vsyncpa [#allocation3], 0
    %s26 = scalar_lea.sflag [#allocation3], 1
    %27 = vsyncpa %s26, 0
    %28 = vsyncpa [#allocation6], 0
    %29 = vsyncpa [#allocation9], 0
    %30 = vsyncpa [#allocation12], 0
    %31 = vsyncpa [#allocation4], 0
    %s32 = scalar_lea.sflag [#allocation4], 1
    %33 = vsyncpa %s32, 0
    %34 = vsyncpa [#allocation15], 0
    %s35 = scalar_lea.sflag [#allocation15], 1
    %36 = vsyncpa %s35, 0
    loop: start=0, step=1, limit=4
    $region2: #{tpu_custom_call.1} parent=1 // loop_pre_header
      _
    $region3: #{tpu_custom_call.1} parent=1 // loop_header
      %s38 = sphi 0, %s42
      %p39 = scmp.ge.s32.totalorder %s38, 4
      %s48 = sphi 0, %s50
      %s51 = sphi 0, %s48
      %s52 = sphi 0, %s51
      %s68 = sphi 0, %s52
      %s74 = sphi 0, %s76
      %s77 = sphi 0, %s74
      %s78 = sphi 0, %s77
      %s94 = sphi 0, %s78
      %s98 = sphi 0, %s98
      %s100 = sphi 0, %s98
      %s101 = sphi 0, %s100
      %s115 = sphi 0, %s101
      %s119 = sphi 0, %s119
      %s121 = sphi 0, %s119
      %s122 = sphi 0, %s121
      %s136 = sphi 0, %s122
      %s140 = sphi 0, %s140
      %s142 = sphi 0, %s140
      %s143 = sphi 0, %s142
      %s157 = sphi 0, %s143
      %s161 = sphi 0, %s161
      %s163 = sphi 0, %s161
      %s164 = sphi 0, %s163
      %s178 = sphi 0, %s164
      %s182 = sphi 0, %s182
      %s184 = sphi 0, %s182
      %s185 = sphi 0, %s184
      %s199 = sphi 0, %s185
      %s203 = sphi 0, %s203
      %s205 = sphi 0, %s203
      %s206 = sphi 0, %s205
      %s220 = sphi 0, %s206
      %s224 = sphi 0, %s224
      %s226 = sphi 0, %s224
      %s227 = sphi 0, %s226
      %s241 = sphi 0, %s227
      %s245 = sphi 0, %s245
      %s247 = sphi 0, %s245
      %s248 = sphi 0, %s247
      %s262 = sphi 0, %s248
      %s266 = sphi 0, %s266
      %s268 = sphi 0, %s266
      %s269 = sphi 0, %s268
      %s283 = sphi 0, %s269
      %s287 = sphi 0, %s287
      %s289 = sphi 0, %s287
      %s290 = sphi 0, %s289
      %s304 = sphi 0, %s290
      %s308 = sphi 0, %s308
      %s310 = sphi 0, %s308
      %s311 = sphi 0, %s310
      %s325 = sphi 0, %s311
      %s329 = sphi 0, %s329
      %s331 = sphi 0, %s329
      %s332 = sphi 0, %s331
      %s346 = sphi 0, %s332
      %s350 = sphi 0, %s350
      %s352 = sphi 0, %s350
      %s353 = sphi 0, %s352
      %s367 = sphi 0, %s353
      %s371 = sphi 0, %s371
      %s373 = sphi 0, %s371
      %s374 = sphi 0, %s373
      %s388 = sphi 0, %s374
      %s392 = sphi 0, %s392
      %s394 = sphi 0, %s392
      %s395 = sphi 0, %s394
      %s409 = sphi 0, %s395
      %s413 = sphi 0, %s413
      %s415 = sphi 0, %s413
      %s416 = sphi 0, %s415
      %s430 = sphi 0, %s416
      %s436 = sphi 0, %s438
      %s439 = sphi 0, %s436
      %s440 = sphi 0, %s439
      %s456 = sphi 0, %s440
      %s462 = sphi 0, %s464
      %s465 = sphi 0, %s462
      %s466 = sphi 0, %s465
      %s482 = sphi 0, %s466
    $region4: #{tpu_custom_call.1} parent=1 // loop_header_branch
      %41 = sbr.rel (%p39) target = $region8
    $region5: #{tpu_custom_call.1} parent=1 // loop_body
      %s43 = ssub.s32 %s38, 1
      %s44 = ssub.s32 %s38, 2
      %s45 = sadd.s32 %s38, 1
      %s46 = ssub.s32 %s38, %s45
      %p47 = scmp.eq.s32.totalorder %s46, 0
      %s49 = sadd.s32 %s48, 1
      %s50 = scalar_select %p47, %s48, %s49
      %p53 = pneg %p47
      %p54 = scmp.eq.s32.totalorder %s38, 1
      %p55 = por %p53, %p54
      %p56 = scmp.ne.s32.totalorder %s48, %s51
      %p57 = scmp.eq.s32.totalorder %s38, 0
      %p58 = por %p56, %p57
      %p59 = scmp.ne.s32.totalorder %s48, %s51
      %p60 = scmp.eq.s32.totalorder %s43, 1
      %p61 = por %p59, %p60
      %p62 = scmp.ne.s32.totalorder %s51, %s52
      %p63 = scmp.eq.s32.totalorder %s43, 0
      %p64 = por %p62, %p63
      %p65 = scmp.ne.s32.totalorder %s51, %s52
      %p66 = scmp.eq.s32.totalorder %s44, 1
      %p67 = por %p65, %p66
      %p69 = scmp.ne.s32.totalorder %s52, %s68
      %p70 = scmp.eq.s32.totalorder %s44, 0
      %p71 = por %p69, %p70
      %s72 = ssub.s32 %s38, %s45
      %p73 = scmp.eq.s32.totalorder %s72, 0
      %s75 = sadd.s32 %s74, 1
      %s76 = scalar_select %p73, %s74, %s75
      %p79 = pneg %p73
      %p80 = scmp.eq.s32.totalorder %s38, 1
      %p81 = por %p79, %p80
      %p82 = scmp.ne.s32.totalorder %s74, %s77
      %p83 = scmp.eq.s32.totalorder %s38, 0
      %p84 = por %p82, %p83
      %p85 = scmp.ne.s32.totalorder %s74, %s77
      %p86 = scmp.eq.s32.totalorder %s43, 1
      %p87 = por %p85, %p86
      %p88 = scmp.ne.s32.totalorder %s77, %s78
      %p89 = scmp.eq.s32.totalorder %s43, 0
      %p90 = por %p88, %p89
      %p91 = scmp.ne.s32.totalorder %s77, %s78
      %p92 = scmp.eq.s32.totalorder %s44, 1
      %p93 = por %p91, %p92
      %p95 = scmp.ne.s32.totalorder %s78, %s94
      %p96 = scmp.eq.s32.totalorder %s44, 0
      %p97 = por %p95, %p96
      %s99 = sadd.s32 %s98, 1
      %p102 = scmp.eq.s32.totalorder %s38, 1
      %p103 = scmp.ne.s32.totalorder %s98, %s100
      %p104 = scmp.eq.s32.totalorder %s38, 0
      %p105 = por %p103, %p104
      %p106 = scmp.ne.s32.totalorder %s98, %s100
      %p107 = scmp.eq.s32.totalorder %s43, 1
      %p108 = por %p106, %p107
      %p109 = scmp.ne.s32.totalorder %s100, %s101
      %p110 = scmp.eq.s32.totalorder %s43, 0
      %p111 = por %p109, %p110
      %p112 = scmp.ne.s32.totalorder %s100, %s101
      %p113 = scmp.eq.s32.totalorder %s44, 1
      %p114 = por %p112, %p113
      %p116 = scmp.ne.s32.totalorder %s101, %s115
      %p117 = scmp.eq.s32.totalorder %s44, 0
      %p118 = por %p116, %p117
      %s120 = sadd.s32 %s119, 1
      %p123 = scmp.eq.s32.totalorder %s38, 1
      %p124 = scmp.ne.s32.totalorder %s119, %s121
      %p125 = scmp.eq.s32.totalorder %s38, 0
      %p126 = por %p124, %p125
      %p127 = scmp.ne.s32.totalorder %s119, %s121
      %p128 = scmp.eq.s32.totalorder %s43, 1
      %p129 = por %p127, %p128
      %p130 = scmp.ne.s32.totalorder %s121, %s122
      %p131 = scmp.eq.s32.totalorder %s43, 0
      %p132 = por %p130, %p131
      %p133 = scmp.ne.s32.totalorder %s121, %s122
      %p134 = scmp.eq.s32.totalorder %s44, 1
      %p135 = por %p133, %p134
      %p137 = scmp.ne.s32.totalorder %s122, %s136
      %p138 = scmp.eq.s32.totalorder %s44, 0
      %p139 = por %p137, %p138
      %s141 = sadd.s32 %s140, 1
      %p144 = scmp.eq.s32.totalorder %s38, 1
      %p145 = scmp.ne.s32.totalorder %s140, %s142
      %p146 = scmp.eq.s32.totalorder %s38, 0
      %p147 = por %p145, %p146
      %p148 = scmp.ne.s32.totalorder %s140, %s142
      %p149 = scmp.eq.s32.totalorder %s43, 1
      %p150 = por %p148, %p149
      %p151 = scmp.ne.s32.totalorder %s142, %s143
      %p152 = scmp.eq.s32.totalorder %s43, 0
      %p153 = por %p151, %p152
      %p154 = scmp.ne.s32.totalorder %s142, %s143
      %p155 = scmp.eq.s32.totalorder %s44, 1
      %p156 = por %p154, %p155
      %p158 = scmp.ne.s32.totalorder %s143, %s157
      %p159 = scmp.eq.s32.totalorder %s44, 0
      %p160 = por %p158, %p159
      %s162 = sadd.s32 %s161, 1
      %p165 = scmp.eq.s32.totalorder %s38, 1
      %p166 = scmp.ne.s32.totalorder %s161, %s163
      %p167 = scmp.eq.s32.totalorder %s38, 0
      %p168 = por %p166, %p167
      %p169 = scmp.ne.s32.totalorder %s161, %s163
      %p170 = scmp.eq.s32.totalorder %s43, 1
      %p171 = por %p169, %p170
      %p172 = scmp.ne.s32.totalorder %s163, %s164
      %p173 = scmp.eq.s32.totalorder %s43, 0
      %p174 = por %p172, %p173
      %p175 = scmp.ne.s32.totalorder %s163, %s164
      %p176 = scmp.eq.s32.totalorder %s44, 1
      %p177 = por %p175, %p176
      %p179 = scmp.ne.s32.totalorder %s164, %s178
      %p180 = scmp.eq.s32.totalorder %s44, 0
      %p181 = por %p179, %p180
      %s183 = sadd.s32 %s182, 1
      %p186 = scmp.eq.s32.totalorder %s38, 1
      %p187 = scmp.ne.s32.totalorder %s182, %s184
      %p188 = scmp.eq.s32.totalorder %s38, 0
      %p189 = por %p187, %p188
      %p190 = scmp.ne.s32.totalorder %s182, %s184
      %p191 = scmp.eq.s32.totalorder %s43, 1
      %p192 = por %p190, %p191
      %p193 = scmp.ne.s32.totalorder %s184, %s185
      %p194 = scmp.eq.s32.totalorder %s43, 0
      %p195 = por %p193, %p194
      %p196 = scmp.ne.s32.totalorder %s184, %s185
      %p197 = scmp.eq.s32.totalorder %s44, 1
      %p198 = por %p196, %p197
      %p200 = scmp.ne.s32.totalorder %s185, %s199
      %p201 = scmp.eq.s32.totalorder %s44, 0
      %p202 = por %p200, %p201
      %s204 = sadd.s32 %s203, 1
      %p207 = scmp.eq.s32.totalorder %s38, 1
      %p208 = scmp.ne.s32.totalorder %s203, %s205
      %p209 = scmp.eq.s32.totalorder %s38, 0
      %p210 = por %p208, %p209
      %p211 = scmp.ne.s32.totalorder %s203, %s205
      %p212 = scmp.eq.s32.totalorder %s43, 1
      %p213 = por %p211, %p212
      %p214 = scmp.ne.s32.totalorder %s205, %s206
      %p215 = scmp.eq.s32.totalorder %s43, 0
      %p216 = por %p214, %p215
      %p217 = scmp.ne.s32.totalorder %s205, %s206
      %p218 = scmp.eq.s32.totalorder %s44, 1
      %p219 = por %p217, %p218
      %p221 = scmp.ne.s32.totalorder %s206, %s220
      %p222 = scmp.eq.s32.totalorder %s44, 0
      %p223 = por %p221, %p222
      %s225 = sadd.s32 %s224, 1
      %p228 = scmp.eq.s32.totalorder %s38, 1
      %p229 = scmp.ne.s32.totalorder %s224, %s226
      %p230 = scmp.eq.s32.totalorder %s38, 0
      %p231 = por %p229, %p230
      %p232 = scmp.ne.s32.totalorder %s224, %s226
      %p233 = scmp.eq.s32.totalorder %s43, 1
      %p234 = por %p232, %p233
      %p235 = scmp.ne.s32.totalorder %s226, %s227
      %p236 = scmp.eq.s32.totalorder %s43, 0
      %p237 = por %p235, %p236
      %p238 = scmp.ne.s32.totalorder %s226, %s227
      %p239 = scmp.eq.s32.totalorder %s44, 1
      %p240 = por %p238, %p239
      %p242 = scmp.ne.s32.totalorder %s227, %s241
      %p243 = scmp.eq.s32.totalorder %s44, 0
      %p244 = por %p242, %p243
      %s246 = sadd.s32 %s245, 1
      %p249 = scmp.eq.s32.totalorder %s38, 1
      %p250 = scmp.ne.s32.totalorder %s245, %s247
      %p251 = scmp.eq.s32.totalorder %s38, 0
      %p252 = por %p250, %p251
      %p253 = scmp.ne.s32.totalorder %s245, %s247
      %p254 = scmp.eq.s32.totalorder %s43, 1
      %p255 = por %p253, %p254
      %p256 = scmp.ne.s32.totalorder %s247, %s248
      %p257 = scmp.eq.s32.totalorder %s43, 0
      %p258 = por %p256, %p257
      %p259 = scmp.ne.s32.totalorder %s247, %s248
      %p260 = scmp.eq.s32.totalorder %s44, 1
      %p261 = por %p259, %p260
      %p263 = scmp.ne.s32.totalorder %s248, %s262
      %p264 = scmp.eq.s32.totalorder %s44, 0
      %p265 = por %p263, %p264
      %s267 = sadd.s32 %s266, 1
      %p270 = scmp.eq.s32.totalorder %s38, 1
      %p271 = scmp.ne.s32.totalorder %s266, %s268
      %p272 = scmp.eq.s32.totalorder %s38, 0
      %p273 = por %p271, %p272
      %p274 = scmp.ne.s32.totalorder %s266, %s268
      %p275 = scmp.eq.s32.totalorder %s43, 1
      %p276 = por %p274, %p275
      %p277 = scmp.ne.s32.totalorder %s268, %s269
      %p278 = scmp.eq.s32.totalorder %s43, 0
      %p279 = por %p277, %p278
      %p280 = scmp.ne.s32.totalorder %s268, %s269
      %p281 = scmp.eq.s32.totalorder %s44, 1
      %p282 = por %p280, %p281
      %p284 = scmp.ne.s32.totalorder %s269, %s283
      %p285 = scmp.eq.s32.totalorder %s44, 0
      %p286 = por %p284, %p285
      %s288 = sadd.s32 %s287, 1
      %p291 = scmp.eq.s32.totalorder %s38, 1
      %p292 = scmp.ne.s32.totalorder %s287, %s289
      %p293 = scmp.eq.s32.totalorder %s38, 0
      %p294 = por %p292, %p293
      %p295 = scmp.ne.s32.totalorder %s287, %s289
      %p296 = scmp.eq.s32.totalorder %s43, 1
      %p297 = por %p295, %p296
      %p298 = scmp.ne.s32.totalorder %s289, %s290
      %p299 = scmp.eq.s32.totalorder %s43, 0
      %p300 = por %p298, %p299
      %p301 = scmp.ne.s32.totalorder %s289, %s290
      %p302 = scmp.eq.s32.totalorder %s44, 1
      %p303 = por %p301, %p302
      %p305 = scmp.ne.s32.totalorder %s290, %s304
      %p306 = scmp.eq.s32.totalorder %s44, 0
      %p307 = por %p305, %p306
      %s309 = sadd.s32 %s308, 1
      %p312 = scmp.eq.s32.totalorder %s38, 1
      %p313 = scmp.ne.s32.totalorder %s308, %s310
      %p314 = scmp.eq.s32.totalorder %s38, 0
      %p315 = por %p313, %p314
      %p316 = scmp.ne.s32.totalorder %s308, %s310
      %p317 = scmp.eq.s32.totalorder %s43, 1
      %p318 = por %p316, %p317
      %p319 = scmp.ne.s32.totalorder %s310, %s311
      %p320 = scmp.eq.s32.totalorder %s43, 0
      %p321 = por %p319, %p320
      %p322 = scmp.ne.s32.totalorder %s310, %s311
      %p323 = scmp.eq.s32.totalorder %s44, 1
      %p324 = por %p322, %p323
      %p326 = scmp.ne.s32.totalorder %s311, %s325
      %p327 = scmp.eq.s32.totalorder %s44, 0
      %p328 = por %p326, %p327
      %s330 = sadd.s32 %s329, 1
      %p333 = scmp.eq.s32.totalorder %s38, 1
      %p334 = scmp.ne.s32.totalorder %s329, %s331
      %p335 = scmp.eq.s32.totalorder %s38, 0
      %p336 = por %p334, %p335
      %p337 = scmp.ne.s32.totalorder %s329, %s331
      %p338 = scmp.eq.s32.totalorder %s43, 1
      %p339 = por %p337, %p338
      %p340 = scmp.ne.s32.totalorder %s331, %s332
      %p341 = scmp.eq.s32.totalorder %s43, 0
      %p342 = por %p340, %p341
      %p343 = scmp.ne.s32.totalorder %s331, %s332
      %p344 = scmp.eq.s32.totalorder %s44, 1
      %p345 = por %p343, %p344
      %p347 = scmp.ne.s32.totalorder %s332, %s346
      %p348 = scmp.eq.s32.totalorder %s44, 0
      %p349 = por %p347, %p348
      %s351 = sadd.s32 %s350, 1
      %p354 = scmp.eq.s32.totalorder %s38, 1
      %p355 = scmp.ne.s32.totalorder %s350, %s352
      %p356 = scmp.eq.s32.totalorder %s38, 0
      %p357 = por %p355, %p356
      %p358 = scmp.ne.s32.totalorder %s350, %s352
      %p359 = scmp.eq.s32.totalorder %s43, 1
      %p360 = por %p358, %p359
      %p361 = scmp.ne.s32.totalorder %s352, %s353
      %p362 = scmp.eq.s32.totalorder %s43, 0
      %p363 = por %p361, %p362
      %p364 = scmp.ne.s32.totalorder %s352, %s353
      %p365 = scmp.eq.s32.totalorder %s44, 1
      %p366 = por %p364, %p365
      %p368 = scmp.ne.s32.totalorder %s353, %s367
      %p369 = scmp.eq.s32.totalorder %s44, 0
      %p370 = por %p368, %p369
      %s372 = sadd.s32 %s371, 1
      %p375 = scmp.eq.s32.totalorder %s38, 1
      %p376 = scmp.ne.s32.totalorder %s371, %s373
      %p377 = scmp.eq.s32.totalorder %s38, 0
      %p378 = por %p376, %p377
      %p379 = scmp.ne.s32.totalorder %s371, %s373
      %p380 = scmp.eq.s32.totalorder %s43, 1
      %p381 = por %p379, %p380
      %p382 = scmp.ne.s32.totalorder %s373, %s374
      %p383 = scmp.eq.s32.totalorder %s43, 0
      %p384 = por %p382, %p383
      %p385 = scmp.ne.s32.totalorder %s373, %s374
      %p386 = scmp.eq.s32.totalorder %s44, 1
      %p387 = por %p385, %p386
      %p389 = scmp.ne.s32.totalorder %s374, %s388
      %p390 = scmp.eq.s32.totalorder %s44, 0
      %p391 = por %p389, %p390
      %s393 = sadd.s32 %s392, 1
      %p396 = scmp.eq.s32.totalorder %s38, 1
      %p397 = scmp.ne.s32.totalorder %s392, %s394
      %p398 = scmp.eq.s32.totalorder %s38, 0
      %p399 = por %p397, %p398
      %p400 = scmp.ne.s32.totalorder %s392, %s394
      %p401 = scmp.eq.s32.totalorder %s43, 1
      %p402 = por %p400, %p401
      %p403 = scmp.ne.s32.totalorder %s394, %s395
      %p404 = scmp.eq.s32.totalorder %s43, 0
      %p405 = por %p403, %p404
      %p406 = scmp.ne.s32.totalorder %s394, %s395
      %p407 = scmp.eq.s32.totalorder %s44, 1
      %p408 = por %p406, %p407
      %p410 = scmp.ne.s32.totalorder %s395, %s409
      %p411 = scmp.eq.s32.totalorder %s44, 0
      %p412 = por %p410, %p411
      %s414 = sadd.s32 %s413, 1
      %p417 = scmp.eq.s32.totalorder %s38, 1
      %p418 = scmp.ne.s32.totalorder %s413, %s415
      %p419 = scmp.eq.s32.totalorder %s38, 0
      %p420 = por %p418, %p419
      %p421 = scmp.ne.s32.totalorder %s413, %s415
      %p422 = scmp.eq.s32.totalorder %s43, 1
      %p423 = por %p421, %p422
      %p424 = scmp.ne.s32.totalorder %s415, %s416
      %p425 = scmp.eq.s32.totalorder %s43, 0
      %p426 = por %p424, %p425
      %p427 = scmp.ne.s32.totalorder %s415, %s416
      %p428 = scmp.eq.s32.totalorder %s44, 1
      %p429 = por %p427, %p428
      %p431 = scmp.ne.s32.totalorder %s416, %s430
      %p432 = scmp.eq.s32.totalorder %s44, 0
      %p433 = por %p431, %p432
      %s434 = ssub.s32 %s38, %s45
      %p435 = scmp.eq.s32.totalorder %s434, 0
      %s437 = sadd.s32 %s436, 1
      %s438 = scalar_select %p435, %s436, %s437
      %p441 = pneg %p435
      %p442 = scmp.eq.s32.totalorder %s38, 1
      %p443 = por %p441, %p442
      %p444 = scmp.ne.s32.totalorder %s436, %s439
      %p445 = scmp.eq.s32.totalorder %s38, 0
      %p446 = por %p444, %p445
      %p447 = scmp.ne.s32.totalorder %s436, %s439
      %p448 = scmp.eq.s32.totalorder %s43, 1
      %p449 = por %p447, %p448
      %p450 = scmp.ne.s32.totalorder %s439, %s440
      %p451 = scmp.eq.s32.totalorder %s43, 0
      %p452 = por %p450, %p451
      %p453 = scmp.ne.s32.totalorder %s439, %s440
      %p454 = scmp.eq.s32.totalorder %s44, 1
      %p455 = por %p453, %p454
      %p457 = scmp.ne.s32.totalorder %s440, %s456
      %p458 = scmp.eq.s32.totalorder %s44, 0
      %p459 = por %p457, %p458
      %s460 = ssub.s32 %s38, %s45
      %p461 = scmp.eq.s32.totalorder %s460, 0
      %s463 = sadd.s32 %s462, 1
      %s464 = scalar_select %p461, %s462, %s463
      %p467 = pneg %p461
      %p468 = scmp.eq.s32.totalorder %s38, 1
      %p469 = por %p467, %p468
      %p470 = scmp.ne.s32.totalorder %s462, %s465
      %p471 = scmp.eq.s32.totalorder %s38, 0
      %p472 = por %p470, %p471
      %p473 = scmp.ne.s32.totalorder %s462, %s465
      %p474 = scmp.eq.s32.totalorder %s43, 1
      %p475 = por %p473, %p474
      %p476 = scmp.ne.s32.totalorder %s465, %s466
      %p477 = scmp.eq.s32.totalorder %s43, 0
      %p478 = por %p476, %p477
      %p479 = scmp.ne.s32.totalorder %s465, %s466
      %p480 = scmp.eq.s32.totalorder %s44, 1
      %p481 = por %p479, %p480
      %p483 = scmp.ne.s32.totalorder %s466, %s482
      %p484 = scmp.eq.s32.totalorder %s44, 0
      %p485 = por %p483, %p484
      %p486 = scmp.le.s32.totalorder 1, %s38
      %p487 = scmp.lt.s32.totalorder %s38, 3
      %p488 = pnand %p486, %p487
      %p489 = pneg %p488
      // Predicated region
      $region9: #{tpu_custom_call.1} parent=5 // pred_check
        _
      $region10: #{tpu_custom_call.1} parent=5 // pred_check_branch
        %491 = sbr.rel (%p488) target = $region12
      $region11: #{tpu_custom_call.1} parent=5 // pred_region
        %s492 = ssub.s32 %s38, 1
        // Predicated region
        $region13: #{tpu_custom_call.1} parent=11 // pred_check
          %p493 = pneg %p111
        $region14: #{tpu_custom_call.1} parent=11 // pred_check_branch
          %495 = sbr.rel (%p493) target = $region16
        $region15: #{tpu_custom_call.1} parent=11 // pred_region
          _
        $region16: #{tpu_custom_call.1} parent=11 // pred_fallthru
          _
        // Predicated region
        $region17: #{tpu_custom_call.1} parent=11 // pred_check
          %p496 = pneg %p132
        $region18: #{tpu_custom_call.1} parent=11 // pred_check_branch
          %498 = sbr.rel (%p496) target = $region20
        $region19: #{tpu_custom_call.1} parent=11 // pred_region
          _
        $region20: #{tpu_custom_call.1} parent=11 // pred_fallthru
          _
        // Predicated region
        $region21: #{tpu_custom_call.1} parent=11 // pred_check
          %p499 = pneg %p153
        $region22: #{tpu_custom_call.1} parent=11 // pred_check_branch
          %501 = sbr.rel (%p499) target = $region24
        $region23: #{tpu_custom_call.1} parent=11 // pred_region
          _
        $region24: #{tpu_custom_call.1} parent=11 // pred_fallthru
          _
        // Predicated region
        $region25: #{tpu_custom_call.1} parent=11 // pred_check
          %p502 = pneg %p174
        $region26: #{tpu_custom_call.1} parent=11 // pred_check_branch
          %504 = sbr.rel (%p502) target = $region28
        $region27: #{tpu_custom_call.1} parent=11 // pred_region
          %s506 = ssub.s32 16, 16
          %507 = vsyncadd [#allocation6], %s506
          %s509 = sshll.u32 [#allocation5], 4
          %s510 = int_to_ptr.vmem [resolvable:$true] %s509
          %512 = dma.hbm_to_vmem [thread:$0]  %s5, 16, %s510, [#allocation6]
        $region28: #{tpu_custom_call.1} parent=11 // pred_fallthru
          _
        // Predicated region
        $region29: #{tpu_custom_call.1} parent=11 // pred_check
          %p513 = pneg %p195
        $region30: #{tpu_custom_call.1} parent=11 // pred_check_branch
          %515 = sbr.rel (%p513) target = $region32
        $region31: #{tpu_custom_call.1} parent=11 // pred_region
          %s517 = ssub.s32 512, 512
          %518 = vsyncadd [#allocation6], %s517
          %s519 = sshll.u32 [#allocation7], 4
          %s520 = int_to_ptr.vmem [resolvable:$true] %s519
          %525 = dma.hbm_to_vmem [thread:$0]  %s6, 512, %s520, [#allocation6], 128, 128, 8
        $region32: #{tpu_custom_call.1} parent=11 // pred_fallthru
          _
        // Predicated region
        $region33: #{tpu_custom_call.1} parent=11 // pred_check
          %p526 = pneg %p216
        $region34: #{tpu_custom_call.1} parent=11 // pred_check_branch
          %528 = sbr.rel (%p526) target = $region36
        $region35: #{tpu_custom_call.1} parent=11 // pred_region
          _
        $region36: #{tpu_custom_call.1} parent=11 // pred_fallthru
          _
        // Predicated region
        $region37: #{tpu_custom_call.1} parent=11 // pred_check
          %p529 = pneg %p237
        $region38: #{tpu_custom_call.1} parent=11 // pred_check_branch
          %531 = sbr.rel (%p529) target = $region40
        $region39: #{tpu_custom_call.1} parent=11 // pred_region
          %s533 = ssub.s32 512, 512
          %534 = vsyncadd [#allocation9], %s533
          %s535 = sshll.u32 [#allocation8], 4
          %s536 = int_to_ptr.vmem [resolvable:$true] %s535
          %541 = dma.hbm_to_vmem [thread:$0]  %s8, 512, %s536, [#allocation9], 128, 128, 8
        $region40: #{tpu_custom_call.1} parent=11 // pred_fallthru
          _
        // Predicated region
        $region41: #{tpu_custom_call.1} parent=11 // pred_check
          %p542 = pneg %p258
        $region42: #{tpu_custom_call.1} parent=11 // pred_check_branch
          %544 = sbr.rel (%p542) target = $region44
        $region43: #{tpu_custom_call.1} parent=11 // pred_region
          _
        $region44: #{tpu_custom_call.1} parent=11 // pred_fallthru
          _
        // Predicated region
        $region45: #{tpu_custom_call.1} parent=11 // pred_check
          %p545 = pneg %p279
        $region46: #{tpu_custom_call.1} parent=11 // pred_check_branch
          %547 = sbr.rel (%p545) target = $region48
        $region47: #{tpu_custom_call.1} parent=11 // pred_region
          %s549 = ssub.s32 512, 512
          %550 = vsyncadd [#allocation9], %s549
          %s551 = sshll.u32 [#allocation10], 4
          %s552 = int_to_ptr.vmem [resolvable:$true] %s551
          %557 = dma.hbm_to_vmem [thread:$0]  %s10, 512, %s552, [#allocation9], 128, 128, 8
        $region48: #{tpu_custom_call.1} parent=11 // pred_fallthru
          _
        // Predicated region
        $region49: #{tpu_custom_call.1} parent=11 // pred_check
          %p558 = pneg %p300
        $region50: #{tpu_custom_call.1} parent=11 // pred_check_branch
          %560 = sbr.rel (%p558) target = $region52
        $region51: #{tpu_custom_call.1} parent=11 // pred_region
          _
        $region52: #{tpu_custom_call.1} parent=11 // pred_fallthru
          _
        // Predicated region
        $region53: #{tpu_custom_call.1} parent=11 // pred_check
          %p561 = pneg %p321
        $region54: #{tpu_custom_call.1} parent=11 // pred_check_branch
          %563 = sbr.rel (%p561) target = $region56
        $region55: #{tpu_custom_call.1} parent=11 // pred_region
          %s565 = ssub.s32 512, 512
          %566 = vsyncadd [#allocation12], %s565
          %s567 = sshll.u32 [#allocation11], 4
          %s568 = int_to_ptr.vmem [resolvable:$true] %s567
          %573 = dma.hbm_to_vmem [thread:$0]  %s12, 512, %s568, [#allocation12], 128, 128, 8
        $region56: #{tpu_custom_call.1} parent=11 // pred_fallthru
          _
        // Predicated region
        $region57: #{tpu_custom_call.1} parent=11 // pred_check
          %p574 = pneg %p342
        $region58: #{tpu_custom_call.1} parent=11 // pred_check_branch
          %576 = sbr.rel (%p574) target = $region60
        $region59: #{tpu_custom_call.1} parent=11 // pred_region
          _
        $region60: #{tpu_custom_call.1} parent=11 // pred_fallthru
          _
        // Predicated region
        $region61: #{tpu_custom_call.1} parent=11 // pred_check
          %p577 = pneg %p363
        $region62: #{tpu_custom_call.1} parent=11 // pred_check_branch
          %579 = sbr.rel (%p577) target = $region64
        $region63: #{tpu_custom_call.1} parent=11 // pred_region
          _
        $region64: #{tpu_custom_call.1} parent=11 // pred_fallthru
          _
        // Predicated region
        $region65: #{tpu_custom_call.1} parent=11 // pred_check
          %p580 = pneg %p384
        $region66: #{tpu_custom_call.1} parent=11 // pred_check_branch
          %582 = sbr.rel (%p580) target = $region68
        $region67: #{tpu_custom_call.1} parent=11 // pred_region
          _
        $region68: #{tpu_custom_call.1} parent=11 // pred_fallthru
          _
        // Predicated region
        $region69: #{tpu_custom_call.1} parent=11 // pred_check
          %p583 = pneg %p405
        $region70: #{tpu_custom_call.1} parent=11 // pred_check_branch
          %585 = sbr.rel (%p583) target = $region72
        $region71: #{tpu_custom_call.1} parent=11 // pred_region
          _
        $region72: #{tpu_custom_call.1} parent=11 // pred_fallthru
          _
        // Predicated region
        $region73: #{tpu_custom_call.1} parent=11 // pred_check
          %p586 = pneg %p426
        $region74: #{tpu_custom_call.1} parent=11 // pred_check_branch
          %588 = sbr.rel (%p586) target = $region76
        $region75: #{tpu_custom_call.1} parent=11 // pred_region
          _
        $region76: #{tpu_custom_call.1} parent=11 // pred_fallthru
          _
      $region12: #{tpu_custom_call.1} parent=5 // pred_fallthru
        _
      %p589 = scmp.lt.s32.totalorder %s38, 2
      // Predicated region
      $region77: #{tpu_custom_call.1} parent=5 // pred_check
        %p590 = pneg %p589
      $region78: #{tpu_custom_call.1} parent=5 // pred_check_branch
        %592 = sbr.rel (%p590) target = $region80
      $region79: #{tpu_custom_call.1} parent=5 // pred_region
        // Predicated region
        $region81: #{tpu_custom_call.1} parent=79 // pred_check
          %p593 = pneg %p58
        $region82: #{tpu_custom_call.1} parent=79 // pred_check_branch
          %595 = sbr.rel (%p593) target = $region84
        $region83: #{tpu_custom_call.1} parent=79 // pred_region
          %s596 = sand.u32 %s48, 1
          %s597 = scalar_lea.sflag [#allocation3], %s596
          %s598 = sand.u32 %s48, 1
          %s599 = smul.addr %s598, 8
          %s600 = scalar_lea.vmem [#allocation2], %s599
          %s602 = ssub.s32 128, 128
          %603 = vsyncadd %s597, %s602
          %s604 = smul.addr %s38, 128
          %s605 = scalar_lea.hbm %s0, %s604
          %s607 = sshll.u32 %s600, 4
          %s608 = int_to_ptr.vmem [resolvable:$true] %s607
          %610 = dma.hbm_to_vmem [thread:$0]  %s605, 128, %s608, %s597
        $region84: #{tpu_custom_call.1} parent=79 // pred_fallthru
          _
        // Predicated region
        $region85: #{tpu_custom_call.1} parent=79 // pred_check
          %p611 = pneg %p84
        $region86: #{tpu_custom_call.1} parent=79 // pred_check_branch
          %613 = sbr.rel (%p611) target = $region88
        $region87: #{tpu_custom_call.1} parent=79 // pred_region
          %p614 = scmp.lt.s32.totalorder %s38, 1
          %s615 = scalar_select %p614, %s38, 1
          %s616 = smul.addr %s615, 2
          %s617 = smul.addr %s616, 8
          %s618 = scalar_lea.vmem %s1, %s617
        $region88: #{tpu_custom_call.1} parent=79 // pred_fallthru
          _
      $region80: #{tpu_custom_call.1} parent=5 // pred_fallthru
        _
      %p619 = scmp.le.s32.totalorder 1, %s38
      %p620 = scmp.lt.s32.totalorder %s38, 3
      %p621 = pnand %p619, %p620
      %p622 = pneg %p621
      // Predicated region
      $region89: #{tpu_custom_call.1} parent=5 // pred_check
        _
      $region90: #{tpu_custom_call.1} parent=5 // pred_check_branch
        %624 = sbr.rel (%p621) target = $region92
      $region91: #{tpu_custom_call.1} parent=5 // pred_region
        %s625 = ssub.s32 %s38, 1
        %s626 = sand.u32 %s51, 1
        %s627 = scalar_lea.sflag [#allocation3], %s626
        %s628 = sand.u32 %s51, 1
        %s629 = smul.addr %s628, 8
        %s630 = scalar_lea.vmem [#allocation2], %s629
        // Predicated region
        $region93: #{tpu_custom_call.1} parent=91 // pred_check
          %p631 = pneg %p64
        $region94: #{tpu_custom_call.1} parent=91 // pred_check_branch
          %633 = sbr.rel (%p631) target = $region96
        $region95: #{tpu_custom_call.1} parent=91 // pred_region
          %634 = dma.done %s627, 128
        $region96: #{tpu_custom_call.1} parent=91 // pred_fallthru
          _
        // Predicated region
        $region97: #{tpu_custom_call.1} parent=91 // pred_check
          %p635 = pneg %p174
        $region98: #{tpu_custom_call.1} parent=91 // pred_check_branch
          %637 = sbr.rel (%p635) target = $region100
        $region99: #{tpu_custom_call.1} parent=91 // pred_region
          %638 = dma.done [#allocation6], 16
        $region100: #{tpu_custom_call.1} parent=91 // pred_fallthru
          _
        // Predicated region
        $region101: #{tpu_custom_call.1} parent=91 // pred_check
          %p639 = pneg %p195
        $region102: #{tpu_custom_call.1} parent=91 // pred_check_branch
          %641 = sbr.rel (%p639) target = $region104
        $region103: #{tpu_custom_call.1} parent=91 // pred_region
          %642 = dma.done [#allocation6], 512
        $region104: #{tpu_custom_call.1} parent=91 // pred_fallthru
          _
        // Predicated region
        $region105: #{tpu_custom_call.1} parent=91 // pred_check
          %p643 = pneg %p237
        $region106: #{tpu_custom_call.1} parent=91 // pred_check_branch
          %645 = sbr.rel (%p643) target = $region108
        $region107: #{tpu_custom_call.1} parent=91 // pred_region
          %646 = dma.done [#allocation9], 512
        $region108: #{tpu_custom_call.1} parent=91 // pred_fallthru
          _
        // Predicated region
        $region109: #{tpu_custom_call.1} parent=91 // pred_check
          %p647 = pneg %p279
        $region110: #{tpu_custom_call.1} parent=91 // pred_check_branch
          %649 = sbr.rel (%p647) target = $region112
        $region111: #{tpu_custom_call.1} parent=91 // pred_region
          %650 = dma.done [#allocation9], 512
        $region112: #{tpu_custom_call.1} parent=91 // pred_fallthru
          _
        // Predicated region
        $region113: #{tpu_custom_call.1} parent=91 // pred_check
          %p651 = pneg %p321
        $region114: #{tpu_custom_call.1} parent=91 // pred_check_branch
          %653 = sbr.rel (%p651) target = $region116
        $region115: #{tpu_custom_call.1} parent=91 // pred_region
          %654 = dma.done [#allocation12], 512
        $region116: #{tpu_custom_call.1} parent=91 // pred_fallthru
          _
        %s655 = sand.u32 %s51, 1
        %s656 = scalar_lea.sflag [#allocation3], %s655
        %s657 = sand.u32 %s51, 1
        %s658 = smul.addr %s657, 8
        %s659 = scalar_lea.vmem [#allocation2], %s658
        %p660 = pneg %p64
        %p661 = pneg %p61
        %p662 = scmp.lt.s32.totalorder %s43, 1
        %s663 = scalar_select %p662, %s43, 1
        %s664 = smul.addr %s663, 2
        %s665 = smul.addr %s664, 8
        %s666 = scalar_lea.vmem %s1, %s665
        %p667 = pneg %p90
        %p668 = pneg %p87
        %p669 = pneg %p111
        %p670 = pneg %p108
        %p671 = pneg %p132
        %p672 = pneg %p129
        %p673 = pneg %p153
        %p674 = pneg %p150
        %p675 = pneg %p174
        %p676 = pneg %p171
        %p677 = pneg %p195
        %p678 = pneg %p192
        %p679 = pneg %p216
        %p680 = pneg %p213
        %p681 = pneg %p237
        %p682 = pneg %p234
        %p683 = pneg %p258
        %p684 = pneg %p255
        %p685 = pneg %p279
        %p686 = pneg %p276
        %p687 = pneg %p300
        %p688 = pneg %p297
        %p689 = pneg %p321
        %p690 = pneg %p318
        %p691 = pneg %p342
        %p692 = pneg %p339
        %p693 = pneg %p363
        %p694 = pneg %p360
        %p695 = pneg %p384
        %p696 = pneg %p381
        %p697 = pneg %p405
        %p698 = pneg %p402
        %p699 = pneg %p426
        %p700 = pneg %p423
        %p701 = pneg %p452
        %p702 = pneg %p449
        %s703 = sand.u32 %s439, 1
        %s704 = scalar_lea.sflag [#allocation4], %s703
        %s705 = sand.u32 %s439, 1
        %s706 = smul.addr %s705, 8
        %s707 = scalar_lea.vmem [#allocation13], %s706
        %p708 = pneg %p478
        %p709 = pneg %p475
        %s710 = sand.u32 %s465, 1
        %s711 = scalar_lea.sflag [#allocation15], %s710
        %s712 = sand.u32 %s465, 1
        %s713 = smul.addr %s712, 8
        %s714 = scalar_lea.vmem [#allocation14], %s713
        %p715 = scmp.lt.s32.totalorder %s43, 1
        %s716 = scalar_select %p715, %s43, 1
        %s717 = smul.addr %s716, 2
        %s718 = smul.addr %s717, 8
        %s719 = scalar_lea.vmem %s1, %s718
        %v720 = vld [vmem:[%s630] sm:$0xff]
        %v721 = vld [vmem:[%s719] sm:$0xff]
        %v722 = vld [vmem:[%s719 + $0x8] sm:$0xff]
        %v723 = vld [vmem:[%s16] sm:$0x7]
        %v724 = vld [vmem:[%s17] sm:$0x7]
        %v725 = vld [vmem:[%s2] sm:$0xff]
        %v726 = vld [vmem:[%s2 + $0x8] sm:$0xff]
        %v727 = vld [vmem:[%s2 + $0x10] sm:$0xff]
        %v728 = vld [vmem:[%s2 + $0x18] sm:$0xff]
        %v729 = vld [vmem:[%s3] sm:$0x1]
        %v731 = vlaneseq
        %v732 = vshrl.u32 %v731, 7
        %v733 = vsub.s32 0, %v732
        %v734 = vrot.slane %v729, %v733
        %vm736 = vcmask 261120
        %v738 = vsel %vm736, %v720, 0
        %740 = vmatprep.subr.mxu0 0.0
        %741 = vmatpush1.msra.mxu0 0.0
        %742 = vmatprep.subr.mxu0 0.0
        %743 = vmatpush1.msra.mxu0 0.0
        %744 = vmatprep.subr.mxu0 0.0
        %745 = vmatpush1.msra.mxu0 0.0
        %746 = vmatprep.subr.mxu0 0.0
        %747 = vmatpush1.msra.mxu0 0.0
        %748 = vmatprep.subr.mxu0 0.0
        %749 = vmatpush1.msra.mxu0 0.0
        %750 = vmatprep.subr.mxu0 0.0
        %751 = vmatpush1.msra.mxu0 0.0
        %752 = vmatprep.subr.mxu0 0.0
        %753 = vmatpush1.msra.mxu0 0.0
        %754 = vmatprep.subr.mxu0 0.0
        %755 = vmatpush1.msra.mxu0 0.0
        %756 = vmatprep.subr.mxu0 0.0
        %757 = vmatpush1.msra.mxu0 0.0
        %758 = vmatprep.subr.mxu0 0.0
        %759 = vmatpush1.msra.mxu0 0.0
        %760 = vmatprep.subr.mxu0 0.0
        %761 = vmatpush1.msra.mxu0 0.0
        %762 = vmatprep.subr.mxu0 0.0
        %763 = vmatpush1.msra.mxu0 0.0
        %764 = vmatprep.subr.mxu0 0.0
        %765 = vmatpush1.msra.mxu0 %v728
        %766 = vmatprep.subr.mxu0 0.0
        %767 = vmatpush1.msra.mxu0 %v727
        %768 = vmatprep.subr.mxu0 0.0
        %769 = vmatpush1.msra.mxu0 %v726
        %770 = vmatprep.subr.mxu0 0.0
        %771 = vmatpush1.msra.mxu0 %v725
        %772 = vmatprep.subr.mxu0 0.0
        %773 = vmatpush2.msra.mxu0 0.0
        %774 = vmatprep.subr.mxu0 0.0
        %775 = vmatpush2.msra.mxu0 0.0
        %776 = vmatprep.subr.mxu0 0.0
        %777 = vmatpush2.msra.mxu0 0.0
        %778 = vmatprep.subr.mxu0 0.0
        %779 = vmatpush2.msra.mxu0 0.0
        %780 = vmatprep.subr.mxu0 0.0
        %781 = vmatpush2.msra.mxu0 0.0
        %782 = vmatprep.subr.mxu0 0.0
        %783 = vmatpush2.msra.mxu0 0.0
        %784 = vmatprep.subr.mxu0 0.0
        %785 = vmatpush2.msra.mxu0 0.0
        %786 = vmatprep.subr.mxu0 0.0
        %787 = vmatpush2.msra.mxu0 0.0
        %788 = vmatprep.subr.mxu0 0.0
        %789 = vmatpush2.msra.mxu0 0.0
        %790 = vmatprep.subr.mxu0 0.0
        %791 = vmatpush2.msra.mxu0 0.0
        %792 = vmatprep.subr.mxu0 0.0
        %793 = vmatpush2.msra.mxu0 0.0
        %794 = vmatprep.subr.mxu0 0.0
        %795 = vmatpush2.msra.mxu0 0.0
        %796 = vmatprep.subr.mxu0 0.0
        %797 = vmatpush2.msra.mxu0 0.0
        %798 = vmatprep.subr.mxu0 0.0
        %799 = vmatpush2.msra.mxu0 0.0
        %800 = vmatprep.subr.mxu0 0.0
        %801 = vmatpush2.msra.mxu0 0.0
        %802 = vmatprep.subr.mxu0 0.0
        %803 = vmatpush2.msra.mxu0 0.0
        %804 = vmatprep.mubr.f32.mxu0 0.0
        %805 = vmatmul.mubr.f32.gmra.mxu0 %v738
        %v806 = vpop.f32.mrf.mxu0
        %v807 = vadd.f32 %v734, %v806
        %v808 = vpop.f32.mrf.mxu0
        %809 = vdwg.mxu0
        %811 = vrot.lane.b32.xlu0 %v807, 120
        %v812 = vpop.permute.xlu0 %811
        %814 = vrot.lane.b32.xlu0 %v807, 112
        %v815 = vpop.permute.xlu0 %814
        %817 = vrot.lane.b32.xlu0 %v807, 104
        %v818 = vpop.permute.xlu0 %817
        %v820 = vcombine.low %v807, %v815
        %v821 = vcombine.high %v807, %v815
        %v823 = vunpack.c.l.s4 1983009808
        %v824 = vunpack.c.0.s8 %v823
        %v825 = vlaneseq
        %v826 = vshrl.u32 %v825, 7
        %v827 = vsub.s32 %v824, %v826
        %v828 = vrot.slane %v820, %v827
        %v830 = vunpack.c.l.s4 1983009808
        %v831 = vunpack.c.0.s8 %v830
        %v832 = vlaneseq
        %v833 = vshrl.u32 %v832, 7
        %v834 = vsub.s32 %v831, %v833
        %v835 = vrot.slane %v821, %v834
        %v836 = vcombine.low %v812, %v818
        %v837 = vcombine.high %v812, %v818
        %v839 = vunpack.c.l.s4 1983009808
        %v840 = vunpack.c.0.s8 %v839
        %v841 = vlaneseq
        %v842 = vshrl.u32 %v841, 7
        %v843 = vsub.s32 %v840, %v842
        %v844 = vrot.slane %v836, %v843
        %v846 = vunpack.c.l.s4 1983009808
        %v847 = vunpack.c.0.s8 %v846
        %v848 = vlaneseq
        %v849 = vshrl.u32 %v848, 7
        %v850 = vsub.s32 %v847, %v849
        %v851 = vrot.slane %v837, %v850
        %v852 = vcombine.low %v828, %v844
        %v853 = vcombine.high %v828, %v844
        %v855 = vunpack.c.l.s4 1934713408
        %v856 = vunpack.c.0.s8 %v855
        %v857 = vlaneseq
        %v858 = vshrl.u32 %v857, 7
        %v859 = vsub.s32 %v856, %v858
        %v860 = vrot.slane %v852, %v859
        %v862 = vunpack.c.l.s4 1934713408
        %v863 = vunpack.c.0.s8 %v862
        %v864 = vlaneseq
        %v865 = vshrl.u32 %v864, 7
        %v866 = vsub.s32 %v863, %v865
        %v867 = vrot.slane %v853, %v866
        %v868 = vcombine.low %v835, %v851
        %v869 = vcombine.high %v835, %v851
        %v871 = vunpack.c.l.s4 1934713408
        %v872 = vunpack.c.0.s8 %v871
        %v873 = vlaneseq
        %v874 = vshrl.u32 %v873, 7
        %v875 = vsub.s32 %v872, %v874
        %v876 = vrot.slane %v868, %v875
        %v878 = vunpack.c.l.s4 1934713408
        %v879 = vunpack.c.0.s8 %v878
        %v880 = vlaneseq
        %v881 = vshrl.u32 %v880, 7
        %v882 = vsub.s32 %v879, %v881
        %v883 = vrot.slane %v869, %v882
        %v884 = vcombine.high %v860, 0.0
        %v885 = vcombine.high %v867, 0.0
        %v886 = vcombine.high %v876, 0.0
        %v887 = vcombine.high %v883, 0.0
        %v888 = vcombine.low %v860, %v867
        %v890 = vunpack.c.l.s4 1983009808
        %v891 = vunpack.c.0.s8 %v890
        %v892 = vlaneseq
        %v893 = vshrl.u32 %v892, 7
        %v894 = vsub.s32 %v891, %v893
        %v895 = vrot.slane %v888, %v894
        %v896 = vcombine.low %v884, %v885
        %v898 = vunpack.c.l.s4 1983009808
        %v899 = vunpack.c.0.s8 %v898
        %v900 = vlaneseq
        %v901 = vshrl.u32 %v900, 7
        %v902 = vsub.s32 %v899, %v901
        %v903 = vrot.slane %v896, %v902
        %v904 = vcombine.low %v876, %v883
        %v906 = vunpack.c.l.s4 1983009808
        %v907 = vunpack.c.0.s8 %v906
        %v908 = vlaneseq
        %v909 = vshrl.u32 %v908, 7
        %v910 = vsub.s32 %v907, %v909
        %v911 = vrot.slane %v904, %v910
        %v912 = vcombine.low %v886, %v887
        %v914 = vunpack.c.l.s4 1983009808
        %v915 = vunpack.c.0.s8 %v914
        %v916 = vlaneseq
        %v917 = vshrl.u32 %v916, 7
        %v918 = vsub.s32 %v915, %v917
        %v919 = vrot.slane %v912, %v918
        %v920 = vcombine.low %v895, %v903
        %v921 = vcombine.high %v895, %v903
        %v923 = vunpack.c.l.s4 1934713408
        %v924 = vunpack.c.0.s8 %v923
        %v925 = vlaneseq
        %v926 = vshrl.u32 %v925, 7
        %v927 = vsub.s32 %v924, %v926
        %v928 = vrot.slane %v920, %v927
        %v930 = vunpack.c.l.s4 1934713408
        %v931 = vunpack.c.0.s8 %v930
        %v932 = vlaneseq
        %v933 = vshrl.u32 %v932, 7
        %v934 = vsub.s32 %v931, %v933
        %v935 = vrot.slane %v921, %v934
        %v936 = vcombine.low %v911, %v919
        %v937 = vcombine.high %v911, %v919
        %v939 = vunpack.c.l.s4 1934713408
        %v940 = vunpack.c.0.s8 %v939
        %v941 = vlaneseq
        %v942 = vshrl.u32 %v941, 7
        %v943 = vsub.s32 %v940, %v942
        %v944 = vrot.slane %v936, %v943
        %v946 = vunpack.c.l.s4 1934713408
        %v947 = vunpack.c.0.s8 %v946
        %v948 = vlaneseq
        %v949 = vshrl.u32 %v948, 7
        %v950 = vsub.s32 %v947, %v949
        %v951 = vrot.slane %v937, %v950
        %v952 = vcombine.low %v928, %v944
        %v953 = vcombine.high %v928, %v944
        %v954 = vcombine.low %v935, %v951
        %v955 = vcombine.high %v935, %v951
        %956 = vrot.lane.b32.xlu0 %v807, 96
        %v957 = vpop.permute.xlu0 %956
        %958 = vrot.lane.b32.xlu0 %v812, 96
        %v959 = vpop.permute.xlu0 %958
        %960 = vrot.lane.b32.xlu0 %v815, 96
        %v961 = vpop.permute.xlu0 %960
        %962 = vrot.lane.b32.xlu0 %v818, 96
        %v963 = vpop.permute.xlu0 %962
        %v968 = vcombine.low %v957, %v961
        %v969 = vcombine.high %v957, %v961
        %v971 = vunpack.c.l.s4 1983009808
        %v972 = vunpack.c.0.s8 %v971
        %v973 = vlaneseq
        %v974 = vshrl.u32 %v973, 7
        %v975 = vsub.s32 %v972, %v974
        %v976 = vrot.slane %v968, %v975
        %v978 = vunpack.c.l.s4 1983009808
        %v979 = vunpack.c.0.s8 %v978
        %v980 = vlaneseq
        %v981 = vshrl.u32 %v980, 7
        %v982 = vsub.s32 %v979, %v981
        %v983 = vrot.slane %v969, %v982
        %v984 = vcombine.low %v959, %v963
        %v985 = vcombine.high %v959, %v963
        %v987 = vunpack.c.l.s4 1983009808
        %v988 = vunpack.c.0.s8 %v987
        %v989 = vlaneseq
        %v990 = vshrl.u32 %v989, 7
        %v991 = vsub.s32 %v988, %v990
        %v992 = vrot.slane %v984, %v991
        %v994 = vunpack.c.l.s4 1983009808
        %v995 = vunpack.c.0.s8 %v994
        %v996 = vlaneseq
        %v997 = vshrl.u32 %v996, 7
        %v998 = vsub.s32 %v995, %v997
        %v999 = vrot.slane %v985, %v998
        %v1000 = vcombine.low %v976, %v992
        %v1001 = vcombine.high %v976, %v992
        %v1003 = vunpack.c.l.s4 1934713408
        %v1004 = vunpack.c.0.s8 %v1003
        %v1005 = vlaneseq
        %v1006 = vshrl.u32 %v1005, 7
        %v1007 = vsub.s32 %v1004, %v1006
        %v1008 = vrot.slane %v1000, %v1007
        %v1010 = vunpack.c.l.s4 1934713408
        %v1011 = vunpack.c.0.s8 %v1010
        %v1012 = vlaneseq
        %v1013 = vshrl.u32 %v1012, 7
        %v1014 = vsub.s32 %v1011, %v1013
        %v1015 = vrot.slane %v1001, %v1014
        %v1016 = vcombine.low %v983, %v999
        %v1017 = vcombine.high %v983, %v999
        %v1019 = vunpack.c.l.s4 1934713408
        %v1020 = vunpack.c.0.s8 %v1019
        %v1021 = vlaneseq
        %v1022 = vshrl.u32 %v1021, 7
        %v1023 = vsub.s32 %v1020, %v1022
        %v1024 = vrot.slane %v1016, %v1023
        %v1026 = vunpack.c.l.s4 1934713408
        %v1027 = vunpack.c.0.s8 %v1026
        %v1028 = vlaneseq
        %v1029 = vshrl.u32 %v1028, 7
        %v1030 = vsub.s32 %v1027, %v1029
        %v1031 = vrot.slane %v1017, %v1030
        %v1032 = vcombine.high %v1008, 0.0
        %v1033 = vcombine.high %v1015, 0.0
        %v1034 = vcombine.high %v1024, 0.0
        %v1035 = vcombine.high %v1031, 0.0
        %v1036 = vcombine.low %v1008, %v1015
        %v1038 = vunpack.c.l.s4 1983009808
        %v1039 = vunpack.c.0.s8 %v1038
        %v1040 = vlaneseq
        %v1041 = vshrl.u32 %v1040, 7
        %v1042 = vsub.s32 %v1039, %v1041
        %v1043 = vrot.slane %v1036, %v1042
        %v1044 = vcombine.low %v1032, %v1033
        %v1046 = vunpack.c.l.s4 1983009808
        %v1047 = vunpack.c.0.s8 %v1046
        %v1048 = vlaneseq
        %v1049 = vshrl.u32 %v1048, 7
        %v1050 = vsub.s32 %v1047, %v1049
        %v1051 = vrot.slane %v1044, %v1050
        %v1052 = vcombine.low %v1024, %v1031
        %v1054 = vunpack.c.l.s4 1983009808
        %v1055 = vunpack.c.0.s8 %v1054
        %v1056 = vlaneseq
        %v1057 = vshrl.u32 %v1056, 7
        %v1058 = vsub.s32 %v1055, %v1057
        %v1059 = vrot.slane %v1052, %v1058
        %v1060 = vcombine.low %v1034, %v1035
        %v1062 = vunpack.c.l.s4 1983009808
        %v1063 = vunpack.c.0.s8 %v1062
        %v1064 = vlaneseq
        %v1065 = vshrl.u32 %v1064, 7
        %v1066 = vsub.s32 %v1063, %v1065
        %v1067 = vrot.slane %v1060, %v1066
        %v1068 = vcombine.low %v1043, %v1051
        %v1069 = vcombine.high %v1043, %v1051
        %v1071 = vunpack.c.l.s4 1934713408
        %v1072 = vunpack.c.0.s8 %v1071
        %v1073 = vlaneseq
        %v1074 = vshrl.u32 %v1073, 7
        %v1075 = vsub.s32 %v1072, %v1074
        %v1076 = vrot.slane %v1068, %v1075
        %v1078 = vunpack.c.l.s4 1934713408
        %v1079 = vunpack.c.0.s8 %v1078
        %v1080 = vlaneseq
        %v1081 = vshrl.u32 %v1080, 7
        %v1082 = vsub.s32 %v1079, %v1081
        %v1083 = vrot.slane %v1069, %v1082
        %v1084 = vcombine.low %v1059, %v1067
        %v1085 = vcombine.high %v1059, %v1067
        %v1087 = vunpack.c.l.s4 1934713408
        %v1088 = vunpack.c.0.s8 %v1087
        %v1089 = vlaneseq
        %v1090 = vshrl.u32 %v1089, 7
        %v1091 = vsub.s32 %v1088, %v1090
        %v1092 = vrot.slane %v1084, %v1091
        %v1094 = vunpack.c.l.s4 1934713408
        %v1095 = vunpack.c.0.s8 %v1094
        %v1096 = vlaneseq
        %v1097 = vshrl.u32 %v1096, 7
        %v1098 = vsub.s32 %v1095, %v1097
        %v1099 = vrot.slane %v1085, %v1098
        %v1100 = vcombine.low %v1076, %v1092
        %v1101 = vcombine.high %v1076, %v1092
        %v1102 = vcombine.low %v1083, %v1099
        %v1103 = vcombine.high %v1083, %v1099
        %1104 = vrot.lane.b32.xlu0 %v807, 64
        %v1105 = vpop.permute.xlu0 %1104
        %1106 = vrot.lane.b32.xlu0 %v812, 64
        %v1107 = vpop.permute.xlu0 %1106
        %1108 = vrot.lane.b32.xlu0 %v815, 64
        %v1109 = vpop.permute.xlu0 %1108
        %1110 = vrot.lane.b32.xlu0 %v818, 64
        %v1111 = vpop.permute.xlu0 %1110
        %v1116 = vcombine.low %v1105, %v1109
        %v1117 = vcombine.high %v1105, %v1109
        %v1119 = vunpack.c.l.s4 1983009808
        %v1120 = vunpack.c.0.s8 %v1119
        %v1121 = vlaneseq
        %v1122 = vshrl.u32 %v1121, 7
        %v1123 = vsub.s32 %v1120, %v1122
        %v1124 = vrot.slane %v1116, %v1123
        %v1126 = vunpack.c.l.s4 1983009808
        %v1127 = vunpack.c.0.s8 %v1126
        %v1128 = vlaneseq
        %v1129 = vshrl.u32 %v1128, 7
        %v1130 = vsub.s32 %v1127, %v1129
        %v1131 = vrot.slane %v1117, %v1130
        %v1132 = vcombine.low %v1107, %v1111
        %v1133 = vcombine.high %v1107, %v1111
        %v1135 = vunpack.c.l.s4 1983009808
        %v1136 = vunpack.c.0.s8 %v1135
        %v1137 = vlaneseq
        %v1138 = vshrl.u32 %v1137, 7
        %v1139 = vsub.s32 %v1136, %v1138
        %v1140 = vrot.slane %v1132, %v1139
        %v1142 = vunpack.c.l.s4 1983009808
        %v1143 = vunpack.c.0.s8 %v1142
        %v1144 = vlaneseq
        %v1145 = vshrl.u32 %v1144, 7
        %v1146 = vsub.s32 %v1143, %v1145
        %v1147 = vrot.slane %v1133, %v1146
        %v1148 = vcombine.low %v1124, %v1140
        %v1149 = vcombine.high %v1124, %v1140
        %v1151 = vunpack.c.l.s4 1934713408
        %v1152 = vunpack.c.0.s8 %v1151
        %v1153 = vlaneseq
        %v1154 = vshrl.u32 %v1153, 7
        %v1155 = vsub.s32 %v1152, %v1154
        %v1156 = vrot.slane %v1148, %v1155
        %v1158 = vunpack.c.l.s4 1934713408
        %v1159 = vunpack.c.0.s8 %v1158
        %v1160 = vlaneseq
        %v1161 = vshrl.u32 %v1160, 7
        %v1162 = vsub.s32 %v1159, %v1161
        %v1163 = vrot.slane %v1149, %v1162
        %v1164 = vcombine.low %v1131, %v1147
        %v1165 = vcombine.high %v1131, %v1147
        %v1167 = vunpack.c.l.s4 1934713408
        %v1168 = vunpack.c.0.s8 %v1167
        %v1169 = vlaneseq
        %v1170 = vshrl.u32 %v1169, 7
        %v1171 = vsub.s32 %v1168, %v1170
        %v1172 = vrot.slane %v1164, %v1171
        %v1174 = vunpack.c.l.s4 1934713408
        %v1175 = vunpack.c.0.s8 %v1174
        %v1176 = vlaneseq
        %v1177 = vshrl.u32 %v1176, 7
        %v1178 = vsub.s32 %v1175, %v1177
        %v1179 = vrot.slane %v1165, %v1178
        %v1180 = vcombine.high %v1156, 0.0
        %v1181 = vcombine.high %v1163, 0.0
        %v1182 = vcombine.high %v1172, 0.0
        %v1183 = vcombine.high %v1179, 0.0
        %v1184 = vcombine.low %v1156, %v1163
        %v1186 = vunpack.c.l.s4 1983009808
        %v1187 = vunpack.c.0.s8 %v1186
        %v1188 = vlaneseq
        %v1189 = vshrl.u32 %v1188, 7
        %v1190 = vsub.s32 %v1187, %v1189
        %v1191 = vrot.slane %v1184, %v1190
        %v1192 = vcombine.low %v1180, %v1181
        %v1194 = vunpack.c.l.s4 1983009808
        %v1195 = vunpack.c.0.s8 %v1194
        %v1196 = vlaneseq
        %v1197 = vshrl.u32 %v1196, 7
        %v1198 = vsub.s32 %v1195, %v1197
        %v1199 = vrot.slane %v1192, %v1198
        %v1200 = vcombine.low %v1172, %v1179
        %v1202 = vunpack.c.l.s4 1983009808
        %v1203 = vunpack.c.0.s8 %v1202
        %v1204 = vlaneseq
        %v1205 = vshrl.u32 %v1204, 7
        %v1206 = vsub.s32 %v1203, %v1205
        %v1207 = vrot.slane %v1200, %v1206
        %v1208 = vcombine.low %v1182, %v1183
        %v1210 = vunpack.c.l.s4 1983009808
        %v1211 = vunpack.c.0.s8 %v1210
        %v1212 = vlaneseq
        %v1213 = vshrl.u32 %v1212, 7
        %v1214 = vsub.s32 %v1211, %v1213
        %v1215 = vrot.slane %v1208, %v1214
        %v1216 = vcombine.low %v1191, %v1199
        %v1217 = vcombine.high %v1191, %v1199
        %v1219 = vunpack.c.l.s4 1934713408
        %v1220 = vunpack.c.0.s8 %v1219
        %v1221 = vlaneseq
        %v1222 = vshrl.u32 %v1221, 7
        %v1223 = vsub.s32 %v1220, %v1222
        %v1224 = vrot.slane %v1216, %v1223
        %v1226 = vunpack.c.l.s4 1934713408
        %v1227 = vunpack.c.0.s8 %v1226
        %v1228 = vlaneseq
        %v1229 = vshrl.u32 %v1228, 7
        %v1230 = vsub.s32 %v1227, %v1229
        %v1231 = vrot.slane %v1217, %v1230
        %v1232 = vcombine.low %v1207, %v1215
        %v1233 = vcombine.high %v1207, %v1215
        %v1235 = vunpack.c.l.s4 1934713408
        %v1236 = vunpack.c.0.s8 %v1235
        %v1237 = vlaneseq
        %v1238 = vshrl.u32 %v1237, 7
        %v1239 = vsub.s32 %v1236, %v1238
        %v1240 = vrot.slane %v1232, %v1239
        %v1242 = vunpack.c.l.s4 1934713408
        %v1243 = vunpack.c.0.s8 %v1242
        %v1244 = vlaneseq
        %v1245 = vshrl.u32 %v1244, 7
        %v1246 = vsub.s32 %v1243, %v1245
        %v1247 = vrot.slane %v1233, %v1246
        %v1248 = vcombine.low %v1224, %v1240
        %v1249 = vcombine.high %v1224, %v1240
        %v1250 = vcombine.low %v1231, %v1247
        %v1251 = vcombine.high %v1231, %v1247
        %vm1252 = vcmask 64512
        %v1254 = vsel %vm1252, %v952, 0
        %v1257 = vsel %vm1252, %v1100, 0
        %1259 = vmatprep.subr.mxu0 0.0
        %1260 = vmatpush1.xpose.msra.mxu0 0.0
        %1261 = vmatprep.subr.mxu0 0.0
        %1262 = vmatpush1.xpose.msra.mxu0 0.0
        %1263 = vmatprep.subr.mxu0 0.0
        %1264 = vmatpush1.xpose.msra.mxu0 0.0
        %1265 = vmatprep.subr.mxu0 0.0
        %1266 = vmatpush1.xpose.msra.mxu0 0.0
        %1267 = vmatprep.subr.mxu0 0.0
        %1268 = vmatpush1.xpose.msra.mxu0 0.0
        %1269 = vmatprep.subr.mxu0 0.0
        %1270 = vmatpush1.xpose.msra.mxu0 0.0
        %1271 = vmatprep.subr.mxu0 0.0
        %1272 = vmatpush1.xpose.msra.mxu0 0.0
        %1273 = vmatprep.subr.mxu0 0.0
        %1274 = vmatpush1.xpose.msra.mxu0 0.0
        %1275 = vmatprep.subr.mxu0 0.0
        %1276 = vmatpush1.xpose.msra.mxu0 0.0
        %1277 = vmatprep.subr.mxu0 0.0
        %1278 = vmatpush1.xpose.msra.mxu0 0.0
        %1279 = vmatprep.subr.mxu0 0.0
        %1280 = vmatpush1.xpose.msra.mxu0 0.0
        %1281 = vmatprep.subr.mxu0 0.0
        %1282 = vmatpush1.xpose.msra.mxu0 0.0
        %1283 = vmatprep.subr.mxu0 0.0
        %1284 = vmatpush1.xpose.msra.mxu0 0.0
        %1285 = vmatprep.subr.mxu0 0.0
        %1286 = vmatpush1.xpose.msra.mxu0 0.0
        %1287 = vmatprep.subr.mxu0 0.0
        %1288 = vmatpush1.xpose.msra.mxu0 0.0
        %1289 = vmatprep.subr.mxu0 0.0
        %1290 = vmatpush1.xpose.msra.mxu0 %v1257
        %1291 = vmatprep.subr.mxu0 0.0
        %1292 = vmatpush2.xpose.msra.mxu0 0.0
        %1293 = vmatprep.subr.mxu0 0.0
        %1294 = vmatpush2.xpose.msra.mxu0 0.0
        %1295 = vmatprep.subr.mxu0 0.0
        %1296 = vmatpush2.xpose.msra.mxu0 0.0
        %1297 = vmatprep.subr.mxu0 0.0
        %1298 = vmatpush2.xpose.msra.mxu0 0.0
        %1299 = vmatprep.subr.mxu0 0.0
        %1300 = vmatpush2.xpose.msra.mxu0 0.0
        %1301 = vmatprep.subr.mxu0 0.0
        %1302 = vmatpush2.xpose.msra.mxu0 0.0
        %1303 = vmatprep.subr.mxu0 0.0
        %1304 = vmatpush2.xpose.msra.mxu0 0.0
        %1305 = vmatprep.subr.mxu0 0.0
        %1306 = vmatpush2.xpose.msra.mxu0 0.0
        %1307 = vmatprep.subr.mxu0 0.0
        %1308 = vmatpush2.xpose.msra.mxu0 0.0
        %1309 = vmatprep.subr.mxu0 0.0
        %1310 = vmatpush2.xpose.msra.mxu0 0.0
        %1311 = vmatprep.subr.mxu0 0.0
        %1312 = vmatpush2.xpose.msra.mxu0 0.0
        %1313 = vmatprep.subr.mxu0 0.0
        %1314 = vmatpush2.xpose.msra.mxu0 0.0
        %1315 = vmatprep.subr.mxu0 0.0
        %1316 = vmatpush2.xpose.msra.mxu0 0.0
        %1317 = vmatprep.subr.mxu0 0.0
        %1318 = vmatpush2.xpose.msra.mxu0 0.0
        %1319 = vmatprep.subr.mxu0 0.0
        %1320 = vmatpush2.xpose.msra.mxu0 0.0
        %1321 = vmatprep.subr.mxu0 0.0
        %1322 = vmatpush2.xpose.msra.mxu0 0.0
        %1323 = vmatprep.mubr.f32.mxu0 0.0
        %1324 = vmatmul.mubr.f32.gmra.mxu0 %v1254
        %v1325 = vpop.f32.mrf.mxu0
        %v1326 = vadd.f32 0.0, %v1325
        %v1327 = vpop.f32.mrf.mxu0
        %1328 = vdwg.mxu0
        %v1330 = vsel %vm1252, %v953, 0
        %v1333 = vsel %vm1252, %v1101, 0
        %1335 = vmatprep.subr.mxu0 0.0
        %1336 = vmatpush1.xpose.msra.mxu0 0.0
        %1337 = vmatprep.subr.mxu0 0.0
        %1338 = vmatpush1.xpose.msra.mxu0 0.0
        %1339 = vmatprep.subr.mxu0 0.0
        %1340 = vmatpush1.xpose.msra.mxu0 0.0
        %1341 = vmatprep.subr.mxu0 0.0
        %1342 = vmatpush1.xpose.msra.mxu0 0.0
        %1343 = vmatprep.subr.mxu0 0.0
        %1344 = vmatpush1.xpose.msra.mxu0 0.0
        %1345 = vmatprep.subr.mxu0 0.0
        %1346 = vmatpush1.xpose.msra.mxu0 0.0
        %1347 = vmatprep.subr.mxu0 0.0
        %1348 = vmatpush1.xpose.msra.mxu0 0.0
        %1349 = vmatprep.subr.mxu0 0.0
        %1350 = vmatpush1.xpose.msra.mxu0 0.0
        %1351 = vmatprep.subr.mxu0 0.0
        %1352 = vmatpush1.xpose.msra.mxu0 0.0
        %1353 = vmatprep.subr.mxu0 0.0
        %1354 = vmatpush1.xpose.msra.mxu0 0.0
        %1355 = vmatprep.subr.mxu0 0.0
        %1356 = vmatpush1.xpose.msra.mxu0 0.0
        %1357 = vmatprep.subr.mxu0 0.0
        %1358 = vmatpush1.xpose.msra.mxu0 0.0
        %1359 = vmatprep.subr.mxu0 0.0
        %1360 = vmatpush1.xpose.msra.mxu0 0.0
        %1361 = vmatprep.subr.mxu0 0.0
        %1362 = vmatpush1.xpose.msra.mxu0 0.0
        %1363 = vmatprep.subr.mxu0 0.0
        %1364 = vmatpush1.xpose.msra.mxu0 0.0
        %1365 = vmatprep.subr.mxu0 0.0
        %1366 = vmatpush1.xpose.msra.mxu0 %v1333
        %1367 = vmatprep.subr.mxu0 0.0
        %1368 = vmatpush2.xpose.msra.mxu0 0.0
        %1369 = vmatprep.subr.mxu0 0.0
        %1370 = vmatpush2.xpose.msra.mxu0 0.0
        %1371 = vmatprep.subr.mxu0 0.0
        %1372 = vmatpush2.xpose.msra.mxu0 0.0
        %1373 = vmatprep.subr.mxu0 0.0
        %1374 = vmatpush2.xpose.msra.mxu0 0.0
        %1375 = vmatprep.subr.mxu0 0.0
        %1376 = vmatpush2.xpose.msra.mxu0 0.0
        %1377 = vmatprep.subr.mxu0 0.0
        %1378 = vmatpush2.xpose.msra.mxu0 0.0
        %1379 = vmatprep.subr.mxu0 0.0
        %1380 = vmatpush2.xpose.msra.mxu0 0.0
        %1381 = vmatprep.subr.mxu0 0.0
        %1382 = vmatpush2.xpose.msra.mxu0 0.0
        %1383 = vmatprep.subr.mxu0 0.0
        %1384 = vmatpush2.xpose.msra.mxu0 0.0
        %1385 = vmatprep.subr.mxu0 0.0
        %1386 = vmatpush2.xpose.msra.mxu0 0.0
        %1387 = vmatprep.subr.mxu0 0.0
        %1388 = vmatpush2.xpose.msra.mxu0 0.0
        %1389 = vmatprep.subr.mxu0 0.0
        %1390 = vmatpush2.xpose.msra.mxu0 0.0
        %1391 = vmatprep.subr.mxu0 0.0
        %1392 = vmatpush2.xpose.msra.mxu0 0.0
        %1393 = vmatprep.subr.mxu0 0.0
        %1394 = vmatpush2.xpose.msra.mxu0 0.0
        %1395 = vmatprep.subr.mxu0 0.0
        %1396 = vmatpush2.xpose.msra.mxu0 0.0
        %1397 = vmatprep.subr.mxu0 0.0
        %1398 = vmatpush2.xpose.msra.mxu0 0.0
        %1399 = vmatprep.mubr.f32.mxu0 0.0
        %1400 = vmatmul.mubr.f32.gmra.mxu0 %v1330
        %v1401 = vpop.f32.mrf.mxu0
        %v1402 = vadd.f32 0.0, %v1401
        %v1403 = vpop.f32.mrf.mxu0
        %1404 = vdwg.mxu0
        %v1406 = vsel %vm1252, %v954, 0
        %v1409 = vsel %vm1252, %v1102, 0
        %1411 = vmatprep.subr.mxu0 0.0
        %1412 = vmatpush1.xpose.msra.mxu0 0.0
        %1413 = vmatprep.subr.mxu0 0.0
        %1414 = vmatpush1.xpose.msra.mxu0 0.0
        %1415 = vmatprep.subr.mxu0 0.0
        %1416 = vmatpush1.xpose.msra.mxu0 0.0
        %1417 = vmatprep.subr.mxu0 0.0
        %1418 = vmatpush1.xpose.msra.mxu0 0.0
        %1419 = vmatprep.subr.mxu0 0.0
        %1420 = vmatpush1.xpose.msra.mxu0 0.0
        %1421 = vmatprep.subr.mxu0 0.0
        %1422 = vmatpush1.xpose.msra.mxu0 0.0
        %1423 = vmatprep.subr.mxu0 0.0
        %1424 = vmatpush1.xpose.msra.mxu0 0.0
        %1425 = vmatprep.subr.mxu0 0.0
        %1426 = vmatpush1.xpose.msra.mxu0 0.0
        %1427 = vmatprep.subr.mxu0 0.0
        %1428 = vmatpush1.xpose.msra.mxu0 0.0
        %1429 = vmatprep.subr.mxu0 0.0
        %1430 = vmatpush1.xpose.msra.mxu0 0.0
        %1431 = vmatprep.subr.mxu0 0.0
        %1432 = vmatpush1.xpose.msra.mxu0 0.0
        %1433 = vmatprep.subr.mxu0 0.0
        %1434 = vmatpush1.xpose.msra.mxu0 0.0
        %1435 = vmatprep.subr.mxu0 0.0
        %1436 = vmatpush1.xpose.msra.mxu0 0.0
        %1437 = vmatprep.subr.mxu0 0.0
        %1438 = vmatpush1.xpose.msra.mxu0 0.0
        %1439 = vmatprep.subr.mxu0 0.0
        %1440 = vmatpush1.xpose.msra.mxu0 0.0
        %1441 = vmatprep.subr.mxu0 0.0
        %1442 = vmatpush1.xpose.msra.mxu0 %v1409
        %1443 = vmatprep.subr.mxu0 0.0
        %1444 = vmatpush2.xpose.msra.mxu0 0.0
        %1445 = vmatprep.subr.mxu0 0.0
        %1446 = vmatpush2.xpose.msra.mxu0 0.0
        %1447 = vmatprep.subr.mxu0 0.0
        %1448 = vmatpush2.xpose.msra.mxu0 0.0
        %1449 = vmatprep.subr.mxu0 0.0
        %1450 = vmatpush2.xpose.msra.mxu0 0.0
        %1451 = vmatprep.subr.mxu0 0.0
        %1452 = vmatpush2.xpose.msra.mxu0 0.0
        %1453 = vmatprep.subr.mxu0 0.0
        %1454 = vmatpush2.xpose.msra.mxu0 0.0
        %1455 = vmatprep.subr.mxu0 0.0
        %1456 = vmatpush2.xpose.msra.mxu0 0.0
        %1457 = vmatprep.subr.mxu0 0.0
        %1458 = vmatpush2.xpose.msra.mxu0 0.0
        %1459 = vmatprep.subr.mxu0 0.0
        %1460 = vmatpush2.xpose.msra.mxu0 0.0
        %1461 = vmatprep.subr.mxu0 0.0
        %1462 = vmatpush2.xpose.msra.mxu0 0.0
        %1463 = vmatprep.subr.mxu0 0.0
        %1464 = vmatpush2.xpose.msra.mxu0 0.0
        %1465 = vmatprep.subr.mxu0 0.0
        %1466 = vmatpush2.xpose.msra.mxu0 0.0
        %1467 = vmatprep.subr.mxu0 0.0
        %1468 = vmatpush2.xpose.msra.mxu0 0.0
        %1469 = vmatprep.subr.mxu0 0.0
        %1470 = vmatpush2.xpose.msra.mxu0 0.0
        %1471 = vmatprep.subr.mxu0 0.0
        %1472 = vmatpush2.xpose.msra.mxu0 0.0
        %1473 = vmatprep.subr.mxu0 0.0
        %1474 = vmatpush2.xpose.msra.mxu0 0.0
        %1475 = vmatprep.mubr.f32.mxu0 0.0
        %1476 = vmatmul.mubr.f32.gmra.mxu0 %v1406
        %v1477 = vpop.f32.mrf.mxu0
        %v1478 = vadd.f32 0.0, %v1477
        %v1479 = vpop.f32.mrf.mxu0
        %1480 = vdwg.mxu0
        %v1482 = vsel %vm1252, %v955, 0
        %v1485 = vsel %vm1252, %v1103, 0
        %1487 = vmatprep.subr.mxu0 0.0
        %1488 = vmatpush1.xpose.msra.mxu0 0.0
        %1489 = vmatprep.subr.mxu0 0.0
        %1490 = vmatpush1.xpose.msra.mxu0 0.0
        %1491 = vmatprep.subr.mxu0 0.0
        %1492 = vmatpush1.xpose.msra.mxu0 0.0
        %1493 = vmatprep.subr.mxu0 0.0
        %1494 = vmatpush1.xpose.msra.mxu0 0.0
        %1495 = vmatprep.subr.mxu0 0.0
        %1496 = vmatpush1.xpose.msra.mxu0 0.0
        %1497 = vmatprep.subr.mxu0 0.0
        %1498 = vmatpush1.xpose.msra.mxu0 0.0
        %1499 = vmatprep.subr.mxu0 0.0
        %1500 = vmatpush1.xpose.msra.mxu0 0.0
        %1501 = vmatprep.subr.mxu0 0.0
        %1502 = vmatpush1.xpose.msra.mxu0 0.0
        %1503 = vmatprep.subr.mxu0 0.0
        %1504 = vmatpush1.xpose.msra.mxu0 0.0
        %1505 = vmatprep.subr.mxu0 0.0
        %1506 = vmatpush1.xpose.msra.mxu0 0.0
        %1507 = vmatprep.subr.mxu0 0.0
        %1508 = vmatpush1.xpose.msra.mxu0 0.0
        %1509 = vmatprep.subr.mxu0 0.0
        %1510 = vmatpush1.xpose.msra.mxu0 0.0
        %1511 = vmatprep.subr.mxu0 0.0
        %1512 = vmatpush1.xpose.msra.mxu0 0.0
        %1513 = vmatprep.subr.mxu0 0.0
        %1514 = vmatpush1.xpose.msra.mxu0 0.0
        %1515 = vmatprep.subr.mxu0 0.0
        %1516 = vmatpush1.xpose.msra.mxu0 0.0
        %1517 = vmatprep.subr.mxu0 0.0
        %1518 = vmatpush1.xpose.msra.mxu0 %v1485
        %1519 = vmatprep.subr.mxu0 0.0
        %1520 = vmatpush2.xpose.msra.mxu0 0.0
        %1521 = vmatprep.subr.mxu0 0.0
        %1522 = vmatpush2.xpose.msra.mxu0 0.0
        %1523 = vmatprep.subr.mxu0 0.0
        %1524 = vmatpush2.xpose.msra.mxu0 0.0
        %1525 = vmatprep.subr.mxu0 0.0
        %1526 = vmatpush2.xpose.msra.mxu0 0.0
        %1527 = vmatprep.subr.mxu0 0.0
        %1528 = vmatpush2.xpose.msra.mxu0 0.0
        %1529 = vmatprep.subr.mxu0 0.0
        %1530 = vmatpush2.xpose.msra.mxu0 0.0
        %1531 = vmatprep.subr.mxu0 0.0
        %1532 = vmatpush2.xpose.msra.mxu0 0.0
        %1533 = vmatprep.subr.mxu0 0.0
        %1534 = vmatpush2.xpose.msra.mxu0 0.0
        %1535 = vmatprep.subr.mxu0 0.0
        %1536 = vmatpush2.xpose.msra.mxu0 0.0
        %1537 = vmatprep.subr.mxu0 0.0
        %1538 = vmatpush2.xpose.msra.mxu0 0.0
        %1539 = vmatprep.subr.mxu0 0.0
        %1540 = vmatpush2.xpose.msra.mxu0 0.0
        %1541 = vmatprep.subr.mxu0 0.0
        %1542 = vmatpush2.xpose.msra.mxu0 0.0
        %1543 = vmatprep.subr.mxu0 0.0
        %1544 = vmatpush2.xpose.msra.mxu0 0.0
        %1545 = vmatprep.subr.mxu0 0.0
        %1546 = vmatpush2.xpose.msra.mxu0 0.0
        %1547 = vmatprep.subr.mxu0 0.0
        %1548 = vmatpush2.xpose.msra.mxu0 0.0
        %1549 = vmatprep.subr.mxu0 0.0
        %1550 = vmatpush2.xpose.msra.mxu0 0.0
        %1551 = vmatprep.mubr.f32.mxu0 0.0
        %1552 = vmatmul.mubr.f32.gmra.mxu0 %v1482
        %v1553 = vpop.f32.mrf.mxu0
        %v1554 = vadd.f32 0.0, %v1553
        %v1555 = vpop.f32.mrf.mxu0
        %1556 = vdwg.mxu0
        %v1557 = vsel %vm1252, %v1326, -inf
        %1558 = vmax.xlane.f32.xlu0 %v1557
        %v1559 = vpop.xlane.xlu0 %1558
        %v1560 = vsel %vm1252, %v1402, -inf
        %1561 = vmax.xlane.f32.xlu0 %v1560
        %v1562 = vpop.xlane.xlu0 %1561
        %v1563 = vsel %vm1252, %v1478, -inf
        %1564 = vmax.xlane.f32.xlu0 %v1563
        %v1565 = vpop.xlane.xlu0 %1564
        %v1566 = vsel %vm1252, %v1554, -inf
        %1567 = vmax.xlane.f32.xlu0 %v1566
        %v1568 = vpop.xlane.xlu0 %1567
        %v1569 = vsub.f32 %v1326, %v1559
        %v1570 = vsub.f32 %v1402, %v1562
        %v1571 = vsub.f32 %v1478, %v1565
        %v1572 = vsub.f32 %v1554, %v1568
        %v1573 = vmul.f32 %v1569, 1.442695
        %v1574 = vpow.pop %v1573
        %v1575 = vmul.f32 %v1570, 1.442695
        %v1576 = vpow.pop %v1575
        %v1577 = vmul.f32 %v1571, 1.442695
        %v1578 = vpow.pop %v1577
        %v1579 = vmul.f32 %v1572, 1.442695
        %v1580 = vpow.pop %v1579
        %v1581 = vsel %vm1252, %v1574, 0.0
        %1582 = vadd.xlane.f32.xlu0 %v1581
        %v1583 = vpop.xlane.xlu0 %1582
        %v1584 = vsel %vm1252, %v1576, 0.0
        %1585 = vadd.xlane.f32.xlu0 %v1584
        %v1586 = vpop.xlane.xlu0 %1585
        %v1587 = vsel %vm1252, %v1578, 0.0
        %1588 = vadd.xlane.f32.xlu0 %v1587
        %v1589 = vpop.xlane.xlu0 %1588
        %v1590 = vsel %vm1252, %v1580, 0.0
        %1591 = vadd.xlane.f32.xlu0 %v1590
        %v1592 = vpop.xlane.xlu0 %1591
        %v1593 = vrcp.pop %v1583
        %v1594 = vrcp.pop %v1586
        %v1595 = vrcp.pop %v1589
        %v1596 = vrcp.pop %v1592
        %v1597 = vmul.f32 %v1574, %v1593
        %v1598 = vmul.f32 %v1576, %v1594
        %v1599 = vmul.f32 %v1578, %v1595
        %v1600 = vmul.f32 %v1580, %v1596
        %v1602 = vsel %vm1252, %v1597, 0
        %1604 = vmatprep.subr.mxu0 0.0
        %1605 = vmatpush1.msra.mxu0 0.0
        %1606 = vmatprep.subr.mxu0 0.0
        %1607 = vmatpush1.msra.mxu0 0.0
        %1608 = vmatprep.subr.mxu0 0.0
        %1609 = vmatpush1.msra.mxu0 0.0
        %1610 = vmatprep.subr.mxu0 0.0
        %1611 = vmatpush1.msra.mxu0 0.0
        %1612 = vmatprep.subr.mxu0 0.0
        %1613 = vmatpush1.msra.mxu0 0.0
        %1614 = vmatprep.subr.mxu0 0.0
        %1615 = vmatpush1.msra.mxu0 0.0
        %1616 = vmatprep.subr.mxu0 0.0
        %1617 = vmatpush1.msra.mxu0 0.0
        %1618 = vmatprep.subr.mxu0 0.0
        %1619 = vmatpush1.msra.mxu0 0.0
        %1620 = vmatprep.subr.mxu0 0.0
        %1621 = vmatpush1.msra.mxu0 0.0
        %1622 = vmatprep.subr.mxu0 0.0
        %1623 = vmatpush1.msra.mxu0 0.0
        %1624 = vmatprep.subr.mxu0 0.0
        %1625 = vmatpush1.msra.mxu0 0.0
        %1626 = vmatprep.subr.mxu0 0.0
        %1627 = vmatpush1.msra.mxu0 0.0
        %1628 = vmatprep.subr.mxu0 0.0
        %1629 = vmatpush1.msra.mxu0 0.0
        %1630 = vmatprep.subr.mxu0 0.0
        %1631 = vmatpush1.msra.mxu0 0.0
        %1632 = vmatprep.subr.mxu0 0.0
        %1633 = vmatpush1.msra.mxu0 0.0
        %1634 = vmatprep.subr.mxu0 0.0
        %1635 = vmatpush1.msra.mxu0 %v1248
        %1636 = vmatprep.subr.mxu0 0.0
        %1637 = vmatpush2.msra.mxu0 0.0
        %1638 = vmatprep.subr.mxu0 0.0
        %1639 = vmatpush2.msra.mxu0 0.0
        %1640 = vmatprep.subr.mxu0 0.0
        %1641 = vmatpush2.msra.mxu0 0.0
        %1642 = vmatprep.subr.mxu0 0.0
        %1643 = vmatpush2.msra.mxu0 0.0
        %1644 = vmatprep.subr.mxu0 0.0
        %1645 = vmatpush2.msra.mxu0 0.0
        %1646 = vmatprep.subr.mxu0 0.0
        %1647 = vmatpush2.msra.mxu0 0.0
        %1648 = vmatprep.subr.mxu0 0.0
        %1649 = vmatpush2.msra.mxu0 0.0
        %1650 = vmatprep.subr.mxu0 0.0
        %1651 = vmatpush2.msra.mxu0 0.0
        %1652 = vmatprep.subr.mxu0 0.0
        %1653 = vmatpush2.msra.mxu0 0.0
        %1654 = vmatprep.subr.mxu0 0.0
        %1655 = vmatpush2.msra.mxu0 0.0
        %1656 = vmatprep.subr.mxu0 0.0
        %1657 = vmatpush2.msra.mxu0 0.0
        %1658 = vmatprep.subr.mxu0 0.0
        %1659 = vmatpush2.msra.mxu0 0.0
        %1660 = vmatprep.subr.mxu0 0.0
        %1661 = vmatpush2.msra.mxu0 0.0
        %1662 = vmatprep.subr.mxu0 0.0
        %1663 = vmatpush2.msra.mxu0 0.0
        %1664 = vmatprep.subr.mxu0 0.0
        %1665 = vmatpush2.msra.mxu0 0.0
        %1666 = vmatprep.subr.mxu0 0.0
        %1667 = vmatpush2.msra.mxu0 0.0
        %1668 = vmatprep.mubr.f32.mxu0 0.0
        %1669 = vmatmul.mubr.f32.gmra.mxu0 %v1602
        %v1670 = vpop.f32.mrf.mxu0
        %v1671 = vadd.f32 0.0, %v1670
        %v1672 = vpop.f32.mrf.mxu0
        %1673 = vdwg.mxu0
        %v1675 = vsel %vm1252, %v1598, 0
        %1677 = vmatprep.subr.mxu0 0.0
        %1678 = vmatpush1.msra.mxu0 0.0
        %1679 = vmatprep.subr.mxu0 0.0
        %1680 = vmatpush1.msra.mxu0 0.0
        %1681 = vmatprep.subr.mxu0 0.0
        %1682 = vmatpush1.msra.mxu0 0.0
        %1683 = vmatprep.subr.mxu0 0.0
        %1684 = vmatpush1.msra.mxu0 0.0
        %1685 = vmatprep.subr.mxu0 0.0
        %1686 = vmatpush1.msra.mxu0 0.0
        %1687 = vmatprep.subr.mxu0 0.0
        %1688 = vmatpush1.msra.mxu0 0.0
        %1689 = vmatprep.subr.mxu0 0.0
        %1690 = vmatpush1.msra.mxu0 0.0
        %1691 = vmatprep.subr.mxu0 0.0
        %1692 = vmatpush1.msra.mxu0 0.0
        %1693 = vmatprep.subr.mxu0 0.0
        %1694 = vmatpush1.msra.mxu0 0.0
        %1695 = vmatprep.subr.mxu0 0.0
        %1696 = vmatpush1.msra.mxu0 0.0
        %1697 = vmatprep.subr.mxu0 0.0
        %1698 = vmatpush1.msra.mxu0 0.0
        %1699 = vmatprep.subr.mxu0 0.0
        %1700 = vmatpush1.msra.mxu0 0.0
        %1701 = vmatprep.subr.mxu0 0.0
        %1702 = vmatpush1.msra.mxu0 0.0
        %1703 = vmatprep.subr.mxu0 0.0
        %1704 = vmatpush1.msra.mxu0 0.0
        %1705 = vmatprep.subr.mxu0 0.0
        %1706 = vmatpush1.msra.mxu0 0.0
        %1707 = vmatprep.subr.mxu0 0.0
        %1708 = vmatpush1.msra.mxu0 %v1249
        %1709 = vmatprep.subr.mxu0 0.0
        %1710 = vmatpush2.msra.mxu0 0.0
        %1711 = vmatprep.subr.mxu0 0.0
        %1712 = vmatpush2.msra.mxu0 0.0
        %1713 = vmatprep.subr.mxu0 0.0
        %1714 = vmatpush2.msra.mxu0 0.0
        %1715 = vmatprep.subr.mxu0 0.0
        %1716 = vmatpush2.msra.mxu0 0.0
        %1717 = vmatprep.subr.mxu0 0.0
        %1718 = vmatpush2.msra.mxu0 0.0
        %1719 = vmatprep.subr.mxu0 0.0
        %1720 = vmatpush2.msra.mxu0 0.0
        %1721 = vmatprep.subr.mxu0 0.0
        %1722 = vmatpush2.msra.mxu0 0.0
        %1723 = vmatprep.subr.mxu0 0.0
        %1724 = vmatpush2.msra.mxu0 0.0
        %1725 = vmatprep.subr.mxu0 0.0
        %1726 = vmatpush2.msra.mxu0 0.0
        %1727 = vmatprep.subr.mxu0 0.0
        %1728 = vmatpush2.msra.mxu0 0.0
        %1729 = vmatprep.subr.mxu0 0.0
        %1730 = vmatpush2.msra.mxu0 0.0
        %1731 = vmatprep.subr.mxu0 0.0
        %1732 = vmatpush2.msra.mxu0 0.0
        %1733 = vmatprep.subr.mxu0 0.0
        %1734 = vmatpush2.msra.mxu0 0.0
        %1735 = vmatprep.subr.mxu0 0.0
        %1736 = vmatpush2.msra.mxu0 0.0
        %1737 = vmatprep.subr.mxu0 0.0
        %1738 = vmatpush2.msra.mxu0 0.0
        %1739 = vmatprep.subr.mxu0 0.0
        %1740 = vmatpush2.msra.mxu0 0.0
        %1741 = vmatprep.mubr.f32.mxu0 0.0
        %1742 = vmatmul.mubr.f32.gmra.mxu0 %v1675
        %v1743 = vpop.f32.mrf.mxu0
        %v1744 = vadd.f32 0.0, %v1743
        %v1745 = vpop.f32.mrf.mxu0
        %1746 = vdwg.mxu0
        %v1748 = vsel %vm1252, %v1599, 0
        %1750 = vmatprep.subr.mxu0 0.0
        %1751 = vmatpush1.msra.mxu0 0.0
        %1752 = vmatprep.subr.mxu0 0.0
        %1753 = vmatpush1.msra.mxu0 0.0
        %1754 = vmatprep.subr.mxu0 0.0
        %1755 = vmatpush1.msra.mxu0 0.0
        %1756 = vmatprep.subr.mxu0 0.0
        %1757 = vmatpush1.msra.mxu0 0.0
        %1758 = vmatprep.subr.mxu0 0.0
        %1759 = vmatpush1.msra.mxu0 0.0
        %1760 = vmatprep.subr.mxu0 0.0
        %1761 = vmatpush1.msra.mxu0 0.0
        %1762 = vmatprep.subr.mxu0 0.0
        %1763 = vmatpush1.msra.mxu0 0.0
        %1764 = vmatprep.subr.mxu0 0.0
        %1765 = vmatpush1.msra.mxu0 0.0
        %1766 = vmatprep.subr.mxu0 0.0
        %1767 = vmatpush1.msra.mxu0 0.0
        %1768 = vmatprep.subr.mxu0 0.0
        %1769 = vmatpush1.msra.mxu0 0.0
        %1770 = vmatprep.subr.mxu0 0.0
        %1771 = vmatpush1.msra.mxu0 0.0
        %1772 = vmatprep.subr.mxu0 0.0
        %1773 = vmatpush1.msra.mxu0 0.0
        %1774 = vmatprep.subr.mxu0 0.0
        %1775 = vmatpush1.msra.mxu0 0.0
        %1776 = vmatprep.subr.mxu0 0.0
        %1777 = vmatpush1.msra.mxu0 0.0
        %1778 = vmatprep.subr.mxu0 0.0
        %1779 = vmatpush1.msra.mxu0 0.0
        %1780 = vmatprep.subr.mxu0 0.0
        %1781 = vmatpush1.msra.mxu0 %v1250
        %1782 = vmatprep.subr.mxu0 0.0
        %1783 = vmatpush2.msra.mxu0 0.0
        %1784 = vmatprep.subr.mxu0 0.0
        %1785 = vmatpush2.msra.mxu0 0.0
        %1786 = vmatprep.subr.mxu0 0.0
        %1787 = vmatpush2.msra.mxu0 0.0
        %1788 = vmatprep.subr.mxu0 0.0
        %1789 = vmatpush2.msra.mxu0 0.0
        %1790 = vmatprep.subr.mxu0 0.0
        %1791 = vmatpush2.msra.mxu0 0.0
        %1792 = vmatprep.subr.mxu0 0.0
        %1793 = vmatpush2.msra.mxu0 0.0
        %1794 = vmatprep.subr.mxu0 0.0
        %1795 = vmatpush2.msra.mxu0 0.0
        %1796 = vmatprep.subr.mxu0 0.0
        %1797 = vmatpush2.msra.mxu0 0.0
        %1798 = vmatprep.subr.mxu0 0.0
        %1799 = vmatpush2.msra.mxu0 0.0
        %1800 = vmatprep.subr.mxu0 0.0
        %1801 = vmatpush2.msra.mxu0 0.0
        %1802 = vmatprep.subr.mxu0 0.0
        %1803 = vmatpush2.msra.mxu0 0.0
        %1804 = vmatprep.subr.mxu0 0.0
        %1805 = vmatpush2.msra.mxu0 0.0
        %1806 = vmatprep.subr.mxu0 0.0
        %1807 = vmatpush2.msra.mxu0 0.0
        %1808 = vmatprep.subr.mxu0 0.0
        %1809 = vmatpush2.msra.mxu0 0.0
        %1810 = vmatprep.subr.mxu0 0.0
        %1811 = vmatpush2.msra.mxu0 0.0
        %1812 = vmatprep.subr.mxu0 0.0
        %1813 = vmatpush2.msra.mxu0 0.0
        %1814 = vmatprep.mubr.f32.mxu0 0.0
        %1815 = vmatmul.mubr.f32.gmra.mxu0 %v1748
        %v1816 = vpop.f32.mrf.mxu0
        %v1817 = vadd.f32 0.0, %v1816
        %v1818 = vpop.f32.mrf.mxu0
        %1819 = vdwg.mxu0
        %v1821 = vsel %vm1252, %v1600, 0
        %1823 = vmatprep.subr.mxu0 0.0
        %1824 = vmatpush1.msra.mxu0 0.0
        %1825 = vmatprep.subr.mxu0 0.0
        %1826 = vmatpush1.msra.mxu0 0.0
        %1827 = vmatprep.subr.mxu0 0.0
        %1828 = vmatpush1.msra.mxu0 0.0
        %1829 = vmatprep.subr.mxu0 0.0
        %1830 = vmatpush1.msra.mxu0 0.0
        %1831 = vmatprep.subr.mxu0 0.0
        %1832 = vmatpush1.msra.mxu0 0.0
        %1833 = vmatprep.subr.mxu0 0.0
        %1834 = vmatpush1.msra.mxu0 0.0
        %1835 = vmatprep.subr.mxu0 0.0
        %1836 = vmatpush1.msra.mxu0 0.0
        %1837 = vmatprep.subr.mxu0 0.0
        %1838 = vmatpush1.msra.mxu0 0.0
        %1839 = vmatprep.subr.mxu0 0.0
        %1840 = vmatpush1.msra.mxu0 0.0
        %1841 = vmatprep.subr.mxu0 0.0
        %1842 = vmatpush1.msra.mxu0 0.0
        %1843 = vmatprep.subr.mxu0 0.0
        %1844 = vmatpush1.msra.mxu0 0.0
        %1845 = vmatprep.subr.mxu0 0.0
        %1846 = vmatpush1.msra.mxu0 0.0
        %1847 = vmatprep.subr.mxu0 0.0
        %1848 = vmatpush1.msra.mxu0 0.0
        %1849 = vmatprep.subr.mxu0 0.0
        %1850 = vmatpush1.msra.mxu0 0.0
        %1851 = vmatprep.subr.mxu0 0.0
        %1852 = vmatpush1.msra.mxu0 0.0
        %1853 = vmatprep.subr.mxu0 0.0
        %1854 = vmatpush1.msra.mxu0 %v1251
        %1855 = vmatprep.subr.mxu0 0.0
        %1856 = vmatpush2.msra.mxu0 0.0
        %1857 = vmatprep.subr.mxu0 0.0
        %1858 = vmatpush2.msra.mxu0 0.0
        %1859 = vmatprep.subr.mxu0 0.0
        %1860 = vmatpush2.msra.mxu0 0.0
        %1861 = vmatprep.subr.mxu0 0.0
        %1862 = vmatpush2.msra.mxu0 0.0
        %1863 = vmatprep.subr.mxu0 0.0
        %1864 = vmatpush2.msra.mxu0 0.0
        %1865 = vmatprep.subr.mxu0 0.0
        %1866 = vmatpush2.msra.mxu0 0.0
        %1867 = vmatprep.subr.mxu0 0.0
        %1868 = vmatpush2.msra.mxu0 0.0
        %1869 = vmatprep.subr.mxu0 0.0
        %1870 = vmatpush2.msra.mxu0 0.0
        %1871 = vmatprep.subr.mxu0 0.0
        %1872 = vmatpush2.msra.mxu0 0.0
        %1873 = vmatprep.subr.mxu0 0.0
        %1874 = vmatpush2.msra.mxu0 0.0
        %1875 = vmatprep.subr.mxu0 0.0
        %1876 = vmatpush2.msra.mxu0 0.0
        %1877 = vmatprep.subr.mxu0 0.0
        %1878 = vmatpush2.msra.mxu0 0.0
        %1879 = vmatprep.subr.mxu0 0.0
        %1880 = vmatpush2.msra.mxu0 0.0
        %1881 = vmatprep.subr.mxu0 0.0
        %1882 = vmatpush2.msra.mxu0 0.0
        %1883 = vmatprep.subr.mxu0 0.0
        %1884 = vmatpush2.msra.mxu0 0.0
        %1885 = vmatprep.subr.mxu0 0.0
        %1886 = vmatpush2.msra.mxu0 0.0
        %1887 = vmatprep.mubr.f32.mxu0 0.0
        %1888 = vmatmul.mubr.f32.gmra.mxu0 %v1821
        %v1889 = vpop.f32.mrf.mxu0
        %v1890 = vadd.f32 0.0, %v1889
        %v1891 = vpop.f32.mrf.mxu0
        %1892 = vdwg.mxu0
        %v1893 = vcombine.low %v1671, %v1817
        %v1894 = vcombine.high %v1671, %v1817
        %v1896 = vunpack.c.l.s4 1983009808
        %v1897 = vunpack.c.0.s8 %v1896
        %v1898 = vlaneseq
        %v1899 = vshrl.u32 %v1898, 7
        %v1900 = vsub.s32 %v1897, %v1899
        %v1901 = vrot.slane %v1893, %v1900
        %v1903 = vunpack.c.l.s4 1983009808
        %v1904 = vunpack.c.0.s8 %v1903
        %v1905 = vlaneseq
        %v1906 = vshrl.u32 %v1905, 7
        %v1907 = vsub.s32 %v1904, %v1906
        %v1908 = vrot.slane %v1894, %v1907
        %v1909 = vcombine.low %v1744, %v1890
        %v1910 = vcombine.high %v1744, %v1890
        %v1912 = vunpack.c.l.s4 1983009808
        %v1913 = vunpack.c.0.s8 %v1912
        %v1914 = vlaneseq
        %v1915 = vshrl.u32 %v1914, 7
        %v1916 = vsub.s32 %v1913, %v1915
        %v1917 = vrot.slane %v1909, %v1916
        %v1919 = vunpack.c.l.s4 1983009808
        %v1920 = vunpack.c.0.s8 %v1919
        %v1921 = vlaneseq
        %v1922 = vshrl.u32 %v1921, 7
        %v1923 = vsub.s32 %v1920, %v1922
        %v1924 = vrot.slane %v1910, %v1923
        %v1925 = vcombine.low %v1901, %v1917
        %v1926 = vcombine.high %v1901, %v1917
        %v1928 = vunpack.c.l.s4 1934713408
        %v1929 = vunpack.c.0.s8 %v1928
        %v1930 = vlaneseq
        %v1931 = vshrl.u32 %v1930, 7
        %v1932 = vsub.s32 %v1929, %v1931
        %v1933 = vrot.slane %v1925, %v1932
        %v1935 = vunpack.c.l.s4 1934713408
        %v1936 = vunpack.c.0.s8 %v1935
        %v1937 = vlaneseq
        %v1938 = vshrl.u32 %v1937, 7
        %v1939 = vsub.s32 %v1936, %v1938
        %v1940 = vrot.slane %v1926, %v1939
        %v1941 = vcombine.low %v1908, %v1924
        %v1942 = vcombine.high %v1908, %v1924
        %v1944 = vunpack.c.l.s4 1934713408
        %v1945 = vunpack.c.0.s8 %v1944
        %v1946 = vlaneseq
        %v1947 = vshrl.u32 %v1946, 7
        %v1948 = vsub.s32 %v1945, %v1947
        %v1949 = vrot.slane %v1941, %v1948
        %v1951 = vunpack.c.l.s4 1934713408
        %v1952 = vunpack.c.0.s8 %v1951
        %v1953 = vlaneseq
        %v1954 = vshrl.u32 %v1953, 7
        %v1955 = vsub.s32 %v1952, %v1954
        %v1956 = vrot.slane %v1942, %v1955
        %v1957 = vcombine.high %v1933, 0.0
        %v1958 = vcombine.high %v1940, 0.0
        %v1959 = vcombine.high %v1949, 0.0
        %v1960 = vcombine.high %v1956, 0.0
        %v1961 = vcombine.low %v1933, %v1940
        %v1963 = vunpack.c.l.s4 1983009808
        %v1964 = vunpack.c.0.s8 %v1963
        %v1965 = vlaneseq
        %v1966 = vshrl.u32 %v1965, 7
        %v1967 = vsub.s32 %v1964, %v1966
        %v1968 = vrot.slane %v1961, %v1967
        %v1969 = vcombine.low %v1957, %v1958
        %v1971 = vunpack.c.l.s4 1983009808
        %v1972 = vunpack.c.0.s8 %v1971
        %v1973 = vlaneseq
        %v1974 = vshrl.u32 %v1973, 7
        %v1975 = vsub.s32 %v1972, %v1974
        %v1976 = vrot.slane %v1969, %v1975
        %v1977 = vcombine.low %v1949, %v1956
        %v1979 = vunpack.c.l.s4 1983009808
        %v1980 = vunpack.c.0.s8 %v1979
        %v1981 = vlaneseq
        %v1982 = vshrl.u32 %v1981, 7
        %v1983 = vsub.s32 %v1980, %v1982
        %v1984 = vrot.slane %v1977, %v1983
        %v1985 = vcombine.low %v1959, %v1960
        %v1987 = vunpack.c.l.s4 1983009808
        %v1988 = vunpack.c.0.s8 %v1987
        %v1989 = vlaneseq
        %v1990 = vshrl.u32 %v1989, 7
        %v1991 = vsub.s32 %v1988, %v1990
        %v1992 = vrot.slane %v1985, %v1991
        %v1993 = vcombine.low %v1968, %v1976
        %v1994 = vcombine.high %v1968, %v1976
        %v1996 = vunpack.c.l.s4 1934713408
        %v1997 = vunpack.c.0.s8 %v1996
        %v1998 = vlaneseq
        %v1999 = vshrl.u32 %v1998, 7
        %v2000 = vsub.s32 %v1997, %v1999
        %v2001 = vrot.slane %v1993, %v2000
        %v2003 = vunpack.c.l.s4 1934713408
        %v2004 = vunpack.c.0.s8 %v2003
        %v2005 = vlaneseq
        %v2006 = vshrl.u32 %v2005, 7
        %v2007 = vsub.s32 %v2004, %v2006
        %v2008 = vrot.slane %v1994, %v2007
        %v2009 = vcombine.low %v1984, %v1992
        %v2010 = vcombine.high %v1984, %v1992
        %v2012 = vunpack.c.l.s4 1934713408
        %v2013 = vunpack.c.0.s8 %v2012
        %v2014 = vlaneseq
        %v2015 = vshrl.u32 %v2014, 7
        %v2016 = vsub.s32 %v2013, %v2015
        %v2017 = vrot.slane %v2009, %v2016
        %v2019 = vunpack.c.l.s4 1934713408
        %v2020 = vunpack.c.0.s8 %v2019
        %v2021 = vlaneseq
        %v2022 = vshrl.u32 %v2021, 7
        %v2023 = vsub.s32 %v2020, %v2022
        %v2024 = vrot.slane %v2010, %v2023
        %v2025 = vcombine.low %v2001, %v2017
        %v2026 = vcombine.high %v2001, %v2017
        %v2027 = vcombine.low %v2008, %v2024
        %v2028 = vcombine.high %v2008, %v2024
        %2030 = vrot.lane.b32.xlu0 %v2026, 8
        %v2031 = vpop.permute.xlu0 %2030
        %2034 = vrot.lane.b32.xlu0 %v2027, 16
        %v2035 = vpop.permute.xlu0 %2034
        %2038 = vrot.lane.b32.xlu0 %v2028, 24
        %v2039 = vpop.permute.xlu0 %2038
        %v2041 = vsel %vm1252, %v2025, %v2031
        %vm2042 = vcmask 130048
        %v2043 = vsel %vm2042, %v2041, %v2035
        %vm2044 = vcmask 195584
        %v2045 = vsel %vm2044, %v2043, %v2039
        %v2046 = vld [vmem:[%s4] sm:$0xff]
        %v2047 = vld [vmem:[%s4 + $0x8] sm:$0xff]
        %v2048 = vld [vmem:[%s4 + $0x10] sm:$0xff]
        %v2049 = vld [vmem:[%s4 + $0x18] sm:$0xff]
        %v2050 = vld [vmem:[#allocation5] sm:$0x1]
        %v2052 = vlaneseq
        %v2053 = vshrl.u32 %v2052, 7
        %v2054 = vsub.s32 0, %v2053
        %v2055 = vrot.slane %v2050, %v2054
        %v2058 = vsel %vm736, %v2045, 0
        %2060 = vmatprep.subr.mxu0 0.0
        %2061 = vmatpush1.msra.mxu0 0.0
        %2062 = vmatprep.subr.mxu0 0.0
        %2063 = vmatpush1.msra.mxu0 0.0
        %2064 = vmatprep.subr.mxu0 0.0
        %2065 = vmatpush1.msra.mxu0 0.0
        %2066 = vmatprep.subr.mxu0 0.0
        %2067 = vmatpush1.msra.mxu0 0.0
        %2068 = vmatprep.subr.mxu0 0.0
        %2069 = vmatpush1.msra.mxu0 0.0
        %2070 = vmatprep.subr.mxu0 0.0
        %2071 = vmatpush1.msra.mxu0 0.0
        %2072 = vmatprep.subr.mxu0 0.0
        %2073 = vmatpush1.msra.mxu0 0.0
        %2074 = vmatprep.subr.mxu0 0.0
        %2075 = vmatpush1.msra.mxu0 0.0
        %2076 = vmatprep.subr.mxu0 0.0
        %2077 = vmatpush1.msra.mxu0 0.0
        %2078 = vmatprep.subr.mxu0 0.0
        %2079 = vmatpush1.msra.mxu0 0.0
        %2080 = vmatprep.subr.mxu0 0.0
        %2081 = vmatpush1.msra.mxu0 0.0
        %2082 = vmatprep.subr.mxu0 0.0
        %2083 = vmatpush1.msra.mxu0 0.0
        %2084 = vmatprep.subr.mxu0 0.0
        %2085 = vmatpush1.msra.mxu0 %v2049
        %2086 = vmatprep.subr.mxu0 0.0
        %2087 = vmatpush1.msra.mxu0 %v2048
        %2088 = vmatprep.subr.mxu0 0.0
        %2089 = vmatpush1.msra.mxu0 %v2047
        %2090 = vmatprep.subr.mxu0 0.0
        %2091 = vmatpush1.msra.mxu0 %v2046
        %2092 = vmatprep.subr.mxu0 0.0
        %2093 = vmatpush2.msra.mxu0 0.0
        %2094 = vmatprep.subr.mxu0 0.0
        %2095 = vmatpush2.msra.mxu0 0.0
        %2096 = vmatprep.subr.mxu0 0.0
        %2097 = vmatpush2.msra.mxu0 0.0
        %2098 = vmatprep.subr.mxu0 0.0
        %2099 = vmatpush2.msra.mxu0 0.0
        %2100 = vmatprep.subr.mxu0 0.0
        %2101 = vmatpush2.msra.mxu0 0.0
        %2102 = vmatprep.subr.mxu0 0.0
        %2103 = vmatpush2.msra.mxu0 0.0
        %2104 = vmatprep.subr.mxu0 0.0
        %2105 = vmatpush2.msra.mxu0 0.0
        %2106 = vmatprep.subr.mxu0 0.0
        %2107 = vmatpush2.msra.mxu0 0.0
        %2108 = vmatprep.subr.mxu0 0.0
        %2109 = vmatpush2.msra.mxu0 0.0
        %2110 = vmatprep.subr.mxu0 0.0
        %2111 = vmatpush2.msra.mxu0 0.0
        %2112 = vmatprep.subr.mxu0 0.0
        %2113 = vmatpush2.msra.mxu0 0.0
        %2114 = vmatprep.subr.mxu0 0.0
        %2115 = vmatpush2.msra.mxu0 0.0
        %2116 = vmatprep.subr.mxu0 0.0
        %2117 = vmatpush2.msra.mxu0 0.0
        %2118 = vmatprep.subr.mxu0 0.0
        %2119 = vmatpush2.msra.mxu0 0.0
        %2120 = vmatprep.subr.mxu0 0.0
        %2121 = vmatpush2.msra.mxu0 0.0
        %2122 = vmatprep.subr.mxu0 0.0
        %2123 = vmatpush2.msra.mxu0 0.0
        %2124 = vmatprep.mubr.f32.mxu0 0.0
        %2125 = vmatmul.mubr.f32.gmra.mxu0 %v2058
        %v2126 = vpop.f32.mrf.mxu0
        %v2127 = vadd.f32 %v2055, %v2126
        %v2128 = vpop.f32.mrf.mxu0
        %2129 = vdwg.mxu0
        %v2130 = vadd.f32 %v720, %v2127
        %v2131 = vsel %vm736, %v2130, 0.0
        %2132 = vadd.xlane.f32.xlu0 %v2131
        %v2133 = vpop.xlane.xlu0 %2132
        %v2134 = vrcp.pop 32.0
        %v2135 = vmul.f32 %v2133, %v2134
        %v2136 = vsub.f32 %v2130, %v2135
        %v2137 = vmul.f32 %v2136, %v2136
        %v2138 = vsel %vm736, %v2137, 0.0
        %2139 = vadd.xlane.f32.xlu0 %v2138
        %v2140 = vpop.xlane.xlu0 %2139
        %v2141 = vmul.f32 %v2140, %v2134
        %v2142 = vadd.f32 %v2141, 1e-05
        %v2143 = vrsqrt.pop %v2142
        %v2144 = vmul.f32 %v2136, %v2143
        %v2145 = vlaneseq
        %v2146 = vshrl.u32 %v2145, 7
        %v2147 = vsub.s32 0, %v2146
        %v2148 = vrot.slane %v723, %v2147
        %v2149 = vmul.f32 %v2144, %v2148
        %v2150 = vlaneseq
        %v2151 = vshrl.u32 %v2150, 7
        %v2152 = vsub.s32 0, %v2151
        %v2153 = vrot.slane %v724, %v2152
        %v2154 = vadd.f32 %v2149, %v2153
        %v2155 = vld [vmem:[#allocation7] sm:$0xff]
        %v2156 = vld [vmem:[#allocation7 + $0x8] sm:$0xff]
        %v2157 = vld [vmem:[#allocation7 + $0x10] sm:$0xff]
        %v2158 = vld [vmem:[#allocation7 + $0x18] sm:$0xff]
        %v2159 = vld [vmem:[%s7] sm:$0x1]
        %v2161 = vlaneseq
        %v2162 = vshrl.u32 %v2161, 7
        %v2163 = vsub.s32 0, %v2162
        %v2164 = vrot.slane %v2159, %v2163
        %v2167 = vsel %vm736, %v2154, 0
        %2169 = vmatprep.subr.mxu0 0.0
        %2170 = vmatpush1.msra.mxu0 0.0
        %2171 = vmatprep.subr.mxu0 0.0
        %2172 = vmatpush1.msra.mxu0 0.0
        %2173 = vmatprep.subr.mxu0 0.0
        %2174 = vmatpush1.msra.mxu0 0.0
        %2175 = vmatprep.subr.mxu0 0.0
        %2176 = vmatpush1.msra.mxu0 0.0
        %2177 = vmatprep.subr.mxu0 0.0
        %2178 = vmatpush1.msra.mxu0 0.0
        %2179 = vmatprep.subr.mxu0 0.0
        %2180 = vmatpush1.msra.mxu0 0.0
        %2181 = vmatprep.subr.mxu0 0.0
        %2182 = vmatpush1.msra.mxu0 0.0
        %2183 = vmatprep.subr.mxu0 0.0
        %2184 = vmatpush1.msra.mxu0 0.0
        %2185 = vmatprep.subr.mxu0 0.0
        %2186 = vmatpush1.msra.mxu0 0.0
        %2187 = vmatprep.subr.mxu0 0.0
        %2188 = vmatpush1.msra.mxu0 0.0
        %2189 = vmatprep.subr.mxu0 0.0
        %2190 = vmatpush1.msra.mxu0 0.0
        %2191 = vmatprep.subr.mxu0 0.0
        %2192 = vmatpush1.msra.mxu0 0.0
        %2193 = vmatprep.subr.mxu0 0.0
        %2194 = vmatpush1.msra.mxu0 %v2158
        %2195 = vmatprep.subr.mxu0 0.0
        %2196 = vmatpush1.msra.mxu0 %v2157
        %2197 = vmatprep.subr.mxu0 0.0
        %2198 = vmatpush1.msra.mxu0 %v2156
        %2199 = vmatprep.subr.mxu0 0.0
        %2200 = vmatpush1.msra.mxu0 %v2155
        %2201 = vmatprep.subr.mxu0 0.0
        %2202 = vmatpush2.msra.mxu0 0.0
        %2203 = vmatprep.subr.mxu0 0.0
        %2204 = vmatpush2.msra.mxu0 0.0
        %2205 = vmatprep.subr.mxu0 0.0
        %2206 = vmatpush2.msra.mxu0 0.0
        %2207 = vmatprep.subr.mxu0 0.0
        %2208 = vmatpush2.msra.mxu0 0.0
        %2209 = vmatprep.subr.mxu0 0.0
        %2210 = vmatpush2.msra.mxu0 0.0
        %2211 = vmatprep.subr.mxu0 0.0
        %2212 = vmatpush2.msra.mxu0 0.0
        %2213 = vmatprep.subr.mxu0 0.0
        %2214 = vmatpush2.msra.mxu0 0.0
        %2215 = vmatprep.subr.mxu0 0.0
        %2216 = vmatpush2.msra.mxu0 0.0
        %2217 = vmatprep.subr.mxu0 0.0
        %2218 = vmatpush2.msra.mxu0 0.0
        %2219 = vmatprep.subr.mxu0 0.0
        %2220 = vmatpush2.msra.mxu0 0.0
        %2221 = vmatprep.subr.mxu0 0.0
        %2222 = vmatpush2.msra.mxu0 0.0
        %2223 = vmatprep.subr.mxu0 0.0
        %2224 = vmatpush2.msra.mxu0 0.0
        %2225 = vmatprep.subr.mxu0 0.0
        %2226 = vmatpush2.msra.mxu0 0.0
        %2227 = vmatprep.subr.mxu0 0.0
        %2228 = vmatpush2.msra.mxu0 0.0
        %2229 = vmatprep.subr.mxu0 0.0
        %2230 = vmatpush2.msra.mxu0 0.0
        %2231 = vmatprep.subr.mxu0 0.0
        %2232 = vmatpush2.msra.mxu0 0.0
        %2233 = vmatprep.mubr.f32.mxu0 0.0
        %2234 = vmatmul.mubr.f32.gmra.mxu0 %v2167
        %v2235 = vpop.f32.mrf.mxu0
        %v2236 = vadd.f32 %v2164, %v2235
        %v2237 = vpop.f32.mrf.mxu0
        %2238 = vdwg.mxu0
        %v2239 = vld [vmem:[#allocation8] sm:$0xff]
        %v2240 = vld [vmem:[#allocation8 + $0x8] sm:$0xff]
        %v2241 = vld [vmem:[#allocation8 + $0x10] sm:$0xff]
        %v2242 = vld [vmem:[#allocation8 + $0x18] sm:$0xff]
        %v2243 = vld [vmem:[%s9] sm:$0x1]
        %v2245 = vlaneseq
        %v2246 = vshrl.u32 %v2245, 7
        %v2247 = vsub.s32 0, %v2246
        %v2248 = vrot.slane %v2243, %v2247
        %v2251 = vsel %vm736, %v721, 0
        %v2254 = vsel %vm736, %v722, 0
        %2256 = vmatprep.subr.mxu0 0.0
        %2257 = vmatpush1.msra.mxu0 0.0
        %2258 = vmatprep.subr.mxu0 0.0
        %2259 = vmatpush1.msra.mxu0 0.0
        %2260 = vmatprep.subr.mxu0 0.0
        %2261 = vmatpush1.msra.mxu0 0.0
        %2262 = vmatprep.subr.mxu0 0.0
        %2263 = vmatpush1.msra.mxu0 0.0
        %2264 = vmatprep.subr.mxu0 0.0
        %2265 = vmatpush1.msra.mxu0 0.0
        %2266 = vmatprep.subr.mxu0 0.0
        %2267 = vmatpush1.msra.mxu0 0.0
        %2268 = vmatprep.subr.mxu0 0.0
        %2269 = vmatpush1.msra.mxu0 0.0
        %2270 = vmatprep.subr.mxu0 0.0
        %2271 = vmatpush1.msra.mxu0 0.0
        %2272 = vmatprep.subr.mxu0 0.0
        %2273 = vmatpush1.msra.mxu0 0.0
        %2274 = vmatprep.subr.mxu0 0.0
        %2275 = vmatpush1.msra.mxu0 0.0
        %2276 = vmatprep.subr.mxu0 0.0
        %2277 = vmatpush1.msra.mxu0 0.0
        %2278 = vmatprep.subr.mxu0 0.0
        %2279 = vmatpush1.msra.mxu0 0.0
        %2280 = vmatprep.subr.mxu0 0.0
        %2281 = vmatpush1.msra.mxu0 %v2242
        %2282 = vmatprep.subr.mxu0 0.0
        %2283 = vmatpush1.msra.mxu0 %v2241
        %2284 = vmatprep.subr.mxu0 0.0
        %2285 = vmatpush1.msra.mxu0 %v2240
        %2286 = vmatprep.subr.mxu0 0.0
        %2287 = vmatpush1.msra.mxu0 %v2239
        %2288 = vmatprep.subr.mxu0 0.0
        %2289 = vmatpush2.msra.mxu0 0.0
        %2290 = vmatprep.subr.mxu0 0.0
        %2291 = vmatpush2.msra.mxu0 0.0
        %2292 = vmatprep.subr.mxu0 0.0
        %2293 = vmatpush2.msra.mxu0 0.0
        %2294 = vmatprep.subr.mxu0 0.0
        %2295 = vmatpush2.msra.mxu0 0.0
        %2296 = vmatprep.subr.mxu0 0.0
        %2297 = vmatpush2.msra.mxu0 0.0
        %2298 = vmatprep.subr.mxu0 0.0
        %2299 = vmatpush2.msra.mxu0 0.0
        %2300 = vmatprep.subr.mxu0 0.0
        %2301 = vmatpush2.msra.mxu0 0.0
        %2302 = vmatprep.subr.mxu0 0.0
        %2303 = vmatpush2.msra.mxu0 0.0
        %2304 = vmatprep.subr.mxu0 0.0
        %2305 = vmatpush2.msra.mxu0 0.0
        %2306 = vmatprep.subr.mxu0 0.0
        %2307 = vmatpush2.msra.mxu0 0.0
        %2308 = vmatprep.subr.mxu0 0.0
        %2309 = vmatpush2.msra.mxu0 0.0
        %2310 = vmatprep.subr.mxu0 0.0
        %2311 = vmatpush2.msra.mxu0 0.0
        %2312 = vmatprep.subr.mxu0 0.0
        %2313 = vmatpush2.msra.mxu0 0.0
        %2314 = vmatprep.subr.mxu0 0.0
        %2315 = vmatpush2.msra.mxu0 0.0
        %2316 = vmatprep.subr.mxu0 0.0
        %2317 = vmatpush2.msra.mxu0 0.0
        %2318 = vmatprep.subr.mxu0 0.0
        %2319 = vmatpush2.msra.mxu0 0.0
        %2320 = vmatprep.mubr.f32.mxu0 0.0
        %2321 = vmatmul.mubr.f32.gmra.mxu0 %v2251
        %v2322 = vpop.f32.mrf.mxu0
        %v2323 = vadd.f32 %v2248, %v2322
        %v2324 = vpop.f32.mrf.mxu0
        %2325 = vmatprep.mubr.f32.mxu0 0.0
        %2326 = vmatmul.mubr.f32.gmra.mxu0 %v2254
        %v2327 = vpop.f32.mrf.mxu0
        %v2328 = vadd.f32 %v2248, %v2327
        %v2329 = vpop.f32.mrf.mxu0
        %2330 = vdwg.mxu0
        %2332 = vrot.lane.b32.xlu0 %v2236, 120
        %v2333 = vpop.permute.xlu0 %2332
        %2335 = vrot.lane.b32.xlu0 %v2236, 112
        %v2336 = vpop.permute.xlu0 %2335
        %2338 = vrot.lane.b32.xlu0 %v2236, 104
        %v2339 = vpop.permute.xlu0 %2338
        %v2341 = vcombine.low %v2236, %v2336
        %v2342 = vcombine.high %v2236, %v2336
        %v2344 = vunpack.c.l.s4 1983009808
        %v2345 = vunpack.c.0.s8 %v2344
        %v2346 = vlaneseq
        %v2347 = vshrl.u32 %v2346, 7
        %v2348 = vsub.s32 %v2345, %v2347
        %v2349 = vrot.slane %v2341, %v2348
        %v2351 = vunpack.c.l.s4 1983009808
        %v2352 = vunpack.c.0.s8 %v2351
        %v2353 = vlaneseq
        %v2354 = vshrl.u32 %v2353, 7
        %v2355 = vsub.s32 %v2352, %v2354
        %v2356 = vrot.slane %v2342, %v2355
        %v2357 = vcombine.low %v2333, %v2339
        %v2358 = vcombine.high %v2333, %v2339
        %v2360 = vunpack.c.l.s4 1983009808
        %v2361 = vunpack.c.0.s8 %v2360
        %v2362 = vlaneseq
        %v2363 = vshrl.u32 %v2362, 7
        %v2364 = vsub.s32 %v2361, %v2363
        %v2365 = vrot.slane %v2357, %v2364
        %v2367 = vunpack.c.l.s4 1983009808
        %v2368 = vunpack.c.0.s8 %v2367
        %v2369 = vlaneseq
        %v2370 = vshrl.u32 %v2369, 7
        %v2371 = vsub.s32 %v2368, %v2370
        %v2372 = vrot.slane %v2358, %v2371
        %v2373 = vcombine.low %v2349, %v2365
        %v2374 = vcombine.high %v2349, %v2365
        %v2376 = vunpack.c.l.s4 1934713408
        %v2377 = vunpack.c.0.s8 %v2376
        %v2378 = vlaneseq
        %v2379 = vshrl.u32 %v2378, 7
        %v2380 = vsub.s32 %v2377, %v2379
        %v2381 = vrot.slane %v2373, %v2380
        %v2383 = vunpack.c.l.s4 1934713408
        %v2384 = vunpack.c.0.s8 %v2383
        %v2385 = vlaneseq
        %v2386 = vshrl.u32 %v2385, 7
        %v2387 = vsub.s32 %v2384, %v2386
        %v2388 = vrot.slane %v2374, %v2387
        %v2389 = vcombine.low %v2356, %v2372
        %v2390 = vcombine.high %v2356, %v2372
        %v2392 = vunpack.c.l.s4 1934713408
        %v2393 = vunpack.c.0.s8 %v2392
        %v2394 = vlaneseq
        %v2395 = vshrl.u32 %v2394, 7
        %v2396 = vsub.s32 %v2393, %v2395
        %v2397 = vrot.slane %v2389, %v2396
        %v2399 = vunpack.c.l.s4 1934713408
        %v2400 = vunpack.c.0.s8 %v2399
        %v2401 = vlaneseq
        %v2402 = vshrl.u32 %v2401, 7
        %v2403 = vsub.s32 %v2400, %v2402
        %v2404 = vrot.slane %v2390, %v2403
        %v2405 = vcombine.high %v2381, 0.0
        %v2406 = vcombine.high %v2388, 0.0
        %v2407 = vcombine.high %v2397, 0.0
        %v2408 = vcombine.high %v2404, 0.0
        %v2409 = vcombine.low %v2381, %v2388
        %v2411 = vunpack.c.l.s4 1983009808
        %v2412 = vunpack.c.0.s8 %v2411
        %v2413 = vlaneseq
        %v2414 = vshrl.u32 %v2413, 7
        %v2415 = vsub.s32 %v2412, %v2414
        %v2416 = vrot.slane %v2409, %v2415
        %v2417 = vcombine.low %v2405, %v2406
        %v2419 = vunpack.c.l.s4 1983009808
        %v2420 = vunpack.c.0.s8 %v2419
        %v2421 = vlaneseq
        %v2422 = vshrl.u32 %v2421, 7
        %v2423 = vsub.s32 %v2420, %v2422
        %v2424 = vrot.slane %v2417, %v2423
        %v2425 = vcombine.low %v2397, %v2404
        %v2427 = vunpack.c.l.s4 1983009808
        %v2428 = vunpack.c.0.s8 %v2427
        %v2429 = vlaneseq
        %v2430 = vshrl.u32 %v2429, 7
        %v2431 = vsub.s32 %v2428, %v2430
        %v2432 = vrot.slane %v2425, %v2431
        %v2433 = vcombine.low %v2407, %v2408
        %v2435 = vunpack.c.l.s4 1983009808
        %v2436 = vunpack.c.0.s8 %v2435
        %v2437 = vlaneseq
        %v2438 = vshrl.u32 %v2437, 7
        %v2439 = vsub.s32 %v2436, %v2438
        %v2440 = vrot.slane %v2433, %v2439
        %v2441 = vcombine.low %v2416, %v2424
        %v2442 = vcombine.high %v2416, %v2424
        %v2444 = vunpack.c.l.s4 1934713408
        %v2445 = vunpack.c.0.s8 %v2444
        %v2446 = vlaneseq
        %v2447 = vshrl.u32 %v2446, 7
        %v2448 = vsub.s32 %v2445, %v2447
        %v2449 = vrot.slane %v2441, %v2448
        %v2451 = vunpack.c.l.s4 1934713408
        %v2452 = vunpack.c.0.s8 %v2451
        %v2453 = vlaneseq
        %v2454 = vshrl.u32 %v2453, 7
        %v2455 = vsub.s32 %v2452, %v2454
        %v2456 = vrot.slane %v2442, %v2455
        %v2457 = vcombine.low %v2432, %v2440
        %v2458 = vcombine.high %v2432, %v2440
        %v2460 = vunpack.c.l.s4 1934713408
        %v2461 = vunpack.c.0.s8 %v2460
        %v2462 = vlaneseq
        %v2463 = vshrl.u32 %v2462, 7
        %v2464 = vsub.s32 %v2461, %v2463
        %v2465 = vrot.slane %v2457, %v2464
        %v2467 = vunpack.c.l.s4 1934713408
        %v2468 = vunpack.c.0.s8 %v2467
        %v2469 = vlaneseq
        %v2470 = vshrl.u32 %v2469, 7
        %v2471 = vsub.s32 %v2468, %v2470
        %v2472 = vrot.slane %v2458, %v2471
        %v2473 = vcombine.low %v2449, %v2465
        %v2474 = vcombine.high %v2449, %v2465
        %v2475 = vcombine.low %v2456, %v2472
        %v2476 = vcombine.high %v2456, %v2472
        %2479 = vrot.lane.b32.xlu0 %v2323, 120
        %v2480 = vpop.permute.xlu0 %2479
        %2481 = vrot.lane.b32.xlu0 %v2328, 120
        %v2482 = vpop.permute.xlu0 %2481
        %2485 = vrot.lane.b32.xlu0 %v2323, 112
        %v2486 = vpop.permute.xlu0 %2485
        %2487 = vrot.lane.b32.xlu0 %v2328, 112
        %v2488 = vpop.permute.xlu0 %2487
        %2491 = vrot.lane.b32.xlu0 %v2323, 104
        %v2492 = vpop.permute.xlu0 %2491
        %2493 = vrot.lane.b32.xlu0 %v2328, 104
        %v2494 = vpop.permute.xlu0 %2493
        %v2497 = vcombine.low %v2323, %v2486
        %v2498 = vcombine.high %v2323, %v2486
        %v2500 = vunpack.c.l.s4 1983009808
        %v2501 = vunpack.c.0.s8 %v2500
        %v2502 = vlaneseq
        %v2503 = vshrl.u32 %v2502, 7
        %v2504 = vsub.s32 %v2501, %v2503
        %v2505 = vrot.slane %v2497, %v2504
        %v2507 = vunpack.c.l.s4 1983009808
        %v2508 = vunpack.c.0.s8 %v2507
        %v2509 = vlaneseq
        %v2510 = vshrl.u32 %v2509, 7
        %v2511 = vsub.s32 %v2508, %v2510
        %v2512 = vrot.slane %v2498, %v2511
        %v2513 = vcombine.low %v2480, %v2492
        %v2514 = vcombine.high %v2480, %v2492
        %v2516 = vunpack.c.l.s4 1983009808
        %v2517 = vunpack.c.0.s8 %v2516
        %v2518 = vlaneseq
        %v2519 = vshrl.u32 %v2518, 7
        %v2520 = vsub.s32 %v2517, %v2519
        %v2521 = vrot.slane %v2513, %v2520
        %v2523 = vunpack.c.l.s4 1983009808
        %v2524 = vunpack.c.0.s8 %v2523
        %v2525 = vlaneseq
        %v2526 = vshrl.u32 %v2525, 7
        %v2527 = vsub.s32 %v2524, %v2526
        %v2528 = vrot.slane %v2514, %v2527
        %v2529 = vcombine.low %v2505, %v2521
        %v2530 = vcombine.high %v2505, %v2521
        %v2532 = vunpack.c.l.s4 1934713408
        %v2533 = vunpack.c.0.s8 %v2532
        %v2534 = vlaneseq
        %v2535 = vshrl.u32 %v2534, 7
        %v2536 = vsub.s32 %v2533, %v2535
        %v2537 = vrot.slane %v2529, %v2536
        %v2539 = vunpack.c.l.s4 1934713408
        %v2540 = vunpack.c.0.s8 %v2539
        %v2541 = vlaneseq
        %v2542 = vshrl.u32 %v2541, 7
        %v2543 = vsub.s32 %v2540, %v2542
        %v2544 = vrot.slane %v2530, %v2543
        %v2545 = vcombine.low %v2512, %v2528
        %v2546 = vcombine.high %v2512, %v2528
        %v2548 = vunpack.c.l.s4 1934713408
        %v2549 = vunpack.c.0.s8 %v2548
        %v2550 = vlaneseq
        %v2551 = vshrl.u32 %v2550, 7
        %v2552 = vsub.s32 %v2549, %v2551
        %v2553 = vrot.slane %v2545, %v2552
        %v2555 = vunpack.c.l.s4 1934713408
        %v2556 = vunpack.c.0.s8 %v2555
        %v2557 = vlaneseq
        %v2558 = vshrl.u32 %v2557, 7
        %v2559 = vsub.s32 %v2556, %v2558
        %v2560 = vrot.slane %v2546, %v2559
        %v2561 = vcombine.high %v2537, 0.0
        %v2562 = vcombine.high %v2544, 0.0
        %v2563 = vcombine.high %v2553, 0.0
        %v2564 = vcombine.high %v2560, 0.0
        %v2565 = vcombine.low %v2328, %v2488
        %v2566 = vcombine.high %v2328, %v2488
        %v2568 = vunpack.c.l.s4 1983009808
        %v2569 = vunpack.c.0.s8 %v2568
        %v2570 = vlaneseq
        %v2571 = vshrl.u32 %v2570, 7
        %v2572 = vsub.s32 %v2569, %v2571
        %v2573 = vrot.slane %v2565, %v2572
        %v2575 = vunpack.c.l.s4 1983009808
        %v2576 = vunpack.c.0.s8 %v2575
        %v2577 = vlaneseq
        %v2578 = vshrl.u32 %v2577, 7
        %v2579 = vsub.s32 %v2576, %v2578
        %v2580 = vrot.slane %v2566, %v2579
        %v2581 = vcombine.low %v2482, %v2494
        %v2582 = vcombine.high %v2482, %v2494
        %v2584 = vunpack.c.l.s4 1983009808
        %v2585 = vunpack.c.0.s8 %v2584
        %v2586 = vlaneseq
        %v2587 = vshrl.u32 %v2586, 7
        %v2588 = vsub.s32 %v2585, %v2587
        %v2589 = vrot.slane %v2581, %v2588
        %v2591 = vunpack.c.l.s4 1983009808
        %v2592 = vunpack.c.0.s8 %v2591
        %v2593 = vlaneseq
        %v2594 = vshrl.u32 %v2593, 7
        %v2595 = vsub.s32 %v2592, %v2594
        %v2596 = vrot.slane %v2582, %v2595
        %v2597 = vcombine.low %v2573, %v2589
        %v2598 = vcombine.high %v2573, %v2589
        %v2600 = vunpack.c.l.s4 1934713408
        %v2601 = vunpack.c.0.s8 %v2600
        %v2602 = vlaneseq
        %v2603 = vshrl.u32 %v2602, 7
        %v2604 = vsub.s32 %v2601, %v2603
        %v2605 = vrot.slane %v2597, %v2604
        %v2607 = vunpack.c.l.s4 1934713408
        %v2608 = vunpack.c.0.s8 %v2607
        %v2609 = vlaneseq
        %v2610 = vshrl.u32 %v2609, 7
        %v2611 = vsub.s32 %v2608, %v2610
        %v2612 = vrot.slane %v2598, %v2611
        %v2613 = vcombine.low %v2580, %v2596
        %v2614 = vcombine.high %v2580, %v2596
        %v2616 = vunpack.c.l.s4 1934713408
        %v2617 = vunpack.c.0.s8 %v2616
        %v2618 = vlaneseq
        %v2619 = vshrl.u32 %v2618, 7
        %v2620 = vsub.s32 %v2617, %v2619
        %v2621 = vrot.slane %v2613, %v2620
        %v2623 = vunpack.c.l.s4 1934713408
        %v2624 = vunpack.c.0.s8 %v2623
        %v2625 = vlaneseq
        %v2626 = vshrl.u32 %v2625, 7
        %v2627 = vsub.s32 %v2624, %v2626
        %v2628 = vrot.slane %v2614, %v2627
        %v2629 = vcombine.high %v2605, 0.0
        %v2630 = vcombine.high %v2612, 0.0
        %v2631 = vcombine.high %v2621, 0.0
        %v2632 = vcombine.high %v2628, 0.0
        %v2633 = vcombine.low %v2537, %v2544
        %v2635 = vunpack.c.l.s4 1983009808
        %v2636 = vunpack.c.0.s8 %v2635
        %v2637 = vlaneseq
        %v2638 = vshrl.u32 %v2637, 7
        %v2639 = vsub.s32 %v2636, %v2638
        %v2640 = vrot.slane %v2633, %v2639
        %v2641 = vcombine.low %v2561, %v2562
        %v2643 = vunpack.c.l.s4 1983009808
        %v2644 = vunpack.c.0.s8 %v2643
        %v2645 = vlaneseq
        %v2646 = vshrl.u32 %v2645, 7
        %v2647 = vsub.s32 %v2644, %v2646
        %v2648 = vrot.slane %v2641, %v2647
        %v2649 = vcombine.low %v2553, %v2560
        %v2651 = vunpack.c.l.s4 1983009808
        %v2652 = vunpack.c.0.s8 %v2651
        %v2653 = vlaneseq
        %v2654 = vshrl.u32 %v2653, 7
        %v2655 = vsub.s32 %v2652, %v2654
        %v2656 = vrot.slane %v2649, %v2655
        %v2657 = vcombine.low %v2563, %v2564
        %v2659 = vunpack.c.l.s4 1983009808
        %v2660 = vunpack.c.0.s8 %v2659
        %v2661 = vlaneseq
        %v2662 = vshrl.u32 %v2661, 7
        %v2663 = vsub.s32 %v2660, %v2662
        %v2664 = vrot.slane %v2657, %v2663
        %v2665 = vcombine.low %v2640, %v2648
        %v2666 = vcombine.high %v2640, %v2648
        %v2668 = vunpack.c.l.s4 1934713408
        %v2669 = vunpack.c.0.s8 %v2668
        %v2670 = vlaneseq
        %v2671 = vshrl.u32 %v2670, 7
        %v2672 = vsub.s32 %v2669, %v2671
        %v2673 = vrot.slane %v2665, %v2672
        %v2675 = vunpack.c.l.s4 1934713408
        %v2676 = vunpack.c.0.s8 %v2675
        %v2677 = vlaneseq
        %v2678 = vshrl.u32 %v2677, 7
        %v2679 = vsub.s32 %v2676, %v2678
        %v2680 = vrot.slane %v2666, %v2679
        %v2681 = vcombine.low %v2656, %v2664
        %v2682 = vcombine.high %v2656, %v2664
        %v2684 = vunpack.c.l.s4 1934713408
        %v2685 = vunpack.c.0.s8 %v2684
        %v2686 = vlaneseq
        %v2687 = vshrl.u32 %v2686, 7
        %v2688 = vsub.s32 %v2685, %v2687
        %v2689 = vrot.slane %v2681, %v2688
        %v2691 = vunpack.c.l.s4 1934713408
        %v2692 = vunpack.c.0.s8 %v2691
        %v2693 = vlaneseq
        %v2694 = vshrl.u32 %v2693, 7
        %v2695 = vsub.s32 %v2692, %v2694
        %v2696 = vrot.slane %v2682, %v2695
        %v2697 = vcombine.low %v2673, %v2689
        %v2698 = vcombine.high %v2673, %v2689
        %v2699 = vcombine.low %v2680, %v2696
        %v2700 = vcombine.high %v2680, %v2696
        %v2701 = vcombine.low %v2605, %v2612
        %v2703 = vunpack.c.l.s4 1983009808
        %v2704 = vunpack.c.0.s8 %v2703
        %v2705 = vlaneseq
        %v2706 = vshrl.u32 %v2705, 7
        %v2707 = vsub.s32 %v2704, %v2706
        %v2708 = vrot.slane %v2701, %v2707
        %v2709 = vcombine.low %v2629, %v2630
        %v2711 = vunpack.c.l.s4 1983009808
        %v2712 = vunpack.c.0.s8 %v2711
        %v2713 = vlaneseq
        %v2714 = vshrl.u32 %v2713, 7
        %v2715 = vsub.s32 %v2712, %v2714
        %v2716 = vrot.slane %v2709, %v2715
        %v2717 = vcombine.low %v2621, %v2628
        %v2719 = vunpack.c.l.s4 1983009808
        %v2720 = vunpack.c.0.s8 %v2719
        %v2721 = vlaneseq
        %v2722 = vshrl.u32 %v2721, 7
        %v2723 = vsub.s32 %v2720, %v2722
        %v2724 = vrot.slane %v2717, %v2723
        %v2725 = vcombine.low %v2631, %v2632
        %v2727 = vunpack.c.l.s4 1983009808
        %v2728 = vunpack.c.0.s8 %v2727
        %v2729 = vlaneseq
        %v2730 = vshrl.u32 %v2729, 7
        %v2731 = vsub.s32 %v2728, %v2730
        %v2732 = vrot.slane %v2725, %v2731
        %v2733 = vcombine.low %v2708, %v2716
        %v2734 = vcombine.high %v2708, %v2716
        %v2736 = vunpack.c.l.s4 1934713408
        %v2737 = vunpack.c.0.s8 %v2736
        %v2738 = vlaneseq
        %v2739 = vshrl.u32 %v2738, 7
        %v2740 = vsub.s32 %v2737, %v2739
        %v2741 = vrot.slane %v2733, %v2740
        %v2743 = vunpack.c.l.s4 1934713408
        %v2744 = vunpack.c.0.s8 %v2743
        %v2745 = vlaneseq
        %v2746 = vshrl.u32 %v2745, 7
        %v2747 = vsub.s32 %v2744, %v2746
        %v2748 = vrot.slane %v2734, %v2747
        %v2749 = vcombine.low %v2724, %v2732
        %v2750 = vcombine.high %v2724, %v2732
        %v2752 = vunpack.c.l.s4 1934713408
        %v2753 = vunpack.c.0.s8 %v2752
        %v2754 = vlaneseq
        %v2755 = vshrl.u32 %v2754, 7
        %v2756 = vsub.s32 %v2753, %v2755
        %v2757 = vrot.slane %v2749, %v2756
        %v2759 = vunpack.c.l.s4 1934713408
        %v2760 = vunpack.c.0.s8 %v2759
        %v2761 = vlaneseq
        %v2762 = vshrl.u32 %v2761, 7
        %v2763 = vsub.s32 %v2760, %v2762
        %v2764 = vrot.slane %v2750, %v2763
        %v2765 = vcombine.low %v2741, %v2757
        %v2766 = vcombine.high %v2741, %v2757
        %v2767 = vcombine.low %v2748, %v2764
        %v2768 = vcombine.high %v2748, %v2764
        %2769 = vrot.lane.b32.xlu0 %v2323, 96
        %v2770 = vpop.permute.xlu0 %2769
        %2771 = vrot.lane.b32.xlu0 %v2328, 96
        %v2772 = vpop.permute.xlu0 %2771
        %2773 = vrot.lane.b32.xlu0 %v2480, 96
        %v2774 = vpop.permute.xlu0 %2773
        %2775 = vrot.lane.b32.xlu0 %v2482, 96
        %v2776 = vpop.permute.xlu0 %2775
        %2777 = vrot.lane.b32.xlu0 %v2486, 96
        %v2778 = vpop.permute.xlu0 %2777
        %2779 = vrot.lane.b32.xlu0 %v2488, 96
        %v2780 = vpop.permute.xlu0 %2779
        %2781 = vrot.lane.b32.xlu0 %v2492, 96
        %v2782 = vpop.permute.xlu0 %2781
        %2783 = vrot.lane.b32.xlu0 %v2494, 96
        %v2784 = vpop.permute.xlu0 %2783
        %v2793 = vcombine.low %v2770, %v2778
        %v2794 = vcombine.high %v2770, %v2778
        %v2796 = vunpack.c.l.s4 1983009808
        %v2797 = vunpack.c.0.s8 %v2796
        %v2798 = vlaneseq
        %v2799 = vshrl.u32 %v2798, 7
        %v2800 = vsub.s32 %v2797, %v2799
        %v2801 = vrot.slane %v2793, %v2800
        %v2803 = vunpack.c.l.s4 1983009808
        %v2804 = vunpack.c.0.s8 %v2803
        %v2805 = vlaneseq
        %v2806 = vshrl.u32 %v2805, 7
        %v2807 = vsub.s32 %v2804, %v2806
        %v2808 = vrot.slane %v2794, %v2807
        %v2809 = vcombine.low %v2774, %v2782
        %v2810 = vcombine.high %v2774, %v2782
        %v2812 = vunpack.c.l.s4 1983009808
        %v2813 = vunpack.c.0.s8 %v2812
        %v2814 = vlaneseq
        %v2815 = vshrl.u32 %v2814, 7
        %v2816 = vsub.s32 %v2813, %v2815
        %v2817 = vrot.slane %v2809, %v2816
        %v2819 = vunpack.c.l.s4 1983009808
        %v2820 = vunpack.c.0.s8 %v2819
        %v2821 = vlaneseq
        %v2822 = vshrl.u32 %v2821, 7
        %v2823 = vsub.s32 %v2820, %v2822
        %v2824 = vrot.slane %v2810, %v2823
        %v2825 = vcombine.low %v2801, %v2817
        %v2826 = vcombine.high %v2801, %v2817
        %v2828 = vunpack.c.l.s4 1934713408
        %v2829 = vunpack.c.0.s8 %v2828
        %v2830 = vlaneseq
        %v2831 = vshrl.u32 %v2830, 7
        %v2832 = vsub.s32 %v2829, %v2831
        %v2833 = vrot.slane %v2825, %v2832
        %v2835 = vunpack.c.l.s4 1934713408
        %v2836 = vunpack.c.0.s8 %v2835
        %v2837 = vlaneseq
        %v2838 = vshrl.u32 %v2837, 7
        %v2839 = vsub.s32 %v2836, %v2838
        %v2840 = vrot.slane %v2826, %v2839
        %v2841 = vcombine.low %v2808, %v2824
        %v2842 = vcombine.high %v2808, %v2824
        %v2844 = vunpack.c.l.s4 1934713408
        %v2845 = vunpack.c.0.s8 %v2844
        %v2846 = vlaneseq
        %v2847 = vshrl.u32 %v2846, 7
        %v2848 = vsub.s32 %v2845, %v2847
        %v2849 = vrot.slane %v2841, %v2848
        %v2851 = vunpack.c.l.s4 1934713408
        %v2852 = vunpack.c.0.s8 %v2851
        %v2853 = vlaneseq
        %v2854 = vshrl.u32 %v2853, 7
        %v2855 = vsub.s32 %v2852, %v2854
        %v2856 = vrot.slane %v2842, %v2855
        %v2857 = vcombine.high %v2833, 0.0
        %v2858 = vcombine.high %v2840, 0.0
        %v2859 = vcombine.high %v2849, 0.0
        %v2860 = vcombine.high %v2856, 0.0
        %v2861 = vcombine.low %v2772, %v2780
        %v2862 = vcombine.high %v2772, %v2780
        %v2864 = vunpack.c.l.s4 1983009808
        %v2865 = vunpack.c.0.s8 %v2864
        %v2866 = vlaneseq
        %v2867 = vshrl.u32 %v2866, 7
        %v2868 = vsub.s32 %v2865, %v2867
        %v2869 = vrot.slane %v2861, %v2868
        %v2871 = vunpack.c.l.s4 1983009808
        %v2872 = vunpack.c.0.s8 %v2871
        %v2873 = vlaneseq
        %v2874 = vshrl.u32 %v2873, 7
        %v2875 = vsub.s32 %v2872, %v2874
        %v2876 = vrot.slane %v2862, %v2875
        %v2877 = vcombine.low %v2776, %v2784
        %v2878 = vcombine.high %v2776, %v2784
        %v2880 = vunpack.c.l.s4 1983009808
        %v2881 = vunpack.c.0.s8 %v2880
        %v2882 = vlaneseq
        %v2883 = vshrl.u32 %v2882, 7
        %v2884 = vsub.s32 %v2881, %v2883
        %v2885 = vrot.slane %v2877, %v2884
        %v2887 = vunpack.c.l.s4 1983009808
        %v2888 = vunpack.c.0.s8 %v2887
        %v2889 = vlaneseq
        %v2890 = vshrl.u32 %v2889, 7
        %v2891 = vsub.s32 %v2888, %v2890
        %v2892 = vrot.slane %v2878, %v2891
        %v2893 = vcombine.low %v2869, %v2885
        %v2894 = vcombine.high %v2869, %v2885
        %v2896 = vunpack.c.l.s4 1934713408
        %v2897 = vunpack.c.0.s8 %v2896
        %v2898 = vlaneseq
        %v2899 = vshrl.u32 %v2898, 7
        %v2900 = vsub.s32 %v2897, %v2899
        %v2901 = vrot.slane %v2893, %v2900
        %v2903 = vunpack.c.l.s4 1934713408
        %v2904 = vunpack.c.0.s8 %v2903
        %v2905 = vlaneseq
        %v2906 = vshrl.u32 %v2905, 7
        %v2907 = vsub.s32 %v2904, %v2906
        %v2908 = vrot.slane %v2894, %v2907
        %v2909 = vcombine.low %v2876, %v2892
        %v2910 = vcombine.high %v2876, %v2892
        %v2912 = vunpack.c.l.s4 1934713408
        %v2913 = vunpack.c.0.s8 %v2912
        %v2914 = vlaneseq
        %v2915 = vshrl.u32 %v2914, 7
        %v2916 = vsub.s32 %v2913, %v2915
        %v2917 = vrot.slane %v2909, %v2916
        %v2919 = vunpack.c.l.s4 1934713408
        %v2920 = vunpack.c.0.s8 %v2919
        %v2921 = vlaneseq
        %v2922 = vshrl.u32 %v2921, 7
        %v2923 = vsub.s32 %v2920, %v2922
        %v2924 = vrot.slane %v2910, %v2923
        %v2925 = vcombine.high %v2901, 0.0
        %v2926 = vcombine.high %v2908, 0.0
        %v2927 = vcombine.high %v2917, 0.0
        %v2928 = vcombine.high %v2924, 0.0
        %v2929 = vcombine.low %v2833, %v2840
        %v2931 = vunpack.c.l.s4 1983009808
        %v2932 = vunpack.c.0.s8 %v2931
        %v2933 = vlaneseq
        %v2934 = vshrl.u32 %v2933, 7
        %v2935 = vsub.s32 %v2932, %v2934
        %v2936 = vrot.slane %v2929, %v2935
        %v2937 = vcombine.low %v2857, %v2858
        %v2939 = vunpack.c.l.s4 1983009808
        %v2940 = vunpack.c.0.s8 %v2939
        %v2941 = vlaneseq
        %v2942 = vshrl.u32 %v2941, 7
        %v2943 = vsub.s32 %v2940, %v2942
        %v2944 = vrot.slane %v2937, %v2943
        %v2945 = vcombine.low %v2849, %v2856
        %v2947 = vunpack.c.l.s4 1983009808
        %v2948 = vunpack.c.0.s8 %v2947
        %v2949 = vlaneseq
        %v2950 = vshrl.u32 %v2949, 7
        %v2951 = vsub.s32 %v2948, %v2950
        %v2952 = vrot.slane %v2945, %v2951
        %v2953 = vcombine.low %v2859, %v2860
        %v2955 = vunpack.c.l.s4 1983009808
        %v2956 = vunpack.c.0.s8 %v2955
        %v2957 = vlaneseq
        %v2958 = vshrl.u32 %v2957, 7
        %v2959 = vsub.s32 %v2956, %v2958
        %v2960 = vrot.slane %v2953, %v2959
        %v2961 = vcombine.low %v2936, %v2944
        %v2962 = vcombine.high %v2936, %v2944
        %v2964 = vunpack.c.l.s4 1934713408
        %v2965 = vunpack.c.0.s8 %v2964
        %v2966 = vlaneseq
        %v2967 = vshrl.u32 %v2966, 7
        %v2968 = vsub.s32 %v2965, %v2967
        %v2969 = vrot.slane %v2961, %v2968
        %v2971 = vunpack.c.l.s4 1934713408
        %v2972 = vunpack.c.0.s8 %v2971
        %v2973 = vlaneseq
        %v2974 = vshrl.u32 %v2973, 7
        %v2975 = vsub.s32 %v2972, %v2974
        %v2976 = vrot.slane %v2962, %v2975
        %v2977 = vcombine.low %v2952, %v2960
        %v2978 = vcombine.high %v2952, %v2960
        %v2980 = vunpack.c.l.s4 1934713408
        %v2981 = vunpack.c.0.s8 %v2980
        %v2982 = vlaneseq
        %v2983 = vshrl.u32 %v2982, 7
        %v2984 = vsub.s32 %v2981, %v2983
        %v2985 = vrot.slane %v2977, %v2984
        %v2987 = vunpack.c.l.s4 1934713408
        %v2988 = vunpack.c.0.s8 %v2987
        %v2989 = vlaneseq
        %v2990 = vshrl.u32 %v2989, 7
        %v2991 = vsub.s32 %v2988, %v2990
        %v2992 = vrot.slane %v2978, %v2991
        %v2993 = vcombine.low %v2969, %v2985
        %v2994 = vcombine.high %v2969, %v2985
        %v2995 = vcombine.low %v2976, %v2992
        %v2996 = vcombine.high %v2976, %v2992
        %v2997 = vcombine.low %v2901, %v2908
        %v2999 = vunpack.c.l.s4 1983009808
        %v3000 = vunpack.c.0.s8 %v2999
        %v3001 = vlaneseq
        %v3002 = vshrl.u32 %v3001, 7
        %v3003 = vsub.s32 %v3000, %v3002
        %v3004 = vrot.slane %v2997, %v3003
        %v3005 = vcombine.low %v2925, %v2926
        %v3007 = vunpack.c.l.s4 1983009808
        %v3008 = vunpack.c.0.s8 %v3007
        %v3009 = vlaneseq
        %v3010 = vshrl.u32 %v3009, 7
        %v3011 = vsub.s32 %v3008, %v3010
        %v3012 = vrot.slane %v3005, %v3011
        %v3013 = vcombine.low %v2917, %v2924
        %v3015 = vunpack.c.l.s4 1983009808
        %v3016 = vunpack.c.0.s8 %v3015
        %v3017 = vlaneseq
        %v3018 = vshrl.u32 %v3017, 7
        %v3019 = vsub.s32 %v3016, %v3018
        %v3020 = vrot.slane %v3013, %v3019
        %v3021 = vcombine.low %v2927, %v2928
        %v3023 = vunpack.c.l.s4 1983009808
        %v3024 = vunpack.c.0.s8 %v3023
        %v3025 = vlaneseq
        %v3026 = vshrl.u32 %v3025, 7
        %v3027 = vsub.s32 %v3024, %v3026
        %v3028 = vrot.slane %v3021, %v3027
        %v3029 = vcombine.low %v3004, %v3012
        %v3030 = vcombine.high %v3004, %v3012
        %v3032 = vunpack.c.l.s4 1934713408
        %v3033 = vunpack.c.0.s8 %v3032
        %v3034 = vlaneseq
        %v3035 = vshrl.u32 %v3034, 7
        %v3036 = vsub.s32 %v3033, %v3035
        %v3037 = vrot.slane %v3029, %v3036
        %v3039 = vunpack.c.l.s4 1934713408
        %v3040 = vunpack.c.0.s8 %v3039
        %v3041 = vlaneseq
        %v3042 = vshrl.u32 %v3041, 7
        %v3043 = vsub.s32 %v3040, %v3042
        %v3044 = vrot.slane %v3030, %v3043
        %v3045 = vcombine.low %v3020, %v3028
        %v3046 = vcombine.high %v3020, %v3028
        %v3048 = vunpack.c.l.s4 1934713408
        %v3049 = vunpack.c.0.s8 %v3048
        %v3050 = vlaneseq
        %v3051 = vshrl.u32 %v3050, 7
        %v3052 = vsub.s32 %v3049, %v3051
        %v3053 = vrot.slane %v3045, %v3052
        %v3055 = vunpack.c.l.s4 1934713408
        %v3056 = vunpack.c.0.s8 %v3055
        %v3057 = vlaneseq
        %v3058 = vshrl.u32 %v3057, 7
        %v3059 = vsub.s32 %v3056, %v3058
        %v3060 = vrot.slane %v3046, %v3059
        %v3061 = vcombine.low %v3037, %v3053
        %v3062 = vcombine.high %v3037, %v3053
        %v3063 = vcombine.low %v3044, %v3060
        %v3064 = vcombine.high %v3044, %v3060
        %v3066 = vsel %vm1252, %v2473, 0
        %v3069 = vsel %vm1252, %v2697, 0
        %v3072 = vsel %vm1252, %v2765, 0
        %3074 = vmatprep.subr.mxu0 0.0
        %3075 = vmatpush1.xpose.msra.mxu0 0.0
        %3076 = vmatprep.subr.mxu0 0.0
        %3077 = vmatpush1.xpose.msra.mxu0 0.0
        %3078 = vmatprep.subr.mxu0 0.0
        %3079 = vmatpush1.xpose.msra.mxu0 0.0
        %3080 = vmatprep.subr.mxu0 0.0
        %3081 = vmatpush1.xpose.msra.mxu0 0.0
        %3082 = vmatprep.subr.mxu0 0.0
        %3083 = vmatpush1.xpose.msra.mxu0 0.0
        %3084 = vmatprep.subr.mxu0 0.0
        %3085 = vmatpush1.xpose.msra.mxu0 0.0
        %3086 = vmatprep.subr.mxu0 0.0
        %3087 = vmatpush1.xpose.msra.mxu0 0.0
        %3088 = vmatprep.subr.mxu0 0.0
        %3089 = vmatpush1.xpose.msra.mxu0 0.0
        %3090 = vmatprep.subr.mxu0 0.0
        %3091 = vmatpush1.xpose.msra.mxu0 0.0
        %3092 = vmatprep.subr.mxu0 0.0
        %3093 = vmatpush1.xpose.msra.mxu0 0.0
        %3094 = vmatprep.subr.mxu0 0.0
        %3095 = vmatpush1.xpose.msra.mxu0 0.0
        %3096 = vmatprep.subr.mxu0 0.0
        %3097 = vmatpush1.xpose.msra.mxu0 0.0
        %3098 = vmatprep.subr.mxu0 0.0
        %3099 = vmatpush1.xpose.msra.mxu0 0.0
        %3100 = vmatprep.subr.mxu0 0.0
        %3101 = vmatpush1.xpose.msra.mxu0 0.0
        %3102 = vmatprep.subr.mxu0 0.0
        %3103 = vmatpush1.xpose.msra.mxu0 %v3072
        %3104 = vmatprep.subr.mxu0 0.0
        %3105 = vmatpush1.xpose.msra.mxu0 %v3069
        %3106 = vmatprep.subr.mxu0 0.0
        %3107 = vmatpush2.xpose.msra.mxu0 0.0
        %3108 = vmatprep.subr.mxu0 0.0
        %3109 = vmatpush2.xpose.msra.mxu0 0.0
        %3110 = vmatprep.subr.mxu0 0.0
        %3111 = vmatpush2.xpose.msra.mxu0 0.0
        %3112 = vmatprep.subr.mxu0 0.0
        %3113 = vmatpush2.xpose.msra.mxu0 0.0
        %3114 = vmatprep.subr.mxu0 0.0
        %3115 = vmatpush2.xpose.msra.mxu0 0.0
        %3116 = vmatprep.subr.mxu0 0.0
        %3117 = vmatpush2.xpose.msra.mxu0 0.0
        %3118 = vmatprep.subr.mxu0 0.0
        %3119 = vmatpush2.xpose.msra.mxu0 0.0
        %3120 = vmatprep.subr.mxu0 0.0
        %3121 = vmatpush2.xpose.msra.mxu0 0.0
        %3122 = vmatprep.subr.mxu0 0.0
        %3123 = vmatpush2.xpose.msra.mxu0 0.0
        %3124 = vmatprep.subr.mxu0 0.0
        %3125 = vmatpush2.xpose.msra.mxu0 0.0
        %3126 = vmatprep.subr.mxu0 0.0
        %3127 = vmatpush2.xpose.msra.mxu0 0.0
        %3128 = vmatprep.subr.mxu0 0.0
        %3129 = vmatpush2.xpose.msra.mxu0 0.0
        %3130 = vmatprep.subr.mxu0 0.0
        %3131 = vmatpush2.xpose.msra.mxu0 0.0
        %3132 = vmatprep.subr.mxu0 0.0
        %3133 = vmatpush2.xpose.msra.mxu0 0.0
        %3134 = vmatprep.subr.mxu0 0.0
        %3135 = vmatpush2.xpose.msra.mxu0 0.0
        %3136 = vmatprep.subr.mxu0 0.0
        %3137 = vmatpush2.xpose.msra.mxu0 0.0
        %3138 = vmatprep.mubr.f32.mxu0 0.0
        %3139 = vmatmul.mubr.f32.gmra.mxu0 %v3066
        %v3140 = vpop.f32.mrf.mxu0
        %v3141 = vadd.f32 0.0, %v3140
        %v3142 = vpop.f32.mrf.mxu0
        %3143 = vdwg.mxu0
        %v3145 = vsel %vm1252, %v2474, 0
        %v3148 = vsel %vm1252, %v2698, 0
        %v3151 = vsel %vm1252, %v2766, 0
        %3153 = vmatprep.subr.mxu0 0.0
        %3154 = vmatpush1.xpose.msra.mxu0 0.0
        %3155 = vmatprep.subr.mxu0 0.0
        %3156 = vmatpush1.xpose.msra.mxu0 0.0
        %3157 = vmatprep.subr.mxu0 0.0
        %3158 = vmatpush1.xpose.msra.mxu0 0.0
        %3159 = vmatprep.subr.mxu0 0.0
        %3160 = vmatpush1.xpose.msra.mxu0 0.0
        %3161 = vmatprep.subr.mxu0 0.0
        %3162 = vmatpush1.xpose.msra.mxu0 0.0
        %3163 = vmatprep.subr.mxu0 0.0
        %3164 = vmatpush1.xpose.msra.mxu0 0.0
        %3165 = vmatprep.subr.mxu0 0.0
        %3166 = vmatpush1.xpose.msra.mxu0 0.0
        %3167 = vmatprep.subr.mxu0 0.0
        %3168 = vmatpush1.xpose.msra.mxu0 0.0
        %3169 = vmatprep.subr.mxu0 0.0
        %3170 = vmatpush1.xpose.msra.mxu0 0.0
        %3171 = vmatprep.subr.mxu0 0.0
        %3172 = vmatpush1.xpose.msra.mxu0 0.0
        %3173 = vmatprep.subr.mxu0 0.0
        %3174 = vmatpush1.xpose.msra.mxu0 0.0
        %3175 = vmatprep.subr.mxu0 0.0
        %3176 = vmatpush1.xpose.msra.mxu0 0.0
        %3177 = vmatprep.subr.mxu0 0.0
        %3178 = vmatpush1.xpose.msra.mxu0 0.0
        %3179 = vmatprep.subr.mxu0 0.0
        %3180 = vmatpush1.xpose.msra.mxu0 0.0
        %3181 = vmatprep.subr.mxu0 0.0
        %3182 = vmatpush1.xpose.msra.mxu0 %v3151
        %3183 = vmatprep.subr.mxu0 0.0
        %3184 = vmatpush1.xpose.msra.mxu0 %v3148
        %3185 = vmatprep.subr.mxu0 0.0
        %3186 = vmatpush2.xpose.msra.mxu0 0.0
        %3187 = vmatprep.subr.mxu0 0.0
        %3188 = vmatpush2.xpose.msra.mxu0 0.0
        %3189 = vmatprep.subr.mxu0 0.0
        %3190 = vmatpush2.xpose.msra.mxu0 0.0
        %3191 = vmatprep.subr.mxu0 0.0
        %3192 = vmatpush2.xpose.msra.mxu0 0.0
        %3193 = vmatprep.subr.mxu0 0.0
        %3194 = vmatpush2.xpose.msra.mxu0 0.0
        %3195 = vmatprep.subr.mxu0 0.0
        %3196 = vmatpush2.xpose.msra.mxu0 0.0
        %3197 = vmatprep.subr.mxu0 0.0
        %3198 = vmatpush2.xpose.msra.mxu0 0.0
        %3199 = vmatprep.subr.mxu0 0.0
        %3200 = vmatpush2.xpose.msra.mxu0 0.0
        %3201 = vmatprep.subr.mxu0 0.0
        %3202 = vmatpush2.xpose.msra.mxu0 0.0
        %3203 = vmatprep.subr.mxu0 0.0
        %3204 = vmatpush2.xpose.msra.mxu0 0.0
        %3205 = vmatprep.subr.mxu0 0.0
        %3206 = vmatpush2.xpose.msra.mxu0 0.0
        %3207 = vmatprep.subr.mxu0 0.0
        %3208 = vmatpush2.xpose.msra.mxu0 0.0
        %3209 = vmatprep.subr.mxu0 0.0
        %3210 = vmatpush2.xpose.msra.mxu0 0.0
        %3211 = vmatprep.subr.mxu0 0.0
        %3212 = vmatpush2.xpose.msra.mxu0 0.0
        %3213 = vmatprep.subr.mxu0 0.0
        %3214 = vmatpush2.xpose.msra.mxu0 0.0
        %3215 = vmatprep.subr.mxu0 0.0
        %3216 = vmatpush2.xpose.msra.mxu0 0.0
        %3217 = vmatprep.mubr.f32.mxu0 0.0
        %3218 = vmatmul.mubr.f32.gmra.mxu0 %v3145
        %v3219 = vpop.f32.mrf.mxu0
        %v3220 = vadd.f32 0.0, %v3219
        %v3221 = vpop.f32.mrf.mxu0
        %3222 = vdwg.mxu0
        %v3224 = vsel %vm1252, %v2475, 0
        %v3227 = vsel %vm1252, %v2699, 0
        %v3230 = vsel %vm1252, %v2767, 0
        %3232 = vmatprep.subr.mxu0 0.0
        %3233 = vmatpush1.xpose.msra.mxu0 0.0
        %3234 = vmatprep.subr.mxu0 0.0
        %3235 = vmatpush1.xpose.msra.mxu0 0.0
        %3236 = vmatprep.subr.mxu0 0.0
        %3237 = vmatpush1.xpose.msra.mxu0 0.0
        %3238 = vmatprep.subr.mxu0 0.0
        %3239 = vmatpush1.xpose.msra.mxu0 0.0
        %3240 = vmatprep.subr.mxu0 0.0
        %3241 = vmatpush1.xpose.msra.mxu0 0.0
        %3242 = vmatprep.subr.mxu0 0.0
        %3243 = vmatpush1.xpose.msra.mxu0 0.0
        %3244 = vmatprep.subr.mxu0 0.0
        %3245 = vmatpush1.xpose.msra.mxu0 0.0
        %3246 = vmatprep.subr.mxu0 0.0
        %3247 = vmatpush1.xpose.msra.mxu0 0.0
        %3248 = vmatprep.subr.mxu0 0.0
        %3249 = vmatpush1.xpose.msra.mxu0 0.0
        %3250 = vmatprep.subr.mxu0 0.0
        %3251 = vmatpush1.xpose.msra.mxu0 0.0
        %3252 = vmatprep.subr.mxu0 0.0
        %3253 = vmatpush1.xpose.msra.mxu0 0.0
        %3254 = vmatprep.subr.mxu0 0.0
        %3255 = vmatpush1.xpose.msra.mxu0 0.0
        %3256 = vmatprep.subr.mxu0 0.0
        %3257 = vmatpush1.xpose.msra.mxu0 0.0
        %3258 = vmatprep.subr.mxu0 0.0
        %3259 = vmatpush1.xpose.msra.mxu0 0.0
        %3260 = vmatprep.subr.mxu0 0.0
        %3261 = vmatpush1.xpose.msra.mxu0 %v3230
        %3262 = vmatprep.subr.mxu0 0.0
        %3263 = vmatpush1.xpose.msra.mxu0 %v3227
        %3264 = vmatprep.subr.mxu0 0.0
        %3265 = vmatpush2.xpose.msra.mxu0 0.0
        %3266 = vmatprep.subr.mxu0 0.0
        %3267 = vmatpush2.xpose.msra.mxu0 0.0
        %3268 = vmatprep.subr.mxu0 0.0
        %3269 = vmatpush2.xpose.msra.mxu0 0.0
        %3270 = vmatprep.subr.mxu0 0.0
        %3271 = vmatpush2.xpose.msra.mxu0 0.0
        %3272 = vmatprep.subr.mxu0 0.0
        %3273 = vmatpush2.xpose.msra.mxu0 0.0
        %3274 = vmatprep.subr.mxu0 0.0
        %3275 = vmatpush2.xpose.msra.mxu0 0.0
        %3276 = vmatprep.subr.mxu0 0.0
        %3277 = vmatpush2.xpose.msra.mxu0 0.0
        %3278 = vmatprep.subr.mxu0 0.0
        %3279 = vmatpush2.xpose.msra.mxu0 0.0
        %3280 = vmatprep.subr.mxu0 0.0
        %3281 = vmatpush2.xpose.msra.mxu0 0.0
        %3282 = vmatprep.subr.mxu0 0.0
        %3283 = vmatpush2.xpose.msra.mxu0 0.0
        %3284 = vmatprep.subr.mxu0 0.0
        %3285 = vmatpush2.xpose.msra.mxu0 0.0
        %3286 = vmatprep.subr.mxu0 0.0
        %3287 = vmatpush2.xpose.msra.mxu0 0.0
        %3288 = vmatprep.subr.mxu0 0.0
        %3289 = vmatpush2.xpose.msra.mxu0 0.0
        %3290 = vmatprep.subr.mxu0 0.0
        %3291 = vmatpush2.xpose.msra.mxu0 0.0
        %3292 = vmatprep.subr.mxu0 0.0
        %3293 = vmatpush2.xpose.msra.mxu0 0.0
        %3294 = vmatprep.subr.mxu0 0.0
        %3295 = vmatpush2.xpose.msra.mxu0 0.0
        %3296 = vmatprep.mubr.f32.mxu0 0.0
        %3297 = vmatmul.mubr.f32.gmra.mxu0 %v3224
        %v3298 = vpop.f32.mrf.mxu0
        %v3299 = vadd.f32 0.0, %v3298
        %v3300 = vpop.f32.mrf.mxu0
        %3301 = vdwg.mxu0
        %v3303 = vsel %vm1252, %v2476, 0
        %v3306 = vsel %vm1252, %v2700, 0
        %v3309 = vsel %vm1252, %v2768, 0
        %3311 = vmatprep.subr.mxu0 0.0
        %3312 = vmatpush1.xpose.msra.mxu0 0.0
        %3313 = vmatprep.subr.mxu0 0.0
        %3314 = vmatpush1.xpose.msra.mxu0 0.0
        %3315 = vmatprep.subr.mxu0 0.0
        %3316 = vmatpush1.xpose.msra.mxu0 0.0
        %3317 = vmatprep.subr.mxu0 0.0
        %3318 = vmatpush1.xpose.msra.mxu0 0.0
        %3319 = vmatprep.subr.mxu0 0.0
        %3320 = vmatpush1.xpose.msra.mxu0 0.0
        %3321 = vmatprep.subr.mxu0 0.0
        %3322 = vmatpush1.xpose.msra.mxu0 0.0
        %3323 = vmatprep.subr.mxu0 0.0
        %3324 = vmatpush1.xpose.msra.mxu0 0.0
        %3325 = vmatprep.subr.mxu0 0.0
        %3326 = vmatpush1.xpose.msra.mxu0 0.0
        %3327 = vmatprep.subr.mxu0 0.0
        %3328 = vmatpush1.xpose.msra.mxu0 0.0
        %3329 = vmatprep.subr.mxu0 0.0
        %3330 = vmatpush1.xpose.msra.mxu0 0.0
        %3331 = vmatprep.subr.mxu0 0.0
        %3332 = vmatpush1.xpose.msra.mxu0 0.0
        %3333 = vmatprep.subr.mxu0 0.0
        %3334 = vmatpush1.xpose.msra.mxu0 0.0
        %3335 = vmatprep.subr.mxu0 0.0
        %3336 = vmatpush1.xpose.msra.mxu0 0.0
        %3337 = vmatprep.subr.mxu0 0.0
        %3338 = vmatpush1.xpose.msra.mxu0 0.0
        %3339 = vmatprep.subr.mxu0 0.0
        %3340 = vmatpush1.xpose.msra.mxu0 %v3309
        %3341 = vmatprep.subr.mxu0 0.0
        %3342 = vmatpush1.xpose.msra.mxu0 %v3306
        %3343 = vmatprep.subr.mxu0 0.0
        %3344 = vmatpush2.xpose.msra.mxu0 0.0
        %3345 = vmatprep.subr.mxu0 0.0
        %3346 = vmatpush2.xpose.msra.mxu0 0.0
        %3347 = vmatprep.subr.mxu0 0.0
        %3348 = vmatpush2.xpose.msra.mxu0 0.0
        %3349 = vmatprep.subr.mxu0 0.0
        %3350 = vmatpush2.xpose.msra.mxu0 0.0
        %3351 = vmatprep.subr.mxu0 0.0
        %3352 = vmatpush2.xpose.msra.mxu0 0.0
        %3353 = vmatprep.subr.mxu0 0.0
        %3354 = vmatpush2.xpose.msra.mxu0 0.0
        %3355 = vmatprep.subr.mxu0 0.0
        %3356 = vmatpush2.xpose.msra.mxu0 0.0
        %3357 = vmatprep.subr.mxu0 0.0
        %3358 = vmatpush2.xpose.msra.mxu0 0.0
        %3359 = vmatprep.subr.mxu0 0.0
        %3360 = vmatpush2.xpose.msra.mxu0 0.0
        %3361 = vmatprep.subr.mxu0 0.0
        %3362 = vmatpush2.xpose.msra.mxu0 0.0
        %3363 = vmatprep.subr.mxu0 0.0
        %3364 = vmatpush2.xpose.msra.mxu0 0.0
        %3365 = vmatprep.subr.mxu0 0.0
        %3366 = vmatpush2.xpose.msra.mxu0 0.0
        %3367 = vmatprep.subr.mxu0 0.0
        %3368 = vmatpush2.xpose.msra.mxu0 0.0
        %3369 = vmatprep.subr.mxu0 0.0
        %3370 = vmatpush2.xpose.msra.mxu0 0.0
        %3371 = vmatprep.subr.mxu0 0.0
        %3372 = vmatpush2.xpose.msra.mxu0 0.0
        %3373 = vmatprep.subr.mxu0 0.0
        %3374 = vmatpush2.xpose.msra.mxu0 0.0
        %3375 = vmatprep.mubr.f32.mxu0 0.0
        %3376 = vmatmul.mubr.f32.gmra.mxu0 %v3303
        %v3377 = vpop.f32.mrf.mxu0
        %v3378 = vadd.f32 0.0, %v3377
        %v3379 = vpop.f32.mrf.mxu0
        %3380 = vdwg.mxu0
        %v3381 = vsel %vm2042, %v3141, -inf
        %3382 = vmax.xlane.f32.xlu0 %v3381
        %v3383 = vpop.xlane.xlu0 %3382
        %v3384 = vsel %vm2042, %v3220, -inf
        %3385 = vmax.xlane.f32.xlu0 %v3384
        %v3386 = vpop.xlane.xlu0 %3385
        %v3387 = vsel %vm2042, %v3299, -inf
        %3388 = vmax.xlane.f32.xlu0 %v3387
        %v3389 = vpop.xlane.xlu0 %3388
        %v3390 = vsel %vm2042, %v3378, -inf
        %3391 = vmax.xlane.f32.xlu0 %v3390
        %v3392 = vpop.xlane.xlu0 %3391
        %v3393 = vsub.f32 %v3141, %v3383
        %v3394 = vsub.f32 %v3220, %v3386
        %v3395 = vsub.f32 %v3299, %v3389
        %v3396 = vsub.f32 %v3378, %v3392
        %v3397 = vmul.f32 %v3393, 1.442695
        %v3398 = vpow.pop %v3397
        %v3399 = vmul.f32 %v3394, 1.442695
        %v3400 = vpow.pop %v3399
        %v3401 = vmul.f32 %v3395, 1.442695
        %v3402 = vpow.pop %v3401
        %v3403 = vmul.f32 %v3396, 1.442695
        %v3404 = vpow.pop %v3403
        %v3405 = vsel %vm2042, %v3398, 0.0
        %3406 = vadd.xlane.f32.xlu0 %v3405
        %v3407 = vpop.xlane.xlu0 %3406
        %v3408 = vsel %vm2042, %v3400, 0.0
        %3409 = vadd.xlane.f32.xlu0 %v3408
        %v3410 = vpop.xlane.xlu0 %3409
        %v3411 = vsel %vm2042, %v3402, 0.0
        %3412 = vadd.xlane.f32.xlu0 %v3411
        %v3413 = vpop.xlane.xlu0 %3412
        %v3414 = vsel %vm2042, %v3404, 0.0
        %3415 = vadd.xlane.f32.xlu0 %v3414
        %v3416 = vpop.xlane.xlu0 %3415
        %v3417 = vrcp.pop %v3407
        %v3418 = vmul.f32 %v3398, %v3417
        %v3419 = vrcp.pop %v3410
        %v3420 = vmul.f32 %v3400, %v3419
        %v3421 = vrcp.pop %v3413
        %v3422 = vmul.f32 %v3402, %v3421
        %v3423 = vrcp.pop %v3416
        %v3424 = vmul.f32 %v3404, %v3423
        %v3426 = vsel %vm2042, %v3418, 0
        %3428 = vmatprep.subr.mxu0 0.0
        %3429 = vmatpush1.msra.mxu0 0.0
        %3430 = vmatprep.subr.mxu0 0.0
        %3431 = vmatpush1.msra.mxu0 0.0
        %3432 = vmatprep.subr.mxu0 0.0
        %3433 = vmatpush1.msra.mxu0 0.0
        %3434 = vmatprep.subr.mxu0 0.0
        %3435 = vmatpush1.msra.mxu0 0.0
        %3436 = vmatprep.subr.mxu0 0.0
        %3437 = vmatpush1.msra.mxu0 0.0
        %3438 = vmatprep.subr.mxu0 0.0
        %3439 = vmatpush1.msra.mxu0 0.0
        %3440 = vmatprep.subr.mxu0 0.0
        %3441 = vmatpush1.msra.mxu0 0.0
        %3442 = vmatprep.subr.mxu0 0.0
        %3443 = vmatpush1.msra.mxu0 0.0
        %3444 = vmatprep.subr.mxu0 0.0
        %3445 = vmatpush1.msra.mxu0 0.0
        %3446 = vmatprep.subr.mxu0 0.0
        %3447 = vmatpush1.msra.mxu0 0.0
        %3448 = vmatprep.subr.mxu0 0.0
        %3449 = vmatpush1.msra.mxu0 0.0
        %3450 = vmatprep.subr.mxu0 0.0
        %3451 = vmatpush1.msra.mxu0 0.0
        %3452 = vmatprep.subr.mxu0 0.0
        %3453 = vmatpush1.msra.mxu0 0.0
        %3454 = vmatprep.subr.mxu0 0.0
        %3455 = vmatpush1.msra.mxu0 0.0
        %3456 = vmatprep.subr.mxu0 0.0
        %3457 = vmatpush1.msra.mxu0 %v3061
        %3458 = vmatprep.subr.mxu0 0.0
        %3459 = vmatpush1.msra.mxu0 %v2993
        %3460 = vmatprep.subr.mxu0 0.0
        %3461 = vmatpush2.msra.mxu0 0.0
        %3462 = vmatprep.subr.mxu0 0.0
        %3463 = vmatpush2.msra.mxu0 0.0
        %3464 = vmatprep.subr.mxu0 0.0
        %3465 = vmatpush2.msra.mxu0 0.0
        %3466 = vmatprep.subr.mxu0 0.0
        %3467 = vmatpush2.msra.mxu0 0.0
        %3468 = vmatprep.subr.mxu0 0.0
        %3469 = vmatpush2.msra.mxu0 0.0
        %3470 = vmatprep.subr.mxu0 0.0
        %3471 = vmatpush2.msra.mxu0 0.0
        %3472 = vmatprep.subr.mxu0 0.0
        %3473 = vmatpush2.msra.mxu0 0.0
        %3474 = vmatprep.subr.mxu0 0.0
        %3475 = vmatpush2.msra.mxu0 0.0
        %3476 = vmatprep.subr.mxu0 0.0
        %3477 = vmatpush2.msra.mxu0 0.0
        %3478 = vmatprep.subr.mxu0 0.0
        %3479 = vmatpush2.msra.mxu0 0.0
        %3480 = vmatprep.subr.mxu0 0.0
        %3481 = vmatpush2.msra.mxu0 0.0
        %3482 = vmatprep.subr.mxu0 0.0
        %3483 = vmatpush2.msra.mxu0 0.0
        %3484 = vmatprep.subr.mxu0 0.0
        %3485 = vmatpush2.msra.mxu0 0.0
        %3486 = vmatprep.subr.mxu0 0.0
        %3487 = vmatpush2.msra.mxu0 0.0
        %3488 = vmatprep.subr.mxu0 0.0
        %3489 = vmatpush2.msra.mxu0 0.0
        %3490 = vmatprep.subr.mxu0 0.0
        %3491 = vmatpush2.msra.mxu0 0.0
        %3492 = vmatprep.mubr.f32.mxu0 0.0
        %3493 = vmatmul.mubr.f32.gmra.mxu0 %v3426
        %v3494 = vpop.f32.mrf.mxu0
        %v3495 = vadd.f32 0.0, %v3494
        %v3496 = vpop.f32.mrf.mxu0
        %3497 = vdwg.mxu0
        %v3499 = vsel %vm2042, %v3420, 0
        %3501 = vmatprep.subr.mxu0 0.0
        %3502 = vmatpush1.msra.mxu0 0.0
        %3503 = vmatprep.subr.mxu0 0.0
        %3504 = vmatpush1.msra.mxu0 0.0
        %3505 = vmatprep.subr.mxu0 0.0
        %3506 = vmatpush1.msra.mxu0 0.0
        %3507 = vmatprep.subr.mxu0 0.0
        %3508 = vmatpush1.msra.mxu0 0.0
        %3509 = vmatprep.subr.mxu0 0.0
        %3510 = vmatpush1.msra.mxu0 0.0
        %3511 = vmatprep.subr.mxu0 0.0
        %3512 = vmatpush1.msra.mxu0 0.0
        %3513 = vmatprep.subr.mxu0 0.0
        %3514 = vmatpush1.msra.mxu0 0.0
        %3515 = vmatprep.subr.mxu0 0.0
        %3516 = vmatpush1.msra.mxu0 0.0
        %3517 = vmatprep.subr.mxu0 0.0
        %3518 = vmatpush1.msra.mxu0 0.0
        %3519 = vmatprep.subr.mxu0 0.0
        %3520 = vmatpush1.msra.mxu0 0.0
        %3521 = vmatprep.subr.mxu0 0.0
        %3522 = vmatpush1.msra.mxu0 0.0
        %3523 = vmatprep.subr.mxu0 0.0
        %3524 = vmatpush1.msra.mxu0 0.0
        %3525 = vmatprep.subr.mxu0 0.0
        %3526 = vmatpush1.msra.mxu0 0.0
        %3527 = vmatprep.subr.mxu0 0.0
        %3528 = vmatpush1.msra.mxu0 0.0
        %3529 = vmatprep.subr.mxu0 0.0
        %3530 = vmatpush1.msra.mxu0 %v3062
        %3531 = vmatprep.subr.mxu0 0.0
        %3532 = vmatpush1.msra.mxu0 %v2994
        %3533 = vmatprep.subr.mxu0 0.0
        %3534 = vmatpush2.msra.mxu0 0.0
        %3535 = vmatprep.subr.mxu0 0.0
        %3536 = vmatpush2.msra.mxu0 0.0
        %3537 = vmatprep.subr.mxu0 0.0
        %3538 = vmatpush2.msra.mxu0 0.0
        %3539 = vmatprep.subr.mxu0 0.0
        %3540 = vmatpush2.msra.mxu0 0.0
        %3541 = vmatprep.subr.mxu0 0.0
        %3542 = vmatpush2.msra.mxu0 0.0
        %3543 = vmatprep.subr.mxu0 0.0
        %3544 = vmatpush2.msra.mxu0 0.0
        %3545 = vmatprep.subr.mxu0 0.0
        %3546 = vmatpush2.msra.mxu0 0.0
        %3547 = vmatprep.subr.mxu0 0.0
        %3548 = vmatpush2.msra.mxu0 0.0
        %3549 = vmatprep.subr.mxu0 0.0
        %3550 = vmatpush2.msra.mxu0 0.0
        %3551 = vmatprep.subr.mxu0 0.0
        %3552 = vmatpush2.msra.mxu0 0.0
        %3553 = vmatprep.subr.mxu0 0.0
        %3554 = vmatpush2.msra.mxu0 0.0
        %3555 = vmatprep.subr.mxu0 0.0
        %3556 = vmatpush2.msra.mxu0 0.0
        %3557 = vmatprep.subr.mxu0 0.0
        %3558 = vmatpush2.msra.mxu0 0.0
        %3559 = vmatprep.subr.mxu0 0.0
        %3560 = vmatpush2.msra.mxu0 0.0
        %3561 = vmatprep.subr.mxu0 0.0
        %3562 = vmatpush2.msra.mxu0 0.0
        %3563 = vmatprep.subr.mxu0 0.0
        %3564 = vmatpush2.msra.mxu0 0.0
        %3565 = vmatprep.mubr.f32.mxu0 0.0
        %3566 = vmatmul.mubr.f32.gmra.mxu0 %v3499
        %v3567 = vpop.f32.mrf.mxu0
        %v3568 = vadd.f32 0.0, %v3567
        %v3569 = vpop.f32.mrf.mxu0
        %3570 = vdwg.mxu0
        %v3572 = vsel %vm2042, %v3422, 0
        %3574 = vmatprep.subr.mxu0 0.0
        %3575 = vmatpush1.msra.mxu0 0.0
        %3576 = vmatprep.subr.mxu0 0.0
        %3577 = vmatpush1.msra.mxu0 0.0
        %3578 = vmatprep.subr.mxu0 0.0
        %3579 = vmatpush1.msra.mxu0 0.0
        %3580 = vmatprep.subr.mxu0 0.0
        %3581 = vmatpush1.msra.mxu0 0.0
        %3582 = vmatprep.subr.mxu0 0.0
        %3583 = vmatpush1.msra.mxu0 0.0
        %3584 = vmatprep.subr.mxu0 0.0
        %3585 = vmatpush1.msra.mxu0 0.0
        %3586 = vmatprep.subr.mxu0 0.0
        %3587 = vmatpush1.msra.mxu0 0.0
        %3588 = vmatprep.subr.mxu0 0.0
        %3589 = vmatpush1.msra.mxu0 0.0
        %3590 = vmatprep.subr.mxu0 0.0
        %3591 = vmatpush1.msra.mxu0 0.0
        %3592 = vmatprep.subr.mxu0 0.0
        %3593 = vmatpush1.msra.mxu0 0.0
        %3594 = vmatprep.subr.mxu0 0.0
        %3595 = vmatpush1.msra.mxu0 0.0
        %3596 = vmatprep.subr.mxu0 0.0
        %3597 = vmatpush1.msra.mxu0 0.0
        %3598 = vmatprep.subr.mxu0 0.0
        %3599 = vmatpush1.msra.mxu0 0.0
        %3600 = vmatprep.subr.mxu0 0.0
        %3601 = vmatpush1.msra.mxu0 0.0
        %3602 = vmatprep.subr.mxu0 0.0
        %3603 = vmatpush1.msra.mxu0 %v3063
        %3604 = vmatprep.subr.mxu0 0.0
        %3605 = vmatpush1.msra.mxu0 %v2995
        %3606 = vmatprep.subr.mxu0 0.0
        %3607 = vmatpush2.msra.mxu0 0.0
        %3608 = vmatprep.subr.mxu0 0.0
        %3609 = vmatpush2.msra.mxu0 0.0
        %3610 = vmatprep.subr.mxu0 0.0
        %3611 = vmatpush2.msra.mxu0 0.0
        %3612 = vmatprep.subr.mxu0 0.0
        %3613 = vmatpush2.msra.mxu0 0.0
        %3614 = vmatprep.subr.mxu0 0.0
        %3615 = vmatpush2.msra.mxu0 0.0
        %3616 = vmatprep.subr.mxu0 0.0
        %3617 = vmatpush2.msra.mxu0 0.0
        %3618 = vmatprep.subr.mxu0 0.0
        %3619 = vmatpush2.msra.mxu0 0.0
        %3620 = vmatprep.subr.mxu0 0.0
        %3621 = vmatpush2.msra.mxu0 0.0
        %3622 = vmatprep.subr.mxu0 0.0
        %3623 = vmatpush2.msra.mxu0 0.0
        %3624 = vmatprep.subr.mxu0 0.0
        %3625 = vmatpush2.msra.mxu0 0.0
        %3626 = vmatprep.subr.mxu0 0.0
        %3627 = vmatpush2.msra.mxu0 0.0
        %3628 = vmatprep.subr.mxu0 0.0
        %3629 = vmatpush2.msra.mxu0 0.0
        %3630 = vmatprep.subr.mxu0 0.0
        %3631 = vmatpush2.msra.mxu0 0.0
        %3632 = vmatprep.subr.mxu0 0.0
        %3633 = vmatpush2.msra.mxu0 0.0
        %3634 = vmatprep.subr.mxu0 0.0
        %3635 = vmatpush2.msra.mxu0 0.0
        %3636 = vmatprep.subr.mxu0 0.0
        %3637 = vmatpush2.msra.mxu0 0.0
        %3638 = vmatprep.mubr.f32.mxu0 0.0
        %3639 = vmatmul.mubr.f32.gmra.mxu0 %v3572
        %v3640 = vpop.f32.mrf.mxu0
        %v3641 = vadd.f32 0.0, %v3640
        %v3642 = vpop.f32.mrf.mxu0
        %3643 = vdwg.mxu0
        %v3645 = vsel %vm2042, %v3424, 0
        %3647 = vmatprep.subr.mxu0 0.0
        %3648 = vmatpush1.msra.mxu0 0.0
        %3649 = vmatprep.subr.mxu0 0.0
        %3650 = vmatpush1.msra.mxu0 0.0
        %3651 = vmatprep.subr.mxu0 0.0
        %3652 = vmatpush1.msra.mxu0 0.0
        %3653 = vmatprep.subr.mxu0 0.0
        %3654 = vmatpush1.msra.mxu0 0.0
        %3655 = vmatprep.subr.mxu0 0.0
        %3656 = vmatpush1.msra.mxu0 0.0
        %3657 = vmatprep.subr.mxu0 0.0
        %3658 = vmatpush1.msra.mxu0 0.0
        %3659 = vmatprep.subr.mxu0 0.0
        %3660 = vmatpush1.msra.mxu0 0.0
        %3661 = vmatprep.subr.mxu0 0.0
        %3662 = vmatpush1.msra.mxu0 0.0
        %3663 = vmatprep.subr.mxu0 0.0
        %3664 = vmatpush1.msra.mxu0 0.0
        %3665 = vmatprep.subr.mxu0 0.0
        %3666 = vmatpush1.msra.mxu0 0.0
        %3667 = vmatprep.subr.mxu0 0.0
        %3668 = vmatpush1.msra.mxu0 0.0
        %3669 = vmatprep.subr.mxu0 0.0
        %3670 = vmatpush1.msra.mxu0 0.0
        %3671 = vmatprep.subr.mxu0 0.0
        %3672 = vmatpush1.msra.mxu0 0.0
        %3673 = vmatprep.subr.mxu0 0.0
        %3674 = vmatpush1.msra.mxu0 0.0
        %3675 = vmatprep.subr.mxu0 0.0
        %3676 = vmatpush1.msra.mxu0 %v3064
        %3677 = vmatprep.subr.mxu0 0.0
        %3678 = vmatpush1.msra.mxu0 %v2996
        %3679 = vmatprep.subr.mxu0 0.0
        %3680 = vmatpush2.msra.mxu0 0.0
        %3681 = vmatprep.subr.mxu0 0.0
        %3682 = vmatpush2.msra.mxu0 0.0
        %3683 = vmatprep.subr.mxu0 0.0
        %3684 = vmatpush2.msra.mxu0 0.0
        %3685 = vmatprep.subr.mxu0 0.0
        %3686 = vmatpush2.msra.mxu0 0.0
        %3687 = vmatprep.subr.mxu0 0.0
        %3688 = vmatpush2.msra.mxu0 0.0
        %3689 = vmatprep.subr.mxu0 0.0
        %3690 = vmatpush2.msra.mxu0 0.0
        %3691 = vmatprep.subr.mxu0 0.0
        %3692 = vmatpush2.msra.mxu0 0.0
        %3693 = vmatprep.subr.mxu0 0.0
        %3694 = vmatpush2.msra.mxu0 0.0
        %3695 = vmatprep.subr.mxu0 0.0
        %3696 = vmatpush2.msra.mxu0 0.0
        %3697 = vmatprep.subr.mxu0 0.0
        %3698 = vmatpush2.msra.mxu0 0.0
        %3699 = vmatprep.subr.mxu0 0.0
        %3700 = vmatpush2.msra.mxu0 0.0
        %3701 = vmatprep.subr.mxu0 0.0
        %3702 = vmatpush2.msra.mxu0 0.0
        %3703 = vmatprep.subr.mxu0 0.0
        %3704 = vmatpush2.msra.mxu0 0.0
        %3705 = vmatprep.subr.mxu0 0.0
        %3706 = vmatpush2.msra.mxu0 0.0
        %3707 = vmatprep.subr.mxu0 0.0
        %3708 = vmatpush2.msra.mxu0 0.0
        %3709 = vmatprep.subr.mxu0 0.0
        %3710 = vmatpush2.msra.mxu0 0.0
        %3711 = vmatprep.mubr.f32.mxu0 0.0
        %3712 = vmatmul.mubr.f32.gmra.mxu0 %v3645
        %v3713 = vpop.f32.mrf.mxu0
        %v3714 = vadd.f32 0.0, %v3713
        %v3715 = vpop.f32.mrf.mxu0
        %3716 = vdwg.mxu0
        %v3717 = vcombine.low %v3495, %v3641
        %v3718 = vcombine.high %v3495, %v3641
        %v3720 = vunpack.c.l.s4 1983009808
        %v3721 = vunpack.c.0.s8 %v3720
        %v3722 = vlaneseq
        %v3723 = vshrl.u32 %v3722, 7
        %v3724 = vsub.s32 %v3721, %v3723
        %v3725 = vrot.slane %v3717, %v3724
        %v3727 = vunpack.c.l.s4 1983009808
        %v3728 = vunpack.c.0.s8 %v3727
        %v3729 = vlaneseq
        %v3730 = vshrl.u32 %v3729, 7
        %v3731 = vsub.s32 %v3728, %v3730
        %v3732 = vrot.slane %v3718, %v3731
        %v3733 = vcombine.low %v3568, %v3714
        %v3734 = vcombine.high %v3568, %v3714
        %v3736 = vunpack.c.l.s4 1983009808
        %v3737 = vunpack.c.0.s8 %v3736
        %v3738 = vlaneseq
        %v3739 = vshrl.u32 %v3738, 7
        %v3740 = vsub.s32 %v3737, %v3739
        %v3741 = vrot.slane %v3733, %v3740
        %v3743 = vunpack.c.l.s4 1983009808
        %v3744 = vunpack.c.0.s8 %v3743
        %v3745 = vlaneseq
        %v3746 = vshrl.u32 %v3745, 7
        %v3747 = vsub.s32 %v3744, %v3746
        %v3748 = vrot.slane %v3734, %v3747
        %v3749 = vcombine.low %v3725, %v3741
        %v3750 = vcombine.high %v3725, %v3741
        %v3752 = vunpack.c.l.s4 1934713408
        %v3753 = vunpack.c.0.s8 %v3752
        %v3754 = vlaneseq
        %v3755 = vshrl.u32 %v3754, 7
        %v3756 = vsub.s32 %v3753, %v3755
        %v3757 = vrot.slane %v3749, %v3756
        %v3759 = vunpack.c.l.s4 1934713408
        %v3760 = vunpack.c.0.s8 %v3759
        %v3761 = vlaneseq
        %v3762 = vshrl.u32 %v3761, 7
        %v3763 = vsub.s32 %v3760, %v3762
        %v3764 = vrot.slane %v3750, %v3763
        %v3765 = vcombine.low %v3732, %v3748
        %v3766 = vcombine.high %v3732, %v3748
        %v3768 = vunpack.c.l.s4 1934713408
        %v3769 = vunpack.c.0.s8 %v3768
        %v3770 = vlaneseq
        %v3771 = vshrl.u32 %v3770, 7
        %v3772 = vsub.s32 %v3769, %v3771
        %v3773 = vrot.slane %v3765, %v3772
        %v3775 = vunpack.c.l.s4 1934713408
        %v3776 = vunpack.c.0.s8 %v3775
        %v3777 = vlaneseq
        %v3778 = vshrl.u32 %v3777, 7
        %v3779 = vsub.s32 %v3776, %v3778
        %v3780 = vrot.slane %v3766, %v3779
        %v3781 = vcombine.high %v3757, 0.0
        %v3782 = vcombine.high %v3764, 0.0
        %v3783 = vcombine.high %v3773, 0.0
        %v3784 = vcombine.high %v3780, 0.0
        %v3785 = vcombine.low %v3757, %v3764
        %v3787 = vunpack.c.l.s4 1983009808
        %v3788 = vunpack.c.0.s8 %v3787
        %v3789 = vlaneseq
        %v3790 = vshrl.u32 %v3789, 7
        %v3791 = vsub.s32 %v3788, %v3790
        %v3792 = vrot.slane %v3785, %v3791
        %v3793 = vcombine.low %v3781, %v3782
        %v3795 = vunpack.c.l.s4 1983009808
        %v3796 = vunpack.c.0.s8 %v3795
        %v3797 = vlaneseq
        %v3798 = vshrl.u32 %v3797, 7
        %v3799 = vsub.s32 %v3796, %v3798
        %v3800 = vrot.slane %v3793, %v3799
        %v3801 = vcombine.low %v3773, %v3780
        %v3803 = vunpack.c.l.s4 1983009808
        %v3804 = vunpack.c.0.s8 %v3803
        %v3805 = vlaneseq
        %v3806 = vshrl.u32 %v3805, 7
        %v3807 = vsub.s32 %v3804, %v3806
        %v3808 = vrot.slane %v3801, %v3807
        %v3809 = vcombine.low %v3783, %v3784
        %v3811 = vunpack.c.l.s4 1983009808
        %v3812 = vunpack.c.0.s8 %v3811
        %v3813 = vlaneseq
        %v3814 = vshrl.u32 %v3813, 7
        %v3815 = vsub.s32 %v3812, %v3814
        %v3816 = vrot.slane %v3809, %v3815
        %v3817 = vcombine.low %v3792, %v3800
        %v3818 = vcombine.high %v3792, %v3800
        %v3820 = vunpack.c.l.s4 1934713408
        %v3821 = vunpack.c.0.s8 %v3820
        %v3822 = vlaneseq
        %v3823 = vshrl.u32 %v3822, 7
        %v3824 = vsub.s32 %v3821, %v3823
        %v3825 = vrot.slane %v3817, %v3824
        %v3827 = vunpack.c.l.s4 1934713408
        %v3828 = vunpack.c.0.s8 %v3827
        %v3829 = vlaneseq
        %v3830 = vshrl.u32 %v3829, 7
        %v3831 = vsub.s32 %v3828, %v3830
        %v3832 = vrot.slane %v3818, %v3831
        %v3833 = vcombine.low %v3808, %v3816
        %v3834 = vcombine.high %v3808, %v3816
        %v3836 = vunpack.c.l.s4 1934713408
        %v3837 = vunpack.c.0.s8 %v3836
        %v3838 = vlaneseq
        %v3839 = vshrl.u32 %v3838, 7
        %v3840 = vsub.s32 %v3837, %v3839
        %v3841 = vrot.slane %v3833, %v3840
        %v3843 = vunpack.c.l.s4 1934713408
        %v3844 = vunpack.c.0.s8 %v3843
        %v3845 = vlaneseq
        %v3846 = vshrl.u32 %v3845, 7
        %v3847 = vsub.s32 %v3844, %v3846
        %v3848 = vrot.slane %v3834, %v3847
        %v3849 = vcombine.low %v3825, %v3841
        %v3850 = vcombine.high %v3825, %v3841
        %v3851 = vcombine.low %v3832, %v3848
        %v3852 = vcombine.high %v3832, %v3848
        %3854 = vrot.lane.b32.xlu0 %v3850, 8
        %v3855 = vpop.permute.xlu0 %3854
        %3858 = vrot.lane.b32.xlu0 %v3851, 16
        %v3859 = vpop.permute.xlu0 %3858
        %3862 = vrot.lane.b32.xlu0 %v3852, 24
        %v3863 = vpop.permute.xlu0 %3862
        %v3865 = vsel %vm1252, %v3849, %v3855
        %v3866 = vsel %vm2042, %v3865, %v3859
        %v3867 = vsel %vm2044, %v3866, %v3863
        %v3868 = vld [vmem:[#allocation10] sm:$0xff]
        %v3869 = vld [vmem:[#allocation10 + $0x8] sm:$0xff]
        %v3870 = vld [vmem:[#allocation10 + $0x10] sm:$0xff]
        %v3871 = vld [vmem:[#allocation10 + $0x18] sm:$0xff]
        %v3872 = vld [vmem:[%s11] sm:$0x1]
        %v3874 = vlaneseq
        %v3875 = vshrl.u32 %v3874, 7
        %v3876 = vsub.s32 0, %v3875
        %v3877 = vrot.slane %v3872, %v3876
        %v3880 = vsel %vm736, %v3867, 0
        %3882 = vmatprep.subr.mxu0 0.0
        %3883 = vmatpush1.msra.mxu0 0.0
        %3884 = vmatprep.subr.mxu0 0.0
        %3885 = vmatpush1.msra.mxu0 0.0
        %3886 = vmatprep.subr.mxu0 0.0
        %3887 = vmatpush1.msra.mxu0 0.0
        %3888 = vmatprep.subr.mxu0 0.0
        %3889 = vmatpush1.msra.mxu0 0.0
        %3890 = vmatprep.subr.mxu0 0.0
        %3891 = vmatpush1.msra.mxu0 0.0
        %3892 = vmatprep.subr.mxu0 0.0
        %3893 = vmatpush1.msra.mxu0 0.0
        %3894 = vmatprep.subr.mxu0 0.0
        %3895 = vmatpush1.msra.mxu0 0.0
        %3896 = vmatprep.subr.mxu0 0.0
        %3897 = vmatpush1.msra.mxu0 0.0
        %3898 = vmatprep.subr.mxu0 0.0
        %3899 = vmatpush1.msra.mxu0 0.0
        %3900 = vmatprep.subr.mxu0 0.0
        %3901 = vmatpush1.msra.mxu0 0.0
        %3902 = vmatprep.subr.mxu0 0.0
        %3903 = vmatpush1.msra.mxu0 0.0
        %3904 = vmatprep.subr.mxu0 0.0
        %3905 = vmatpush1.msra.mxu0 0.0
        %3906 = vmatprep.subr.mxu0 0.0
        %3907 = vmatpush1.msra.mxu0 %v3871
        %3908 = vmatprep.subr.mxu0 0.0
        %3909 = vmatpush1.msra.mxu0 %v3870
        %3910 = vmatprep.subr.mxu0 0.0
        %3911 = vmatpush1.msra.mxu0 %v3869
        %3912 = vmatprep.subr.mxu0 0.0
        %3913 = vmatpush1.msra.mxu0 %v3868
        %3914 = vmatprep.subr.mxu0 0.0
        %3915 = vmatpush2.msra.mxu0 0.0
        %3916 = vmatprep.subr.mxu0 0.0
        %3917 = vmatpush2.msra.mxu0 0.0
        %3918 = vmatprep.subr.mxu0 0.0
        %3919 = vmatpush2.msra.mxu0 0.0
        %3920 = vmatprep.subr.mxu0 0.0
        %3921 = vmatpush2.msra.mxu0 0.0
        %3922 = vmatprep.subr.mxu0 0.0
        %3923 = vmatpush2.msra.mxu0 0.0
        %3924 = vmatprep.subr.mxu0 0.0
        %3925 = vmatpush2.msra.mxu0 0.0
        %3926 = vmatprep.subr.mxu0 0.0
        %3927 = vmatpush2.msra.mxu0 0.0
        %3928 = vmatprep.subr.mxu0 0.0
        %3929 = vmatpush2.msra.mxu0 0.0
        %3930 = vmatprep.subr.mxu0 0.0
        %3931 = vmatpush2.msra.mxu0 0.0
        %3932 = vmatprep.subr.mxu0 0.0
        %3933 = vmatpush2.msra.mxu0 0.0
        %3934 = vmatprep.subr.mxu0 0.0
        %3935 = vmatpush2.msra.mxu0 0.0
        %3936 = vmatprep.subr.mxu0 0.0
        %3937 = vmatpush2.msra.mxu0 0.0
        %3938 = vmatprep.subr.mxu0 0.0
        %3939 = vmatpush2.msra.mxu0 0.0
        %3940 = vmatprep.subr.mxu0 0.0
        %3941 = vmatpush2.msra.mxu0 0.0
        %3942 = vmatprep.subr.mxu0 0.0
        %3943 = vmatpush2.msra.mxu0 0.0
        %3944 = vmatprep.subr.mxu0 0.0
        %3945 = vmatpush2.msra.mxu0 0.0
        %3946 = vmatprep.mubr.f32.mxu0 0.0
        %3947 = vmatmul.mubr.f32.gmra.mxu0 %v3880
        %v3948 = vpop.f32.mrf.mxu0
        %v3949 = vadd.f32 %v3877, %v3948
        %v3950 = vpop.f32.mrf.mxu0
        %3951 = vdwg.mxu0
        %v3952 = vsel %vm2042, %v3418, 0.0
        %v3953 = vsel %vm2042, %v3420, 0.0
        %v3954 = vadd.f32 %v3952, %v3953
        %v3955 = vsel %vm2042, %v3422, 0.0
        %v3956 = vadd.f32 %v3954, %v3955
        %v3957 = vsel %vm2042, %v3424, 0.0
        %v3958 = vadd.f32 %v3956, %v3957
        %v3959 = vrcp.pop 4.0
        %v3960 = vmul.f32 %v3958, %v3959
        %v3961 = vadd.f32 %v2154, %v3949
        %v3962 = vsel %vm736, %v3961, 0.0
        %3963 = vadd.xlane.f32.xlu0 %v3962
        %v3964 = vpop.xlane.xlu0 %3963
        %v3965 = vmul.f32 %v3964, %v2134
        %v3966 = vsub.f32 %v3961, %v3965
        %v3967 = vmul.f32 %v3966, %v3966
        %v3968 = vsel %vm736, %v3967, 0.0
        %3969 = vadd.xlane.f32.xlu0 %v3968
        %v3970 = vpop.xlane.xlu0 %3969
        %v3971 = vmul.f32 %v3970, %v2134
        %v3972 = vadd.f32 %v3971, 1e-05
        %v3973 = vrsqrt.pop %v3972
        %v3974 = vmul.f32 %v3966, %v3973
        %v3975 = vlaneseq
        %v3976 = vshrl.u32 %v3975, 7
        %v3977 = vsub.s32 1, %v3976
        %v3978 = vrot.slane %v723, %v3977
        %v3979 = vmul.f32 %v3974, %v3978
        %v3980 = vlaneseq
        %v3981 = vshrl.u32 %v3980, 7
        %v3982 = vsub.s32 1, %v3981
        %v3983 = vrot.slane %v724, %v3982
        %v3984 = vadd.f32 %v3979, %v3983
        %v3985 = vld [vmem:[#allocation11] sm:$0xff]
        %v3986 = vld [vmem:[#allocation11 + $0x8] sm:$0xff]
        %v3987 = vld [vmem:[#allocation11 + $0x10] sm:$0xff]
        %v3988 = vld [vmem:[#allocation11 + $0x18] sm:$0xff]
        %v3989 = vld [vmem:[%s13] sm:$0x1]
        %v3991 = vlaneseq
        %v3992 = vshrl.u32 %v3991, 7
        %v3993 = vsub.s32 0, %v3992
        %v3994 = vrot.slane %v3989, %v3993
        %v3997 = vsel %vm736, %v3984, 0
        %3999 = vmatprep.subr.mxu0 0.0
        %4000 = vmatpush1.msra.mxu0 0.0
        %4001 = vmatprep.subr.mxu0 0.0
        %4002 = vmatpush1.msra.mxu0 0.0
        %4003 = vmatprep.subr.mxu0 0.0
        %4004 = vmatpush1.msra.mxu0 0.0
        %4005 = vmatprep.subr.mxu0 0.0
        %4006 = vmatpush1.msra.mxu0 0.0
        %4007 = vmatprep.subr.mxu0 0.0
        %4008 = vmatpush1.msra.mxu0 0.0
        %4009 = vmatprep.subr.mxu0 0.0
        %4010 = vmatpush1.msra.mxu0 0.0
        %4011 = vmatprep.subr.mxu0 0.0
        %4012 = vmatpush1.msra.mxu0 0.0
        %4013 = vmatprep.subr.mxu0 0.0
        %4014 = vmatpush1.msra.mxu0 0.0
        %4015 = vmatprep.subr.mxu0 0.0
        %4016 = vmatpush1.msra.mxu0 0.0
        %4017 = vmatprep.subr.mxu0 0.0
        %4018 = vmatpush1.msra.mxu0 0.0
        %4019 = vmatprep.subr.mxu0 0.0
        %4020 = vmatpush1.msra.mxu0 0.0
        %4021 = vmatprep.subr.mxu0 0.0
        %4022 = vmatpush1.msra.mxu0 0.0
        %4023 = vmatprep.subr.mxu0 0.0
        %4024 = vmatpush1.msra.mxu0 %v3988
        %4025 = vmatprep.subr.mxu0 0.0
        %4026 = vmatpush1.msra.mxu0 %v3987
        %4027 = vmatprep.subr.mxu0 0.0
        %4028 = vmatpush1.msra.mxu0 %v3986
        %4029 = vmatprep.subr.mxu0 0.0
        %4030 = vmatpush1.msra.mxu0 %v3985
        %4031 = vmatprep.subr.mxu0 0.0
        %4032 = vmatpush2.msra.mxu0 0.0
        %4033 = vmatprep.subr.mxu0 0.0
        %4034 = vmatpush2.msra.mxu0 0.0
        %4035 = vmatprep.subr.mxu0 0.0
        %4036 = vmatpush2.msra.mxu0 0.0
        %4037 = vmatprep.subr.mxu0 0.0
        %4038 = vmatpush2.msra.mxu0 0.0
        %4039 = vmatprep.subr.mxu0 0.0
        %4040 = vmatpush2.msra.mxu0 0.0
        %4041 = vmatprep.subr.mxu0 0.0
        %4042 = vmatpush2.msra.mxu0 0.0
        %4043 = vmatprep.subr.mxu0 0.0
        %4044 = vmatpush2.msra.mxu0 0.0
        %4045 = vmatprep.subr.mxu0 0.0
        %4046 = vmatpush2.msra.mxu0 0.0
        %4047 = vmatprep.subr.mxu0 0.0
        %4048 = vmatpush2.msra.mxu0 0.0
        %4049 = vmatprep.subr.mxu0 0.0
        %4050 = vmatpush2.msra.mxu0 0.0
        %4051 = vmatprep.subr.mxu0 0.0
        %4052 = vmatpush2.msra.mxu0 0.0
        %4053 = vmatprep.subr.mxu0 0.0
        %4054 = vmatpush2.msra.mxu0 0.0
        %4055 = vmatprep.subr.mxu0 0.0
        %4056 = vmatpush2.msra.mxu0 0.0
        %4057 = vmatprep.subr.mxu0 0.0
        %4058 = vmatpush2.msra.mxu0 0.0
        %4059 = vmatprep.subr.mxu0 0.0
        %4060 = vmatpush2.msra.mxu0 0.0
        %4061 = vmatprep.subr.mxu0 0.0
        %4062 = vmatpush2.msra.mxu0 0.0
        %4063 = vmatprep.mubr.f32.mxu0 0.0
        %4064 = vmatmul.mubr.f32.gmra.mxu0 %v3997
        %v4065 = vpop.f32.mrf.mxu0
        %v4066 = vadd.f32 %v3994, %v4065
        %v4067 = vpop.f32.mrf.mxu0
        %4068 = vdwg.mxu0
        %v4069 = vmax.f32 %v4066, 0.0
        %v4070 = vld [vmem:[%s14] sm:$0xff]
        %v4071 = vld [vmem:[%s14 + $0x8] sm:$0xff]
        %v4072 = vld [vmem:[%s14 + $0x10] sm:$0xff]
        %v4073 = vld [vmem:[%s14 + $0x18] sm:$0xff]
        %v4074 = vld [vmem:[%s14 + $0x20] sm:$0xff]
        %v4075 = vld [vmem:[%s14 + $0x28] sm:$0xff]
        %v4076 = vld [vmem:[%s14 + $0x30] sm:$0xff]
        %v4077 = vld [vmem:[%s14 + $0x38] sm:$0xff]
        %v4078 = vld [vmem:[%s15] sm:$0x1]
        %v4080 = vlaneseq
        %v4081 = vshrl.u32 %v4080, 7
        %v4082 = vsub.s32 0, %v4081
        %v4083 = vrot.slane %v4078, %v4082
        %vm4085 = vcmask 523264
        %v4087 = vsel %vm4085, %v4069, 0
        %4089 = vmatprep.subr.mxu0 0.0
        %4090 = vmatpush1.msra.mxu0 0.0
        %4091 = vmatprep.subr.mxu0 0.0
        %4092 = vmatpush1.msra.mxu0 0.0
        %4093 = vmatprep.subr.mxu0 0.0
        %4094 = vmatpush1.msra.mxu0 0.0
        %4095 = vmatprep.subr.mxu0 0.0
        %4096 = vmatpush1.msra.mxu0 0.0
        %4097 = vmatprep.subr.mxu0 0.0
        %4098 = vmatpush1.msra.mxu0 0.0
        %4099 = vmatprep.subr.mxu0 0.0
        %4100 = vmatpush1.msra.mxu0 0.0
        %4101 = vmatprep.subr.mxu0 0.0
        %4102 = vmatpush1.msra.mxu0 0.0
        %4103 = vmatprep.subr.mxu0 0.0
        %4104 = vmatpush1.msra.mxu0 0.0
        %4105 = vmatprep.subr.mxu0 0.0
        %4106 = vmatpush1.msra.mxu0 %v4077
        %4107 = vmatprep.subr.mxu0 0.0
        %4108 = vmatpush1.msra.mxu0 %v4076
        %4109 = vmatprep.subr.mxu0 0.0
        %4110 = vmatpush1.msra.mxu0 %v4075
        %4111 = vmatprep.subr.mxu0 0.0
        %4112 = vmatpush1.msra.mxu0 %v4074
        %4113 = vmatprep.subr.mxu0 0.0
        %4114 = vmatpush1.msra.mxu0 %v4073
        %4115 = vmatprep.subr.mxu0 0.0
        %4116 = vmatpush1.msra.mxu0 %v4072
        %4117 = vmatprep.subr.mxu0 0.0
        %4118 = vmatpush1.msra.mxu0 %v4071
        %4119 = vmatprep.subr.mxu0 0.0
        %4120 = vmatpush1.msra.mxu0 %v4070
        %4121 = vmatprep.subr.mxu0 0.0
        %4122 = vmatpush2.msra.mxu0 0.0
        %4123 = vmatprep.subr.mxu0 0.0
        %4124 = vmatpush2.msra.mxu0 0.0
        %4125 = vmatprep.subr.mxu0 0.0
        %4126 = vmatpush2.msra.mxu0 0.0
        %4127 = vmatprep.subr.mxu0 0.0
        %4128 = vmatpush2.msra.mxu0 0.0
        %4129 = vmatprep.subr.mxu0 0.0
        %4130 = vmatpush2.msra.mxu0 0.0
        %4131 = vmatprep.subr.mxu0 0.0
        %4132 = vmatpush2.msra.mxu0 0.0
        %4133 = vmatprep.subr.mxu0 0.0
        %4134 = vmatpush2.msra.mxu0 0.0
        %4135 = vmatprep.subr.mxu0 0.0
        %4136 = vmatpush2.msra.mxu0 0.0
        %4137 = vmatprep.subr.mxu0 0.0
        %4138 = vmatpush2.msra.mxu0 0.0
        %4139 = vmatprep.subr.mxu0 0.0
        %4140 = vmatpush2.msra.mxu0 0.0
        %4141 = vmatprep.subr.mxu0 0.0
        %4142 = vmatpush2.msra.mxu0 0.0
        %4143 = vmatprep.subr.mxu0 0.0
        %4144 = vmatpush2.msra.mxu0 0.0
        %4145 = vmatprep.subr.mxu0 0.0
        %4146 = vmatpush2.msra.mxu0 0.0
        %4147 = vmatprep.subr.mxu0 0.0
        %4148 = vmatpush2.msra.mxu0 0.0
        %4149 = vmatprep.subr.mxu0 0.0
        %4150 = vmatpush2.msra.mxu0 0.0
        %4151 = vmatprep.subr.mxu0 0.0
        %4152 = vmatpush2.msra.mxu0 0.0
        %4153 = vmatprep.mubr.f32.mxu0 0.0
        %4154 = vmatmul.mubr.f32.gmra.mxu0 %v4087
        %v4155 = vpop.f32.mrf.mxu0
        %v4156 = vadd.f32 %v4083, %v4155
        %v4157 = vpop.f32.mrf.mxu0
        %4158 = vdwg.mxu0
        %v4159 = vadd.f32 %v3984, %v4156
        %v4160 = vsel %vm736, %v4159, 0.0
        %4161 = vadd.xlane.f32.xlu0 %v4160
        %v4162 = vpop.xlane.xlu0 %4161
        %v4163 = vmul.f32 %v4162, %v2134
        %v4164 = vsub.f32 %v4159, %v4163
        %v4165 = vmul.f32 %v4164, %v4164
        %v4166 = vsel %vm736, %v4165, 0.0
        %4167 = vadd.xlane.f32.xlu0 %v4166
        %v4168 = vpop.xlane.xlu0 %4167
        %v4169 = vmul.f32 %v4168, %v2134
        %v4170 = vadd.f32 %v4169, 1e-05
        %v4171 = vrsqrt.pop %v4170
        %v4172 = vmul.f32 %v4164, %v4171
        %v4173 = vlaneseq
        %v4174 = vshrl.u32 %v4173, 7
        %v4175 = vsub.s32 2, %v4174
        %v4176 = vrot.slane %v723, %v4175
        %v4177 = vmul.f32 %v4172, %v4176
        %v4178 = vlaneseq
        %v4179 = vshrl.u32 %v4178, 7
        %v4180 = vsub.s32 2, %v4179
        %v4181 = vrot.slane %v724, %v4180
        %v4182 = vadd.f32 %v4177, %v4181
        %4183 = vst.msk [vmem:[%s707] sm:$0xff] %vm736, %v4182
        %4184 = vst.msk [vmem:[%s714] sm:$0xff] %vm2042, %v3960
        %s4185 = sand.u32 %s439, 1
        %s4186 = scalar_lea.sflag [#allocation4], %s4185
        %s4187 = sand.u32 %s439, 1
        %s4188 = smul.addr %s4187, 8
        %s4189 = scalar_lea.vmem [#allocation13], %s4188
        %s4190 = sand.u32 %s465, 1
        %s4191 = scalar_lea.sflag [#allocation15], %s4190
        %s4192 = sand.u32 %s465, 1
        %s4193 = smul.addr %s4192, 8
        %s4194 = scalar_lea.vmem [#allocation14], %s4193
        // Predicated region
        $region117: #{tpu_custom_call.1} parent=91 // pred_check
          %p4195 = pneg %p449
        $region118: #{tpu_custom_call.1} parent=91 // pred_check_branch
          %4197 = sbr.rel (%p4195) target = $region120
        $region119: #{tpu_custom_call.1} parent=91 // pred_region
          %s4199 = ssub.s32 128, 128
          %4200 = vsyncadd %s4186, %s4199
          %s4201 = smul.addr %s43, 128
          %s4202 = scalar_lea.hbm %s18, %s4201
          %s4204 = sshll.u32 %s4189, 4
          %s4205 = int_to_ptr.vmem [resolvable:$true] %s4204
          %4207 = dma.vmem_to_hbm [thread:$0]  %s4205, 128, %s4202, %s4186
        $region120: #{tpu_custom_call.1} parent=91 // pred_fallthru
          _
        // Predicated region
        $region121: #{tpu_custom_call.1} parent=91 // pred_check
          %p4208 = pneg %p475
        $region122: #{tpu_custom_call.1} parent=91 // pred_check_branch
          %4210 = sbr.rel (%p4208) target = $region124
        $region123: #{tpu_custom_call.1} parent=91 // pred_region
          %s4212 = ssub.s32 128, 128
          %4213 = vsyncadd %s4191, %s4212
          %s4214 = smul.addr %s43, 128
          %s4215 = scalar_lea.hbm %s19, %s4214
          %s4217 = sshll.u32 %s4194, 4
          %s4218 = int_to_ptr.vmem [resolvable:$true] %s4217
          %4220 = dma.vmem_to_hbm [thread:$0]  %s4218, 128, %s4215, %s4191
        $region124: #{tpu_custom_call.1} parent=91 // pred_fallthru
          _
      $region92: #{tpu_custom_call.1} parent=5 // pred_fallthru
        _
      %p4221 = scmp.le.s32.totalorder 2, %s38
      // Predicated region
      $region125: #{tpu_custom_call.1} parent=5 // pred_check
        %p4222 = pneg %p4221
      $region126: #{tpu_custom_call.1} parent=5 // pred_check_branch
        %4224 = sbr.rel (%p4222) target = $region128
      $region127: #{tpu_custom_call.1} parent=5 // pred_region
        %s4225 = ssub.s32 %s38, 2
        // Predicated region
        $region129: #{tpu_custom_call.1} parent=127 // pred_check
          %p4226 = pneg %p455
        $region130: #{tpu_custom_call.1} parent=127 // pred_check_branch
          %4228 = sbr.rel (%p4226) target = $region132
        $region131: #{tpu_custom_call.1} parent=127 // pred_region
          %s4229 = sand.u32 %s440, 1
          %s4230 = scalar_lea.sflag [#allocation4], %s4229
          %s4231 = sand.u32 %s440, 1
          %s4232 = smul.addr %s4231, 8
          %s4233 = scalar_lea.vmem [#allocation13], %s4232
          %4234 = dma.done %s4230, 128
        $region132: #{tpu_custom_call.1} parent=127 // pred_fallthru
          _
        // Predicated region
        $region133: #{tpu_custom_call.1} parent=127 // pred_check
          %p4235 = pneg %p481
        $region134: #{tpu_custom_call.1} parent=127 // pred_check_branch
          %4237 = sbr.rel (%p4235) target = $region136
        $region135: #{tpu_custom_call.1} parent=127 // pred_region
          %s4238 = sand.u32 %s466, 1
          %s4239 = scalar_lea.sflag [#allocation15], %s4238
          %s4240 = sand.u32 %s466, 1
          %s4241 = smul.addr %s4240, 8
          %s4242 = scalar_lea.vmem [#allocation14], %s4241
          %4243 = dma.done %s4239, 128
        $region136: #{tpu_custom_call.1} parent=127 // pred_fallthru
          _
      $region128: #{tpu_custom_call.1} parent=5 // pred_fallthru
        _
    $region6: #{tpu_custom_call.1} parent=1 // loop_footer
      %s42 = sadd.s32 1, %s38
    $region7: #{tpu_custom_call.1} parent=1 // loop_footer_branch
      %37 = sbr.rel target = $region3
    $region8: #{tpu_custom_call.1} parent=1 // loop_exit
      _
    %4244 = vsyncpa [#allocation3], 1
    %s4245 = scalar_lea.sflag [#allocation3], 1
    %4246 = vsyncpa %s4245, 1
    %4247 = vsyncpa [#allocation6], 1
    %4248 = vsyncpa [#allocation9], 1
    %4249 = vsyncpa [#allocation12], 1
    %4250 = vsyncpa [#allocation4], 1
    %s4251 = scalar_lea.sflag [#allocation4], 1
    %4252 = vsyncpa %s4251, 1
    %4253 = vsyncpa [#allocation15], 1
    %s4254 = scalar_lea.sflag [#allocation15], 1
    %4255 = vsyncpa %s4254, 1

</llo_original>
